<compile_context>
chip_gen: v7x
topology: tpu7x:2x2x1
jax: 0.10.0
libtpu: 0.0.40
codegen_flags: <defaults>
</compile_context>

<pallas_src>
import jax
import jax.numpy as jnp
from jax.experimental import pallas as pl
from jax.experimental.pallas import tpu as pltpu

IN_DIM = 28 * 28        # 784
IN_PAD = 7 * 128        # 896, zero-padded lane-aligned version of 784


# ----------------------------------------------------------------------------
# Fused forward kernel: entire EncoderDecoderMNIST forward for one batch tile.
# ----------------------------------------------------------------------------
def fused_vae_kernel(
    x_ref,                    # (TB, 896)  f32  (cols 784: zero padding)
    we0_ref, be0_ref,         # (896, 512) bf16, (1, 512) f32
    we1_ref, be1_ref,         # (512, 256) bf16, (1, 256) f32
    wh_ref, bh_ref,           # (256, 256) bf16, (1, 256) f32   merged [mean | logvar]
    eps_ref,                  # (TB, 128)  f32
    wd0_ref, bd0_ref,         # (128, 256) bf16, (1, 256) f32
    wd1_ref, bd1_ref,         # (256, 512) bf16, (1, 512) f32
    wd2_ref, bd2_ref,         # (512, 896) bf16, (1, 896) f32
    mean_ref, logvar_ref, z_ref, dec_ref,   # outputs (all f32)
):
    latent = eps_ref.shape[-1]
    bf16 = jnp.bfloat16
    f32 = jnp.float32

    # --- encoder: Linear+ReLU, Linear+ReLU ------------------------------------
    h = jnp.dot(x_ref[...].astype(bf16), we0_ref[...], preferred_element_type=f32)
    h = jnp.maximum(h + be0_ref[...], 0.0)
    h = jnp.dot(h.astype(bf16), we1_ref[...], preferred_element_type=f32)
    h = jnp.maximum(h + be1_ref[...], 0.0)

    # --- latent heads (mean | logvar fused into one lane-dense matmul) --------
    heads = jnp.dot(h.astype(bf16), wh_ref[...], preferred_element_type=f32)
    heads = heads + bh_ref[...]
    mean = heads[:, :latent]          # split exactly on the 128-lane boundary
    log_var = heads[:, latent:]

    # --- reparameterise: z = mean + exp(0.5 * log_var) * eps  (all f32) -------
    z = mean + jnp.exp(0.5 * log_var) * eps_ref[...]

    mean_ref[...] = mean
    logvar_ref[...] = log_var
    z_ref[...] = z

    # --- decoder: Linear (no act), Linear+ReLU, Linear+ReLU -------------------
    d = jnp.dot(z.astype(bf16), wd0_ref[...], preferred_element_type=f32) + bd0_ref[...]
    d = jnp.dot(d.astype(bf16), wd1_ref[...], preferred_element_type=f32)
    d = jnp.maximum(d + bd1_ref[...], 0.0)
    d = jnp.dot(d.astype(bf16), wd2_ref[...], preferred_element_type=f32)
    d = jnp.maximum(d + bd2_ref[...], 0.0)
    dec_ref[...] = d


# ----------------------------------------------------------------------------
# Pallas wrapper: batch-tiled grid, weights resident across tiles.
# ----------------------------------------------------------------------------
def fused_forward_pallas(x_pad, eps, params, tile_b=8):
    B = x_pad.shape[0]
    latent = eps.shape[1]
    out_dim = params["w_d2"].shape[1]           # 896 (padded)

    # Pad the batch to a multiple of the batch tile (sliced back below).
    b_pad = pl.cdiv(B, tile_b) * tile_b
    if b_pad != B:
        x_pad = jnp.pad(x_pad, ((0, b_pad - B), (0, 0)))
        eps = jnp.pad(eps, ((0, b_pad - B), (0, 0)))

    args = [
        x_pad,
        params["w_e0"], params["b_e0"],
        params["w_e1"], params["b_e1"],
        params["w_heads"], params["b_heads"],
        eps,
        params["w_d0"], params["b_d0"],
        params["w_d1"], params["b_d1"],
        params["w_d2"], params["b_d2"],
    ]

    def _resident(arr):
        # Same block index for every batch tile -> weight stays VMEM-resident.
        nd = arr.ndim
        return pl.BlockSpec(arr.shape, lambda b, _nd=nd: (0,) * _nd)

    def _batched(cols):
        return pl.BlockSpec((tile_b, cols), lambda b: (b, 0))

    in_specs = [
        _batched(x_pad.shape[1]),
        _resident(params["w_e0"]), _resident(params["b_e0"]),
        _resident(params["w_e1"]), _resident(params["b_e1"]),
        _resident(params["w_heads"]), _resident(params["b_heads"]),
        _batched(latent),
        _resident(params["w_d0"]), _resident(params["b_d0"]),
        _resident(params["w_d1"]), _resident(params["b_d1"]),
        _resident(params["w_d2"]), _resident(params["b_d2"]),
    ]

    out_shape = (
        jax.ShapeDtypeStruct((b_pad, latent), jnp.float32),   # mean
        jax.ShapeDtypeStruct((b_pad, latent), jnp.float32),   # log_var
        jax.ShapeDtypeStruct((b_pad, latent), jnp.float32),   # z
        jax.ShapeDtypeStruct((b_pad, out_dim), jnp.float32),  # decoded (flat, padded)
    )
    out_specs = (
        _batched(latent),
        _batched(latent),
        _batched(latent),
        _batched(out_dim),
    )

    mean, log_var, z, dec = pl.pallas_call(
        fused_vae_kernel,
        grid=(b_pad // tile_b,),
        out_shape=out_shape,
        in_specs=in_specs,
        out_specs=out_specs,
        compiler_params=pltpu.CompilerParams(
            dimension_semantics=("parallel",)),
    )(*args)

    if b_pad != B:
        mean, log_var, z, dec = mean[:B], log_var[:B], z[:B], dec[:B]
    return mean, log_var, z, dec


# ----------------------------------------------------------------------------
# Parameter init (PyTorch-like U(-1/sqrt(fan_in), 1/sqrt(fan_in))).
# Weights stored (in, out) in bf16; biases (1, out) in f32; heads pre-merged;
# the 784 dim zero-padded to 896 on w_e0 (rows) and w_d2/b_d2 (columns).
# ----------------------------------------------------------------------------
def _init_linear(key, fan_in, fan_out):
    kw, kb = jax.random.split(key)
    scale = 1.0 / jnp.sqrt(jnp.float32(fan_in))
    w = jax.random.uniform(kw, (fan_in, fan_out), jnp.float32, -scale, scale)
    b = jax.random.uniform(kb, (1, fan_out), jnp.float32, -scale, scale)
    return w, b


def init_model_params(key, encoder_params=(IN_DIM, 512, 256), latent_dim=128):
    keys = jax.random.split(key, 8)
    k = iter(keys)
    pad = IN_PAD - IN_DIM
    p = {}

    # encoder: Linear(784,512)+ReLU, Linear(512,256)+ReLU
    w, b = _init_linear(next(k), encoder_params[0], encoder_params[1])
    p["w_e0"] = jnp.pad(w, ((0, pad), (0, 0))).astype(jnp.bfloat16)   # zero K rows: exact
    p["b_e0"] = b
    w, b = _init_linear(next(k), encoder_params[1], encoder_params[2])
    p["w_e1"], p["b_e1"] = w.astype(jnp.bfloat16), b

    # latent heads, merged: [W_mean | W_logvar] -> (256, 2*latent)
    w_m, b_m = _init_linear(next(k), encoder_params[2], latent_dim)
    w_v, b_v = _init_linear(next(k), encoder_params[2], latent_dim)
    p["w_heads"] = jnp.concatenate([w_m, w_v], axis=1).astype(jnp.bfloat16)
    p["b_heads"] = jnp.concatenate([b_m, b_v], axis=1)

    # decoder: Linear(128,256) [no relu], Linear(256,512)+ReLU, Linear(512,784)+ReLU
    w, b = _init_linear(next(k), latent_dim, encoder_params[2])
    p["w_d0"], p["b_d0"] = w.astype(jnp.bfloat16), b
    w, b = _init_linear(next(k), encoder_params[2], encoder_params[1])
    p["w_d1"], p["b_d1"] = w.astype(jnp.bfloat16), b
    w, b = _init_linear(next(k), encoder_params[1], encoder_params[0])
    p["w_d2"] = jnp.pad(w, ((0, 0), (0, pad))).astype(jnp.bfloat16)   # zero out columns
    p["b_d2"] = jnp.pad(b, ((0, 0), (0, pad)))
    return p


# ----------------------------------------------------------------------------
# Forward (mirrors EncoderDecoderMNIST.forward).
# ----------------------------------------------------------------------------
def encoder_decoder_mnist_forward(params, x_nchw, eps):
    B = x_nchw.shape[0]
    x = x_nchw.reshape(B, IN_DIM)                         # input.view(-1, 784)
    x = jnp.pad(x, ((0, 0), (0, IN_PAD - IN_DIM)))        # lane-align 784 -> 896
    mean, log_var, z, dec = fused_forward_pallas(x, eps, params)
    decoded = dec[:, :IN_DIM].reshape(B, 1, 28, 28)       # drop padding, NCHW
    return mean, log_var, z, decoded


# Pure-JAX reference with the same bf16-weight numerics (no Pallas).
def forward_reference(params, x_nchw, eps):
    B = x_nchw.shape[0]
    latent = eps.shape[1]

    def mm(a, w):
        return jnp.dot(a.astype(jnp.bfloat16), w, preferred_element_type=jnp.float32)

    x = x_nchw.reshape(B, IN_DIM)
    x = jnp.pad(x, ((0, 0), (0, IN_PAD - IN_DIM)))
    h = jnp.maximum(mm(x, params["w_e0"]) + params["b_e0"], 0.0)
    h = jnp.maximum(mm(h, params["w_e1"]) + params["b_e1"], 0.0)
    heads = mm(h, params["w_heads"]) + params["b_heads"]
    mean, log_var = heads[:, :latent], heads[:, latent:]
    z = mean + jnp.exp(0.5 * log_var) * eps
    d = mm(z, params["w_d0"]) + params["b_d0"]
    d = jnp.maximum(mm(d, params["w_d1"]) + params["b_d1"], 0.0)
    d = jnp.maximum(mm(d, params["w_d2"]) + params["b_d2"], 0.0)
    return mean, log_var, z, d[:, :IN_DIM].reshape(B, 1, 28, 28)


# ----------------------------------------------------------------------------
if __name__ == "__main__":
    root_key = jax.random.PRNGKey(0)
    k_params, k_input, k_eps = jax.random.split(root_key, 3)

    latent_dim = 128
    params = init_model_params(k_params, latent_dim=latent_dim)

    B = 8
    x = jax.random.uniform(k_input, (B, 1, 28, 28), jnp.float32)  # NCHW like PyTorch
    # TODO(synk): torch.randn_like inside reparameterise has no in-kernel
    # equivalent matching jax.random's stream; eps is drawn here and passed in.
    eps = jax.random.normal(k_eps, (B, latent_dim), jnp.float32)

    fwd = jax.jit(encoder_decoder_mnist_forward)
    mean, log_var, z, decoded = fwd(params, x, eps)
    jax.block_until_ready((mean, log_var, z, decoded))

    assert mean.shape == (B, latent_dim)
    assert log_var.shape == (B, latent_dim)
    assert z.shape == (B, latent_dim)
    assert decoded.shape == (B, 1, 28, 28)

    # Correctness vs a pure-JAX reference using the same bf16 weights.
    ref = forward_reference(params, x, eps)
    for got, want in zip((mean, log_var, z, decoded), ref):
        assert bool(jnp.all(jnp.isfinite(got)))
        assert jnp.allclose(got, want, atol=2e-2, rtol=2e-2), \
            float(jnp.max(jnp.abs(got - want)))

    print("KERNEL_OK")
</pallas_src>

<mosaic_0001>
module attributes {stable_mosaic.version = 11 : i64} {
  func.func @fused_vae_kernel(%arg0: i32, %arg1: memref<8x896xf32, #tpu.memory_space<vmem>>, %arg2: memref<896x512xbf16, #tpu.memory_space<vmem>>, %arg3: memref<1x512xf32, #tpu.memory_space<vmem>>, %arg4: memref<512x256xbf16, #tpu.memory_space<vmem>>, %arg5: memref<1x256xf32, #tpu.memory_space<vmem>>, %arg6: memref<256x256xbf16, #tpu.memory_space<vmem>>, %arg7: memref<1x256xf32, #tpu.memory_space<vmem>>, %arg8: memref<8x128xf32, #tpu.memory_space<vmem>>, %arg9: memref<128x256xbf16, #tpu.memory_space<vmem>>, %arg10: memref<1x256xf32, #tpu.memory_space<vmem>>, %arg11: memref<256x512xbf16, #tpu.memory_space<vmem>>, %arg12: memref<1x512xf32, #tpu.memory_space<vmem>>, %arg13: memref<512x896xbf16, #tpu.memory_space<vmem>>, %arg14: memref<1x896xf32, #tpu.memory_space<vmem>>, %arg15: memref<8x128xf32, #tpu.memory_space<vmem>>, %arg16: memref<8x128xf32, #tpu.memory_space<vmem>>, %arg17: memref<8x128xf32, #tpu.memory_space<vmem>>, %arg18: memref<8x896xf32, #tpu.memory_space<vmem>>) attributes {dimension_semantics = [#tpu.dimension_semantics<parallel>], iteration_bounds = array<i64: 1>, scalar_prefetch = 0 : i64, scratch_operands = 0 : i64, tpu.core_type = #tpu.core_type<tc>, window_params = [{transform_indices = @transform_0, window_bounds = array<i64: 8, 896>}, {pipeline_mode = #tpu.pipeline_mode<synchronous>, transform_indices = @transform_1, window_bounds = array<i64: 896, 512>}, {pipeline_mode = #tpu.pipeline_mode<synchronous>, transform_indices = @transform_2, window_bounds = array<i64: 1, 512>}, {pipeline_mode = #tpu.pipeline_mode<synchronous>, transform_indices = @transform_3, window_bounds = array<i64: 512, 256>}, {pipeline_mode = #tpu.pipeline_mode<synchronous>, transform_indices = @transform_4, window_bounds = array<i64: 1, 256>}, {pipeline_mode = #tpu.pipeline_mode<synchronous>, transform_indices = @transform_5, window_bounds = array<i64: 256, 256>}, {pipeline_mode = #tpu.pipeline_mode<synchronous>, transform_indices = @transform_6, window_bounds = array<i64: 1, 256>}, {transform_indices = @transform_7, window_bounds = array<i64: 8, 128>}, {pipeline_mode = #tpu.pipeline_mode<synchronous>, transform_indices = @transform_8, window_bounds = array<i64: 128, 256>}, {pipeline_mode = #tpu.pipeline_mode<synchronous>, transform_indices = @transform_9, window_bounds = array<i64: 1, 256>}, {pipeline_mode = #tpu.pipeline_mode<synchronous>, transform_indices = @transform_10, window_bounds = array<i64: 256, 512>}, {pipeline_mode = #tpu.pipeline_mode<synchronous>, transform_indices = @transform_11, window_bounds = array<i64: 1, 512>}, {pipeline_mode = #tpu.pipeline_mode<synchronous>, transform_indices = @transform_12, window_bounds = array<i64: 512, 896>}, {pipeline_mode = #tpu.pipeline_mode<synchronous>, transform_indices = @transform_13, window_bounds = array<i64: 1, 896>}, {transform_indices = @transform_14, window_bounds = array<i64: 8, 128>}, {transform_indices = @transform_15, window_bounds = array<i64: 8, 128>}, {transform_indices = @transform_16, window_bounds = array<i64: 8, 128>}, {transform_indices = @transform_17, window_bounds = array<i64: 8, 896>}]} {
    %c0 = arith.constant 0 : index
    %c0_0 = arith.constant 0 : index
    %0 = vector.load %arg1[%c0, %c0_0] : memref<8x896xf32, #tpu.memory_space<vmem>>, vector<8x896xf32>
    %1 = arith.truncf %0 : vector<8x896xf32> to vector<8x896xbf16>
    %c0_1 = arith.constant 0 : index
    %c0_2 = arith.constant 0 : index
    %2 = vector.load %arg2[%c0_1, %c0_2] : memref<896x512xbf16, #tpu.memory_space<vmem>>, vector<896x512xbf16>
    %cst = arith.constant dense<0.000000e+00> : vector<8x512xf32>
    %3 = tpu.matmul %1, %2, %cst {dimension_numbers = #tpu.dot_dimension_numbers<[1], [0], [0], [1], [0, 0, 1, 1], [], []>} : vector<8x896xbf16>, vector<896x512xbf16>, vector<8x512xf32> -> vector<8x512xf32>
    %c0_3 = arith.constant 0 : index
    %c0_4 = arith.constant 0 : index
    %4 = vector.load %arg3[%c0_3, %c0_4] : memref<1x512xf32, #tpu.memory_space<vmem>>, vector<1x512xf32>
    %5 = vector.broadcast %4 : vector<1x512xf32> to vector<8x512xf32>
    %6 = arith.addf %3, %5 : vector<8x512xf32>
    %cst_5 = arith.constant 0.000000e+00 : f32
    %7 = vector.broadcast %cst_5 : f32 to vector<8x512xf32>
    %8 = arith.maximumf %6, %7 : vector<8x512xf32>
    %9 = arith.truncf %8 : vector<8x512xf32> to vector<8x512xbf16>
    %c0_6 = arith.constant 0 : index
    %c0_7 = arith.constant 0 : index
    %10 = vector.load %arg4[%c0_6, %c0_7] : memref<512x256xbf16, #tpu.memory_space<vmem>>, vector<512x256xbf16>
    %cst_8 = arith.constant dense<0.000000e+00> : vector<8x256xf32>
    %11 = tpu.matmul %9, %10, %cst_8 {dimension_numbers = #tpu.dot_dimension_numbers<[1], [0], [0], [1], [0, 0, 1, 1], [], []>} : vector<8x512xbf16>, vector<512x256xbf16>, vector<8x256xf32> -> vector<8x256xf32>
    %c0_9 = arith.constant 0 : index
    %c0_10 = arith.constant 0 : index
    %12 = vector.load %arg5[%c0_9, %c0_10] : memref<1x256xf32, #tpu.memory_space<vmem>>, vector<1x256xf32>
    %13 = vector.broadcast %12 : vector<1x256xf32> to vector<8x256xf32>
    %14 = arith.addf %11, %13 : vector<8x256xf32>
    %cst_11 = arith.constant 0.000000e+00 : f32
    %15 = vector.broadcast %cst_11 : f32 to vector<8x256xf32>
    %16 = arith.maximumf %14, %15 : vector<8x256xf32>
    %17 = arith.truncf %16 : vector<8x256xf32> to vector<8x256xbf16>
    %c0_12 = arith.constant 0 : index
    %c0_13 = arith.constant 0 : index
    %18 = vector.load %arg6[%c0_12, %c0_13] : memref<256x256xbf16, #tpu.memory_space<vmem>>, vector<256x256xbf16>
    %cst_14 = arith.constant dense<0.000000e+00> : vector<8x256xf32>
    %19 = tpu.matmul %17, %18, %cst_14 {dimension_numbers = #tpu.dot_dimension_numbers<[1], [0], [0], [1], [0, 0, 1, 1], [], []>} : vector<8x256xbf16>, vector<256x256xbf16>, vector<8x256xf32> -> vector<8x256xf32>
    %c0_15 = arith.constant 0 : index
    %c0_16 = arith.constant 0 : index
    %20 = vector.load %arg7[%c0_15, %c0_16] : memref<1x256xf32, #tpu.memory_space<vmem>>, vector<1x256xf32>
    %21 = vector.broadcast %20 : vector<1x256xf32> to vector<8x256xf32>
    %22 = arith.addf %19, %21 : vector<8x256xf32>
    %23 = vector.extract_strided_slice %22 {offsets = [0, 0], sizes = [8, 128], strides = [1, 1]} : vector<8x256xf32> to vector<8x128xf32>
    %24 = vector.extract_strided_slice %22 {offsets = [0, 128], sizes = [8, 128], strides = [1, 1]} : vector<8x256xf32> to vector<8x128xf32>
    %cst_17 = arith.constant 5.000000e-01 : f32
    %25 = vector.broadcast %cst_17 : f32 to vector<8x128xf32>
    %26 = arith.mulf %25, %24 : vector<8x128xf32>
    %27 = math.exp %26 : vector<8x128xf32>
    %c0_18 = arith.constant 0 : index
    %c0_19 = arith.constant 0 : index
    %28 = vector.load %arg8[%c0_18, %c0_19] : memref<8x128xf32, #tpu.memory_space<vmem>>, vector<8x128xf32>
    %29 = arith.mulf %27, %28 : vector<8x128xf32>
    %30 = arith.addf %23, %29 : vector<8x128xf32>
    %c0_20 = arith.constant 0 : index
    %c0_21 = arith.constant 0 : index
    %31 = vector.load %arg15[%c0_20, %c0_21] : memref<8x128xf32, #tpu.memory_space<vmem>>, vector<8x128xf32>
    tpu.vector_store %arg15[%c0_20, %c0_21], %23 {strides = array<i32>} : memref<8x128xf32, #tpu.memory_space<vmem>>, vector<8x128xf32>,
    %c0_22 = arith.constant 0 : index
    %c0_23 = arith.constant 0 : index
    %32 = vector.load %arg16[%c0_22, %c0_23] : memref<8x128xf32, #tpu.memory_space<vmem>>, vector<8x128xf32>
    tpu.vector_store %arg16[%c0_22, %c0_23], %24 {strides = array<i32>} : memref<8x128xf32, #tpu.memory_space<vmem>>, vector<8x128xf32>,
    %c0_24 = arith.constant 0 : index
    %c0_25 = arith.constant 0 : index
    %33 = vector.load %arg17[%c0_24, %c0_25] : memref<8x128xf32, #tpu.memory_space<vmem>>, vector<8x128xf32>
    tpu.vector_store %arg17[%c0_24, %c0_25], %30 {strides = array<i32>} : memref<8x128xf32, #tpu.memory_space<vmem>>, vector<8x128xf32>,
    %34 = arith.truncf %30 : vector<8x128xf32> to vector<8x128xbf16>
    %c0_26 = arith.constant 0 : index
    %c0_27 = arith.constant 0 : index
    %35 = vector.load %arg9[%c0_26, %c0_27] : memref<128x256xbf16, #tpu.memory_space<vmem>>, vector<128x256xbf16>
    %cst_28 = arith.constant dense<0.000000e+00> : vector<8x256xf32>
    %36 = tpu.matmul %34, %35, %cst_28 {dimension_numbers = #tpu.dot_dimension_numbers<[1], [0], [0], [1], [0, 0, 1, 1], [], []>} : vector<8x128xbf16>, vector<128x256xbf16>, vector<8x256xf32> -> vector<8x256xf32>
    %c0_29 = arith.constant 0 : index
    %c0_30 = arith.constant 0 : index
    %37 = vector.load %arg10[%c0_29, %c0_30] : memref<1x256xf32, #tpu.memory_space<vmem>>, vector<1x256xf32>
    %38 = vector.broadcast %37 : vector<1x256xf32> to vector<8x256xf32>
    %39 = arith.addf %36, %38 : vector<8x256xf32>
    %40 = arith.truncf %39 : vector<8x256xf32> to vector<8x256xbf16>
    %c0_31 = arith.constant 0 : index
    %c0_32 = arith.constant 0 : index
    %41 = vector.load %arg11[%c0_31, %c0_32] : memref<256x512xbf16, #tpu.memory_space<vmem>>, vector<256x512xbf16>
    %cst_33 = arith.constant dense<0.000000e+00> : vector<8x512xf32>
    %42 = tpu.matmul %40, %41, %cst_33 {dimension_numbers = #tpu.dot_dimension_numbers<[1], [0], [0], [1], [0, 0, 1, 1], [], []>} : vector<8x256xbf16>, vector<256x512xbf16>, vector<8x512xf32> -> vector<8x512xf32>
    %c0_34 = arith.constant 0 : index
    %c0_35 = arith.constant 0 : index
    %43 = vector.load %arg12[%c0_34, %c0_35] : memref<1x512xf32, #tpu.memory_space<vmem>>, vector<1x512xf32>
    %44 = vector.broadcast %43 : vector<1x512xf32> to vector<8x512xf32>
    %45 = arith.addf %42, %44 : vector<8x512xf32>
    %cst_36 = arith.constant 0.000000e+00 : f32
    %46 = vector.broadcast %cst_36 : f32 to vector<8x512xf32>
    %47 = arith.maximumf %45, %46 : vector<8x512xf32>
    %48 = arith.truncf %47 : vector<8x512xf32> to vector<8x512xbf16>
    %c0_37 = arith.constant 0 : index
    %c0_38 = arith.constant 0 : index
    %49 = vector.load %arg13[%c0_37, %c0_38] : memref<512x896xbf16, #tpu.memory_space<vmem>>, vector<512x896xbf16>
    %cst_39 = arith.constant dense<0.000000e+00> : vector<8x896xf32>
    %50 = tpu.matmul %48, %49, %cst_39 {dimension_numbers = #tpu.dot_dimension_numbers<[1], [0], [0], [1], [0, 0, 1, 1], [], []>} : vector<8x512xbf16>, vector<512x896xbf16>, vector<8x896xf32> -> vector<8x896xf32>
    %c0_40 = arith.constant 0 : index
    %c0_41 = arith.constant 0 : index
    %51 = vector.load %arg14[%c0_40, %c0_41] : memref<1x896xf32, #tpu.memory_space<vmem>>, vector<1x896xf32>
    %52 = vector.broadcast %51 : vector<1x896xf32> to vector<8x896xf32>
    %53 = arith.addf %50, %52 : vector<8x896xf32>
    %cst_42 = arith.constant 0.000000e+00 : f32
    %54 = vector.broadcast %cst_42 : f32 to vector<8x896xf32>
    %55 = arith.maximumf %53, %54 : vector<8x896xf32>
    %c0_43 = arith.constant 0 : index
    %c0_44 = arith.constant 0 : index
    %56 = vector.load %arg18[%c0_43, %c0_44] : memref<8x896xf32, #tpu.memory_space<vmem>>, vector<8x896xf32>
    tpu.vector_store %arg18[%c0_43, %c0_44], %55 {strides = array<i32>} : memref<8x896xf32, #tpu.memory_space<vmem>>, vector<8x896xf32>,
    return
  }
  func.func @transform_0(%arg0: i32) -> (i32, i32) {
    %c0_i32 = arith.constant 0 : i32
    %c0_i32_0 = arith.constant 0 : i32
    return %arg0, %c0_i32 : i32, i32
  }
  func.func @transform_1(%arg0: i32) -> (i32, i32) {
    %c0_i32 = arith.constant 0 : i32
    %c0_i32_0 = arith.constant 0 : i32
    %c0_i32_1 = arith.constant 0 : i32
    return %c0_i32, %c0_i32_0 : i32, i32
  }
  func.func @transform_2(%arg0: i32) -> (i32, i32) {
    %c0_i32 = arith.constant 0 : i32
    %c0_i32_0 = arith.constant 0 : i32
    %c0_i32_1 = arith.constant 0 : i32
    return %c0_i32, %c0_i32_0 : i32, i32
  }
  func.func @transform_3(%arg0: i32) -> (i32, i32) {
    %c0_i32 = arith.constant 0 : i32
    %c0_i32_0 = arith.constant 0 : i32
    %c0_i32_1 = arith.constant 0 : i32
    return %c0_i32, %c0_i32_0 : i32, i32
  }
  func.func @transform_4(%arg0: i32) -> (i32, i32) {
    %c0_i32 = arith.constant 0 : i32
    %c0_i32_0 = arith.constant 0 : i32
    %c0_i32_1 = arith.constant 0 : i32
    return %c0_i32, %c0_i32_0 : i32, i32
  }
  func.func @transform_5(%arg0: i32) -> (i32, i32) {
    %c0_i32 = arith.constant 0 : i32
    %c0_i32_0 = arith.constant 0 : i32
    %c0_i32_1 = arith.constant 0 : i32
    return %c0_i32, %c0_i32_0 : i32, i32
  }
  func.func @transform_6(%arg0: i32) -> (i32, i32) {
    %c0_i32 = arith.constant 0 : i32
    %c0_i32_0 = arith.constant 0 : i32
    %c0_i32_1 = arith.constant 0 : i32
    return %c0_i32, %c0_i32_0 : i32, i32
  }
  func.func @transform_7(%arg0: i32) -> (i32, i32) {
    %c0_i32 = arith.constant 0 : i32
    %c0_i32_0 = arith.constant 0 : i32
    return %arg0, %c0_i32 : i32, i32
  }
  func.func @transform_8(%arg0: i32) -> (i32, i32) {
    %c0_i32 = arith.constant 0 : i32
    %c0_i32_0 = arith.constant 0 : i32
    %c0_i32_1 = arith.constant 0 : i32
    return %c0_i32, %c0_i32_0 : i32, i32
  }
  func.func @transform_9(%arg0: i32) -> (i32, i32) {
    %c0_i32 = arith.constant 0 : i32
    %c0_i32_0 = arith.constant 0 : i32
    %c0_i32_1 = arith.constant 0 : i32
    return %c0_i32, %c0_i32_0 : i32, i32
  }
  func.func @transform_10(%arg0: i32) -> (i32, i32) {
    %c0_i32 = arith.constant 0 : i32
    %c0_i32_0 = arith.constant 0 : i32
    %c0_i32_1 = arith.constant 0 : i32
    return %c0_i32, %c0_i32_0 : i32, i32
  }
  func.func @transform_11(%arg0: i32) -> (i32, i32) {
    %c0_i32 = arith.constant 0 : i32
    %c0_i32_0 = arith.constant 0 : i32
    %c0_i32_1 = arith.constant 0 : i32
    return %c0_i32, %c0_i32_0 : i32, i32
  }
  func.func @transform_12(%arg0: i32) -> (i32, i32) {
    %c0_i32 = arith.constant 0 : i32
    %c0_i32_0 = arith.constant 0 : i32
    %c0_i32_1 = arith.constant 0 : i32
    return %c0_i32, %c0_i32_0 : i32, i32
  }
  func.func @transform_13(%arg0: i32) -> (i32, i32) {
    %c0_i32 = arith.constant 0 : i32
    %c0_i32_0 = arith.constant 0 : i32
    %c0_i32_1 = arith.constant 0 : i32
    return %c0_i32, %c0_i32_0 : i32, i32
  }
  func.func @transform_14(%arg0: i32) -> (i32, i32) {
    %c0_i32 = arith.constant 0 : i32
    %c0_i32_0 = arith.constant 0 : i32
    return %arg0, %c0_i32 : i32, i32
  }
  func.func @transform_15(%arg0: i32) -> (i32, i32) {
    %c0_i32 = arith.constant 0 : i32
    %c0_i32_0 = arith.constant 0 : i32
    return %arg0, %c0_i32 : i32, i32
  }
  func.func @transform_16(%arg0: i32) -> (i32, i32) {
    %c0_i32 = arith.constant 0 : i32
    %c0_i32_0 = arith.constant 0 : i32
    return %arg0, %c0_i32 : i32, i32
  }
  func.func @transform_17(%arg0: i32) -> (i32, i32) {
    %c0_i32 = arith.constant 0 : i32
    %c0_i32_0 = arith.constant 0 : i32
    return %arg0, %c0_i32 : i32, i32
  }
}

</mosaic_0001>

<llo_original>
// kernel: encoder_decoder_mnist_forward.1
$region0: #{encoder_decoder_mnist_forward.1}
  #allocation0 [shape = 'u32[]', space=smem, size = 0x4, offset = 0x4, fixed_abs, tag = 'smem constant byte address 0x4 - core index']
  #allocation1 [shape = 'u32[144,128]{1,0:T(1,128)}', space=vmem, size = 0x12000, scoped, tag = 'internal scratch']
  %s0 = inlined_call_operand.vmem [shape: f32[8,896], index: 0, kind: input, shape index: {}]
  %s1 = inlined_call_operand.hbm [shape: bf16[896,512], index: 1, kind: input, shape index: {}]
  %s2 = inlined_call_operand.vmem [shape: f32[1,512], index: 2, kind: input, shape index: {}]
  %s3 = inlined_call_operand.vmem [shape: bf16[512,256], index: 3, kind: input, shape index: {}]
  %s4 = inlined_call_operand.vmem [shape: f32[1,256], index: 4, kind: input, shape index: {}]
  %s5 = inlined_call_operand.vmem [shape: bf16[256,256], index: 5, kind: input, shape index: {}]
  %s6 = inlined_call_operand.vmem [shape: f32[1,256], index: 6, kind: input, shape index: {}]
  %s7 = inlined_call_operand.vmem [shape: f32[8,128], index: 7, kind: input, shape index: {}]
  %s8 = inlined_call_operand.vmem [shape: bf16[128,256], index: 8, kind: input, shape index: {}]
  %s9 = inlined_call_operand.vmem [shape: f32[1,256], index: 9, kind: input, shape index: {}]
  %s10 = inlined_call_operand.hbm [shape: bf16[256,512], index: 10, kind: input, shape index: {}]
  %s11 = inlined_call_operand.vmem [shape: f32[1,512], index: 11, kind: input, shape index: {}]
  %s12 = inlined_call_operand.hbm [shape: bf16[512,896], index: 12, kind: input, shape index: {}]
  %s13 = inlined_call_operand.vmem [shape: f32[1,896], index: 13, kind: input, shape index: {}]
  %s14 = inlined_call_operand.hbm [shape: f32[8,128], index: 14, kind: output, shape index: {0}]
  %s15 = inlined_call_operand.hbm [shape: f32[8,128], index: 15, kind: output, shape index: {1}]
  %s16 = inlined_call_operand.hbm [shape: f32[8,128], index: 16, kind: output, shape index: {2}]
  %s17 = inlined_call_operand.vmem [shape: f32[8,896], index: 17, kind: output, shape index: {3}]
  %18 = xla_tuple %s14, %s15, %s16, %s17
  %s19 = sld [smem:[#allocation0]]
  $region102: #{encoder_decoder_mnist_forward.1} parent=0
    _
  %s21 = ssub.s32 1, %s19
  %s22 = scalar_select 0, %s21, %s19
  $region1: #{encoder_decoder_mnist_forward.1} parent=0
    #allocation2 [shape = 'u8[917504]{0}', space=vmem, size = 0xe0000, scoped, tag = 'input window, operand 1, single buffered']
    #allocation3 [shape = 's32[1]{0}', space=sflag, size = 0x4, scoped, tag = 'scoped memory for encoder_decoder_mnist_forward.1']
    #allocation4 [shape = 's32[1]{0}', space=sflag, size = 0x4, scoped, tag = 'scoped memory for encoder_decoder_mnist_forward.1']
    #allocation5 [shape = 'u8[262144]{0}', space=vmem, size = 0x40000, scoped, tag = 'input window, operand 10, single buffered']
    #allocation6 [shape = 's32[1]{0}', space=sflag, size = 0x4, scoped, tag = 'scoped memory for encoder_decoder_mnist_forward.1']
    #allocation7 [shape = 'u8[917504]{0}', space=vmem, size = 0xe0000, scoped, tag = 'input window, operand 12, single buffered']
    #allocation8 [shape = 'u8[4096]{0}', space=vmem, size = 0x1000, scoped, tag = 'output window, operand 0, single buffered']
    #allocation9 [shape = 'u8[4096]{0}', space=vmem, size = 0x1000, scoped, tag = 'output window, operand 1, single buffered']
    #allocation10 [shape = 's32[1]{0}', space=sflag, size = 0x4, scoped, tag = 'scoped memory for encoder_decoder_mnist_forward.1']
    #allocation11 [shape = 'u8[4096]{0}', space=vmem, size = 0x1000, scoped, tag = 'output window, operand 2, single buffered']
    %23 = vsyncpa [#allocation3], 0
    %24 = vsyncpa [#allocation6], 0
    %25 = vsyncpa [#allocation4], 0
    %26 = vsyncpa [#allocation10], 0
    // Predicated region
    $region2: #{encoder_decoder_mnist_forward.1} parent=1 // pred_check
      _
    $region3: #{encoder_decoder_mnist_forward.1} parent=1 // pred_check_branch
      %28 = sbr.rel (0) target = $region5
    $region4: #{encoder_decoder_mnist_forward.1} parent=1 // pred_region
      _
    $region5: #{encoder_decoder_mnist_forward.1} parent=1 // pred_fallthru
      _
    // Predicated region
    $region6: #{encoder_decoder_mnist_forward.1} parent=1 // pred_check
      _
    $region7: #{encoder_decoder_mnist_forward.1} parent=1 // pred_check_branch
      %30 = sbr.rel (0) target = $region9
    $region8: #{encoder_decoder_mnist_forward.1} parent=1 // pred_region
      %s32 = ssub.s32 28672, 28672
      %33 = vsyncadd [#allocation3], %s32
      %s34 = sshll.u32 [#allocation2], 4
      %s35 = int_to_ptr.vmem [resolvable:$true] %s34
      %40 = dma.hbm_to_vmem [thread:$0]  %s1, 28672, %s35, [#allocation3], 256, 256, 16
    $region9: #{encoder_decoder_mnist_forward.1} parent=1 // pred_fallthru
      _
    // Predicated region
    $region10: #{encoder_decoder_mnist_forward.1} parent=1 // pred_check
      _
    $region11: #{encoder_decoder_mnist_forward.1} parent=1 // pred_check_branch
      %42 = sbr.rel (0) target = $region13
    $region12: #{encoder_decoder_mnist_forward.1} parent=1 // pred_region
      _
    $region13: #{encoder_decoder_mnist_forward.1} parent=1 // pred_fallthru
      _
    // Predicated region
    $region14: #{encoder_decoder_mnist_forward.1} parent=1 // pred_check
      _
    $region15: #{encoder_decoder_mnist_forward.1} parent=1 // pred_check_branch
      %44 = sbr.rel (0) target = $region17
    $region16: #{encoder_decoder_mnist_forward.1} parent=1 // pred_region
      _
    $region17: #{encoder_decoder_mnist_forward.1} parent=1 // pred_fallthru
      _
    // Predicated region
    $region18: #{encoder_decoder_mnist_forward.1} parent=1 // pred_check
      _
    $region19: #{encoder_decoder_mnist_forward.1} parent=1 // pred_check_branch
      %46 = sbr.rel (0) target = $region21
    $region20: #{encoder_decoder_mnist_forward.1} parent=1 // pred_region
      _
    $region21: #{encoder_decoder_mnist_forward.1} parent=1 // pred_fallthru
      _
    // Predicated region
    $region22: #{encoder_decoder_mnist_forward.1} parent=1 // pred_check
      _
    $region23: #{encoder_decoder_mnist_forward.1} parent=1 // pred_check_branch
      %48 = sbr.rel (0) target = $region25
    $region24: #{encoder_decoder_mnist_forward.1} parent=1 // pred_region
      _
    $region25: #{encoder_decoder_mnist_forward.1} parent=1 // pred_fallthru
      _
    // Predicated region
    $region26: #{encoder_decoder_mnist_forward.1} parent=1 // pred_check
      _
    $region27: #{encoder_decoder_mnist_forward.1} parent=1 // pred_check_branch
      %50 = sbr.rel (0) target = $region29
    $region28: #{encoder_decoder_mnist_forward.1} parent=1 // pred_region
      _
    $region29: #{encoder_decoder_mnist_forward.1} parent=1 // pred_fallthru
      _
    // Predicated region
    $region30: #{encoder_decoder_mnist_forward.1} parent=1 // pred_check
      _
    $region31: #{encoder_decoder_mnist_forward.1} parent=1 // pred_check_branch
      %52 = sbr.rel (0) target = $region33
    $region32: #{encoder_decoder_mnist_forward.1} parent=1 // pred_region
      _
    $region33: #{encoder_decoder_mnist_forward.1} parent=1 // pred_fallthru
      _
    // Predicated region
    $region34: #{encoder_decoder_mnist_forward.1} parent=1 // pred_check
      _
    $region35: #{encoder_decoder_mnist_forward.1} parent=1 // pred_check_branch
      %54 = sbr.rel (0) target = $region37
    $region36: #{encoder_decoder_mnist_forward.1} parent=1 // pred_region
      _
    $region37: #{encoder_decoder_mnist_forward.1} parent=1 // pred_fallthru
      _
    // Predicated region
    $region38: #{encoder_decoder_mnist_forward.1} parent=1 // pred_check
      _
    $region39: #{encoder_decoder_mnist_forward.1} parent=1 // pred_check_branch
      %56 = sbr.rel (0) target = $region41
    $region40: #{encoder_decoder_mnist_forward.1} parent=1 // pred_region
      _
    $region41: #{encoder_decoder_mnist_forward.1} parent=1 // pred_fallthru
      _
    // Predicated region
    $region42: #{encoder_decoder_mnist_forward.1} parent=1 // pred_check
      _
    $region43: #{encoder_decoder_mnist_forward.1} parent=1 // pred_check_branch
      %58 = sbr.rel (0) target = $region45
    $region44: #{encoder_decoder_mnist_forward.1} parent=1 // pred_region
      %s60 = ssub.s32 8192, 8192
      %61 = vsyncadd [#allocation6], %s60
      %s62 = sshll.u32 [#allocation5], 4
      %s63 = int_to_ptr.vmem [resolvable:$true] %s62
      %68 = dma.hbm_to_vmem [thread:$0]  %s10, 8192, %s63, [#allocation6], 256, 256, 16
    $region45: #{encoder_decoder_mnist_forward.1} parent=1 // pred_fallthru
      _
    // Predicated region
    $region46: #{encoder_decoder_mnist_forward.1} parent=1 // pred_check
      _
    $region47: #{encoder_decoder_mnist_forward.1} parent=1 // pred_check_branch
      %70 = sbr.rel (0) target = $region49
    $region48: #{encoder_decoder_mnist_forward.1} parent=1 // pred_region
      _
    $region49: #{encoder_decoder_mnist_forward.1} parent=1 // pred_fallthru
      _
    // Predicated region
    $region50: #{encoder_decoder_mnist_forward.1} parent=1 // pred_check
      _
    $region51: #{encoder_decoder_mnist_forward.1} parent=1 // pred_check_branch
      %72 = sbr.rel (0) target = $region53
    $region52: #{encoder_decoder_mnist_forward.1} parent=1 // pred_region
      %s74 = ssub.s32 28672, 28672
      %75 = vsyncadd [#allocation6], %s74
      %s76 = sshll.u32 [#allocation7], 4
      %s77 = int_to_ptr.vmem [resolvable:$true] %s76
      %82 = dma.hbm_to_vmem [thread:$0]  %s12, 28672, %s77, [#allocation6], 448, 448, 28
    $region53: #{encoder_decoder_mnist_forward.1} parent=1 // pred_fallthru
      _
    // Predicated region
    $region54: #{encoder_decoder_mnist_forward.1} parent=1 // pred_check
      _
    $region55: #{encoder_decoder_mnist_forward.1} parent=1 // pred_check_branch
      %84 = sbr.rel (0) target = $region57
    $region56: #{encoder_decoder_mnist_forward.1} parent=1 // pred_region
      _
    $region57: #{encoder_decoder_mnist_forward.1} parent=1 // pred_fallthru
      _
    // Predicated region
    $region58: #{encoder_decoder_mnist_forward.1} parent=1 // pred_check
      _
    $region59: #{encoder_decoder_mnist_forward.1} parent=1 // pred_check_branch
      %86 = sbr.rel (0) target = $region61
    $region60: #{encoder_decoder_mnist_forward.1} parent=1 // pred_region
      %87 = dma.done [#allocation3], 28672
    $region61: #{encoder_decoder_mnist_forward.1} parent=1 // pred_fallthru
      _
    // Predicated region
    $region62: #{encoder_decoder_mnist_forward.1} parent=1 // pred_check
      _
    $region63: #{encoder_decoder_mnist_forward.1} parent=1 // pred_check_branch
      %89 = sbr.rel (0) target = $region65
    $region64: #{encoder_decoder_mnist_forward.1} parent=1 // pred_region
      %90 = dma.done [#allocation6], 8192
    $region65: #{encoder_decoder_mnist_forward.1} parent=1 // pred_fallthru
      _
    // Predicated region
    $region66: #{encoder_decoder_mnist_forward.1} parent=1 // pred_check
      _
    $region67: #{encoder_decoder_mnist_forward.1} parent=1 // pred_check_branch
      %92 = sbr.rel (0) target = $region69
    $region68: #{encoder_decoder_mnist_forward.1} parent=1 // pred_region
      %93 = dma.done [#allocation6], 28672
    $region69: #{encoder_decoder_mnist_forward.1} parent=1 // pred_fallthru
      _
    %v95 = vld [vmem:[%s0] sm:$0xff]
    %v96 = vld [vmem:[%s0 + $0x8] sm:$0xff]
    %v97 = vld [vmem:[%s0 + $0x10] sm:$0xff]
    %v98 = vld [vmem:[%s0 + $0x18] sm:$0xff]
    %v99 = vld [vmem:[%s0 + $0x20] sm:$0xff]
    %v100 = vld [vmem:[%s0 + $0x28] sm:$0xff]
    %v101 = vld [vmem:[%s0 + $0x30] sm:$0xff]
    %v102 = vpack.c.bf16 %v95, %v95
    %v103 = vpack.c.bf16 %v96, %v96
    %v104 = vpack.c.bf16 %v97, %v97
    %v105 = vpack.c.bf16 %v98, %v98
    %v106 = vpack.c.bf16 %v99, %v99
    %v107 = vpack.c.bf16 %v100, %v100
    %v108 = vpack.c.bf16 %v101, %v101
    %v109 = vld [vmem:[#allocation2] sm:$0xff]
    %v110 = vld [vmem:[#allocation2 + $0x8] sm:$0xff]
    %v111 = vld [vmem:[#allocation2 + $0x10] sm:$0xff]
    %v112 = vld [vmem:[#allocation2 + $0x18] sm:$0xff]
    %v113 = vld [vmem:[#allocation2 + $0x20] sm:$0xff]
    %v114 = vld [vmem:[#allocation2 + $0x28] sm:$0xff]
    %v115 = vld [vmem:[#allocation2 + $0x30] sm:$0xff]
    %v116 = vld [vmem:[#allocation2 + $0x38] sm:$0xff]
    %v117 = vld [vmem:[#allocation2 + $0x40] sm:$0xff]
    %v118 = vld [vmem:[#allocation2 + $0x48] sm:$0xff]
    %v119 = vld [vmem:[#allocation2 + $0x50] sm:$0xff]
    %v120 = vld [vmem:[#allocation2 + $0x58] sm:$0xff]
    %v121 = vld [vmem:[#allocation2 + $0x60] sm:$0xff]
    %v122 = vld [vmem:[#allocation2 + $0x68] sm:$0xff]
    %v123 = vld [vmem:[#allocation2 + $0x70] sm:$0xff]
    %v124 = vld [vmem:[#allocation2 + $0x78] sm:$0xff]
    %v125 = vld [vmem:[#allocation2 + $0x80] sm:$0xff]
    %v126 = vld [vmem:[#allocation2 + $0x88] sm:$0xff]
    %v127 = vld [vmem:[#allocation2 + $0x90] sm:$0xff]
    %v128 = vld [vmem:[#allocation2 + $0x98] sm:$0xff]
    %v129 = vld [vmem:[#allocation2 + $0xa0] sm:$0xff]
    %v130 = vld [vmem:[#allocation2 + $0xa8] sm:$0xff]
    %v131 = vld [vmem:[#allocation2 + $0xb0] sm:$0xff]
    %v132 = vld [vmem:[#allocation2 + $0xb8] sm:$0xff]
    %v133 = vld [vmem:[#allocation2 + $0xc0] sm:$0xff]
    %v134 = vld [vmem:[#allocation2 + $0xc8] sm:$0xff]
    %v135 = vld [vmem:[#allocation2 + $0xd0] sm:$0xff]
    %v136 = vld [vmem:[#allocation2 + $0xd8] sm:$0xff]
    %v137 = vld [vmem:[#allocation2 + $0xe0] sm:$0xff]
    %v138 = vld [vmem:[#allocation2 + $0xe8] sm:$0xff]
    %v139 = vld [vmem:[#allocation2 + $0xf0] sm:$0xff]
    %v140 = vld [vmem:[#allocation2 + $0xf8] sm:$0xff]
    %v141 = vld [vmem:[#allocation2 + $0x100] sm:$0xff]
    %v142 = vld [vmem:[#allocation2 + $0x108] sm:$0xff]
    %v143 = vld [vmem:[#allocation2 + $0x110] sm:$0xff]
    %v144 = vld [vmem:[#allocation2 + $0x118] sm:$0xff]
    %v145 = vld [vmem:[#allocation2 + $0x120] sm:$0xff]
    %v146 = vld [vmem:[#allocation2 + $0x128] sm:$0xff]
    %v147 = vld [vmem:[#allocation2 + $0x130] sm:$0xff]
    %v148 = vld [vmem:[#allocation2 + $0x138] sm:$0xff]
    %v149 = vld [vmem:[#allocation2 + $0x140] sm:$0xff]
    %v150 = vld [vmem:[#allocation2 + $0x148] sm:$0xff]
    %v151 = vld [vmem:[#allocation2 + $0x150] sm:$0xff]
    %v152 = vld [vmem:[#allocation2 + $0x158] sm:$0xff]
    %v153 = vld [vmem:[#allocation2 + $0x160] sm:$0xff]
    %v154 = vld [vmem:[#allocation2 + $0x168] sm:$0xff]
    %v155 = vld [vmem:[#allocation2 + $0x170] sm:$0xff]
    %v156 = vld [vmem:[#allocation2 + $0x178] sm:$0xff]
    %v157 = vld [vmem:[#allocation2 + $0x180] sm:$0xff]
    %v158 = vld [vmem:[#allocation2 + $0x188] sm:$0xff]
    %v159 = vld [vmem:[#allocation2 + $0x190] sm:$0xff]
    %v160 = vld [vmem:[#allocation2 + $0x198] sm:$0xff]
    %v161 = vld [vmem:[#allocation2 + $0x1a0] sm:$0xff]
    %v162 = vld [vmem:[#allocation2 + $0x1a8] sm:$0xff]
    %v163 = vld [vmem:[#allocation2 + $0x1b0] sm:$0xff]
    %v164 = vld [vmem:[#allocation2 + $0x1b8] sm:$0xff]
    %v165 = vld [vmem:[#allocation2 + $0x1c0] sm:$0xff]
    %v166 = vld [vmem:[#allocation2 + $0x1c8] sm:$0xff]
    %v167 = vld [vmem:[#allocation2 + $0x1d0] sm:$0xff]
    %v168 = vld [vmem:[#allocation2 + $0x1d8] sm:$0xff]
    %v169 = vld [vmem:[#allocation2 + $0x1e0] sm:$0xff]
    %v170 = vld [vmem:[#allocation2 + $0x1e8] sm:$0xff]
    %v171 = vld [vmem:[#allocation2 + $0x1f0] sm:$0xff]
    %v172 = vld [vmem:[#allocation2 + $0x1f8] sm:$0xff]
    %v173 = vld [vmem:[#allocation2 + $0x200] sm:$0xff]
    %v174 = vld [vmem:[#allocation2 + $0x208] sm:$0xff]
    %v175 = vld [vmem:[#allocation2 + $0x210] sm:$0xff]
    %v176 = vld [vmem:[#allocation2 + $0x218] sm:$0xff]
    %v177 = vld [vmem:[#allocation2 + $0x220] sm:$0xff]
    %v178 = vld [vmem:[#allocation2 + $0x228] sm:$0xff]
    %v179 = vld [vmem:[#allocation2 + $0x230] sm:$0xff]
    %v180 = vld [vmem:[#allocation2 + $0x238] sm:$0xff]
    %v181 = vld [vmem:[#allocation2 + $0x240] sm:$0xff]
    %v182 = vld [vmem:[#allocation2 + $0x248] sm:$0xff]
    %v183 = vld [vmem:[#allocation2 + $0x250] sm:$0xff]
    %v184 = vld [vmem:[#allocation2 + $0x258] sm:$0xff]
    %v185 = vld [vmem:[#allocation2 + $0x260] sm:$0xff]
    %v186 = vld [vmem:[#allocation2 + $0x268] sm:$0xff]
    %v187 = vld [vmem:[#allocation2 + $0x270] sm:$0xff]
    %v188 = vld [vmem:[#allocation2 + $0x278] sm:$0xff]
    %v189 = vld [vmem:[#allocation2 + $0x280] sm:$0xff]
    %v190 = vld [vmem:[#allocation2 + $0x288] sm:$0xff]
    %v191 = vld [vmem:[#allocation2 + $0x290] sm:$0xff]
    %v192 = vld [vmem:[#allocation2 + $0x298] sm:$0xff]
    %v193 = vld [vmem:[#allocation2 + $0x2a0] sm:$0xff]
    %v194 = vld [vmem:[#allocation2 + $0x2a8] sm:$0xff]
    %v195 = vld [vmem:[#allocation2 + $0x2b0] sm:$0xff]
    %v196 = vld [vmem:[#allocation2 + $0x2b8] sm:$0xff]
    %v197 = vld [vmem:[#allocation2 + $0x2c0] sm:$0xff]
    %v198 = vld [vmem:[#allocation2 + $0x2c8] sm:$0xff]
    %v199 = vld [vmem:[#allocation2 + $0x2d0] sm:$0xff]
    %v200 = vld [vmem:[#allocation2 + $0x2d8] sm:$0xff]
    %v201 = vld [vmem:[#allocation2 + $0x2e0] sm:$0xff]
    %v202 = vld [vmem:[#allocation2 + $0x2e8] sm:$0xff]
    %v203 = vld [vmem:[#allocation2 + $0x2f0] sm:$0xff]
    %v204 = vld [vmem:[#allocation2 + $0x2f8] sm:$0xff]
    %v205 = vld [vmem:[#allocation2 + $0x300] sm:$0xff]
    %v206 = vld [vmem:[#allocation2 + $0x308] sm:$0xff]
    %v207 = vld [vmem:[#allocation2 + $0x310] sm:$0xff]
    %v208 = vld [vmem:[#allocation2 + $0x318] sm:$0xff]
    %v209 = vld [vmem:[#allocation2 + $0x320] sm:$0xff]
    %v210 = vld [vmem:[#allocation2 + $0x328] sm:$0xff]
    %v211 = vld [vmem:[#allocation2 + $0x330] sm:$0xff]
    %v212 = vld [vmem:[#allocation2 + $0x338] sm:$0xff]
    %v213 = vld [vmem:[#allocation2 + $0x340] sm:$0xff]
    %v214 = vld [vmem:[#allocation2 + $0x348] sm:$0xff]
    %v215 = vld [vmem:[#allocation2 + $0x350] sm:$0xff]
    %v216 = vld [vmem:[#allocation2 + $0x358] sm:$0xff]
    %v217 = vld [vmem:[#allocation2 + $0x360] sm:$0xff]
    %v218 = vld [vmem:[#allocation2 + $0x368] sm:$0xff]
    %v219 = vld [vmem:[#allocation2 + $0x370] sm:$0xff]
    %v220 = vld [vmem:[#allocation2 + $0x378] sm:$0xff]
    %v221 = vld [vmem:[#allocation2 + $0x380] sm:$0xff]
    %v222 = vld [vmem:[#allocation2 + $0x388] sm:$0xff]
    %v223 = vld [vmem:[#allocation2 + $0x390] sm:$0xff]
    %v224 = vld [vmem:[#allocation2 + $0x398] sm:$0xff]
    %v225 = vld [vmem:[#allocation2 + $0x3a0] sm:$0xff]
    %v226 = vld [vmem:[#allocation2 + $0x3a8] sm:$0xff]
    %v227 = vld [vmem:[#allocation2 + $0x3b0] sm:$0xff]
    %v228 = vld [vmem:[#allocation2 + $0x3b8] sm:$0xff]
    %v229 = vld [vmem:[#allocation2 + $0x3c0] sm:$0xff]
    %v230 = vld [vmem:[#allocation2 + $0x3c8] sm:$0xff]
    %v231 = vld [vmem:[#allocation2 + $0x3d0] sm:$0xff]
    %v232 = vld [vmem:[#allocation2 + $0x3d8] sm:$0xff]
    %v233 = vld [vmem:[#allocation2 + $0x3e0] sm:$0xff]
    %v234 = vld [vmem:[#allocation2 + $0x3e8] sm:$0xff]
    %v235 = vld [vmem:[#allocation2 + $0x3f0] sm:$0xff]
    %v236 = vld [vmem:[#allocation2 + $0x3f8] sm:$0xff]
    %v237 = vld [vmem:[#allocation2 + $0x400] sm:$0xff]
    %v238 = vld [vmem:[#allocation2 + $0x408] sm:$0xff]
    %v239 = vld [vmem:[#allocation2 + $0x410] sm:$0xff]
    %v240 = vld [vmem:[#allocation2 + $0x418] sm:$0xff]
    %v241 = vld [vmem:[#allocation2 + $0x420] sm:$0xff]
    %v242 = vld [vmem:[#allocation2 + $0x428] sm:$0xff]
    %v243 = vld [vmem:[#allocation2 + $0x430] sm:$0xff]
    %v244 = vld [vmem:[#allocation2 + $0x438] sm:$0xff]
    %v245 = vld [vmem:[#allocation2 + $0x440] sm:$0xff]
    %v246 = vld [vmem:[#allocation2 + $0x448] sm:$0xff]
    %v247 = vld [vmem:[#allocation2 + $0x450] sm:$0xff]
    %v248 = vld [vmem:[#allocation2 + $0x458] sm:$0xff]
    %v249 = vld [vmem:[#allocation2 + $0x460] sm:$0xff]
    %v250 = vld [vmem:[#allocation2 + $0x468] sm:$0xff]
    %v251 = vld [vmem:[#allocation2 + $0x470] sm:$0xff]
    %v252 = vld [vmem:[#allocation2 + $0x478] sm:$0xff]
    %v253 = vld [vmem:[#allocation2 + $0x480] sm:$0xff]
    %v254 = vld [vmem:[#allocation2 + $0x488] sm:$0xff]
    %v255 = vld [vmem:[#allocation2 + $0x490] sm:$0xff]
    %v256 = vld [vmem:[#allocation2 + $0x498] sm:$0xff]
    %v257 = vld [vmem:[#allocation2 + $0x4a0] sm:$0xff]
    %v258 = vld [vmem:[#allocation2 + $0x4a8] sm:$0xff]
    %v259 = vld [vmem:[#allocation2 + $0x4b0] sm:$0xff]
    %v260 = vld [vmem:[#allocation2 + $0x4b8] sm:$0xff]
    %v261 = vld [vmem:[#allocation2 + $0x4c0] sm:$0xff]
    %v262 = vld [vmem:[#allocation2 + $0x4c8] sm:$0xff]
    %v263 = vld [vmem:[#allocation2 + $0x4d0] sm:$0xff]
    %v264 = vld [vmem:[#allocation2 + $0x4d8] sm:$0xff]
    %v265 = vld [vmem:[#allocation2 + $0x4e0] sm:$0xff]
    %v266 = vld [vmem:[#allocation2 + $0x4e8] sm:$0xff]
    %v267 = vld [vmem:[#allocation2 + $0x4f0] sm:$0xff]
    %v268 = vld [vmem:[#allocation2 + $0x4f8] sm:$0xff]
    %v269 = vld [vmem:[#allocation2 + $0x500] sm:$0xff]
    %v270 = vld [vmem:[#allocation2 + $0x508] sm:$0xff]
    %v271 = vld [vmem:[#allocation2 + $0x510] sm:$0xff]
    %v272 = vld [vmem:[#allocation2 + $0x518] sm:$0xff]
    %v273 = vld [vmem:[#allocation2 + $0x520] sm:$0xff]
    %v274 = vld [vmem:[#allocation2 + $0x528] sm:$0xff]
    %v275 = vld [vmem:[#allocation2 + $0x530] sm:$0xff]
    %v276 = vld [vmem:[#allocation2 + $0x538] sm:$0xff]
    %v277 = vld [vmem:[#allocation2 + $0x540] sm:$0xff]
    %v278 = vld [vmem:[#allocation2 + $0x548] sm:$0xff]
    %v279 = vld [vmem:[#allocation2 + $0x550] sm:$0xff]
    %v280 = vld [vmem:[#allocation2 + $0x558] sm:$0xff]
    %v281 = vld [vmem:[#allocation2 + $0x560] sm:$0xff]
    %v282 = vld [vmem:[#allocation2 + $0x568] sm:$0xff]
    %v283 = vld [vmem:[#allocation2 + $0x570] sm:$0xff]
    %v284 = vld [vmem:[#allocation2 + $0x578] sm:$0xff]
    %v285 = vld [vmem:[#allocation2 + $0x580] sm:$0xff]
    %v286 = vld [vmem:[#allocation2 + $0x588] sm:$0xff]
    %v287 = vld [vmem:[#allocation2 + $0x590] sm:$0xff]
    %v288 = vld [vmem:[#allocation2 + $0x598] sm:$0xff]
    %v289 = vld [vmem:[#allocation2 + $0x5a0] sm:$0xff]
    %v290 = vld [vmem:[#allocation2 + $0x5a8] sm:$0xff]
    %v291 = vld [vmem:[#allocation2 + $0x5b0] sm:$0xff]
    %v292 = vld [vmem:[#allocation2 + $0x5b8] sm:$0xff]
    %v293 = vld [vmem:[#allocation2 + $0x5c0] sm:$0xff]
    %v294 = vld [vmem:[#allocation2 + $0x5c8] sm:$0xff]
    %v295 = vld [vmem:[#allocation2 + $0x5d0] sm:$0xff]
    %v296 = vld [vmem:[#allocation2 + $0x5d8] sm:$0xff]
    %v297 = vld [vmem:[#allocation2 + $0x5e0] sm:$0xff]
    %v298 = vld [vmem:[#allocation2 + $0x5e8] sm:$0xff]
    %v299 = vld [vmem:[#allocation2 + $0x5f0] sm:$0xff]
    %v300 = vld [vmem:[#allocation2 + $0x5f8] sm:$0xff]
    %v301 = vld [vmem:[#allocation2 + $0x600] sm:$0xff]
    %v302 = vld [vmem:[#allocation2 + $0x608] sm:$0xff]
    %v303 = vld [vmem:[#allocation2 + $0x610] sm:$0xff]
    %v304 = vld [vmem:[#allocation2 + $0x618] sm:$0xff]
    %v305 = vld [vmem:[#allocation2 + $0x620] sm:$0xff]
    %v306 = vld [vmem:[#allocation2 + $0x628] sm:$0xff]
    %v307 = vld [vmem:[#allocation2 + $0x630] sm:$0xff]
    %v308 = vld [vmem:[#allocation2 + $0x638] sm:$0xff]
    %v309 = vld [vmem:[#allocation2 + $0x640] sm:$0xff]
    %v310 = vld [vmem:[#allocation2 + $0x648] sm:$0xff]
    %v311 = vld [vmem:[#allocation2 + $0x650] sm:$0xff]
    %v312 = vld [vmem:[#allocation2 + $0x658] sm:$0xff]
    %v313 = vld [vmem:[#allocation2 + $0x660] sm:$0xff]
    %v314 = vld [vmem:[#allocation2 + $0x668] sm:$0xff]
    %v315 = vld [vmem:[#allocation2 + $0x670] sm:$0xff]
    %v316 = vld [vmem:[#allocation2 + $0x678] sm:$0xff]
    %v317 = vld [vmem:[#allocation2 + $0x680] sm:$0xff]
    %v318 = vld [vmem:[#allocation2 + $0x688] sm:$0xff]
    %v319 = vld [vmem:[#allocation2 + $0x690] sm:$0xff]
    %v320 = vld [vmem:[#allocation2 + $0x698] sm:$0xff]
    %v321 = vld [vmem:[#allocation2 + $0x6a0] sm:$0xff]
    %v322 = vld [vmem:[#allocation2 + $0x6a8] sm:$0xff]
    %v323 = vld [vmem:[#allocation2 + $0x6b0] sm:$0xff]
    %v324 = vld [vmem:[#allocation2 + $0x6b8] sm:$0xff]
    %v325 = vld [vmem:[#allocation2 + $0x6c0] sm:$0xff]
    %v326 = vld [vmem:[#allocation2 + $0x6c8] sm:$0xff]
    %v327 = vld [vmem:[#allocation2 + $0x6d0] sm:$0xff]
    %v328 = vld [vmem:[#allocation2 + $0x6d8] sm:$0xff]
    %v329 = vld [vmem:[#allocation2 + $0x6e0] sm:$0xff]
    %v330 = vld [vmem:[#allocation2 + $0x6e8] sm:$0xff]
    %v331 = vld [vmem:[#allocation2 + $0x6f0] sm:$0xff]
    %v332 = vld [vmem:[#allocation2 + $0x6f8] sm:$0xff]
    %v333 = vld [vmem:[%s2] sm:$0xf]
    %v335 = vlaneseq
    %v336 = vshrl.u32 %v335, 7
    %v337 = vsub.s32 0, %v336
    %v338 = vrot.slane %v333, %v337
    %v339 = vlaneseq
    %v340 = vshrl.u32 %v339, 7
    %v341 = vsub.s32 1, %v340
    %v342 = vrot.slane %v333, %v341
    %v343 = vlaneseq
    %v344 = vshrl.u32 %v343, 7
    %v345 = vsub.s32 2, %v344
    %v346 = vrot.slane %v333, %v345
    %v347 = vlaneseq
    %v348 = vshrl.u32 %v347, 7
    %v349 = vsub.s32 3, %v348
    %v350 = vrot.slane %v333, %v349
    %v579 = vunpack.c.l.b16 %v109
    %v580 = vunpack.c.h.b16 %v109
    %v581 = vunpack.c.l.b16 %v110
    %v582 = vunpack.c.h.b16 %v110
    %v583 = vunpack.c.l.b16 %v111
    %v584 = vunpack.c.h.b16 %v111
    %v585 = vunpack.c.l.b16 %v112
    %v586 = vunpack.c.h.b16 %v112
    %v587 = vunpack.c.l.b16 %v113
    %v588 = vunpack.c.h.b16 %v113
    %v589 = vunpack.c.l.b16 %v114
    %v590 = vunpack.c.h.b16 %v114
    %v591 = vunpack.c.l.b16 %v115
    %v592 = vunpack.c.h.b16 %v115
    %v593 = vunpack.c.l.b16 %v116
    %v594 = vunpack.c.h.b16 %v116
    %v595 = vunpack.c.l.b16 %v117
    %v596 = vunpack.c.h.b16 %v117
    %v597 = vunpack.c.l.b16 %v118
    %v598 = vunpack.c.h.b16 %v118
    %v599 = vunpack.c.l.b16 %v119
    %v600 = vunpack.c.h.b16 %v119
    %v601 = vunpack.c.l.b16 %v120
    %v602 = vunpack.c.h.b16 %v120
    %v603 = vunpack.c.l.b16 %v121
    %v604 = vunpack.c.h.b16 %v121
    %v605 = vunpack.c.l.b16 %v122
    %v606 = vunpack.c.h.b16 %v122
    %v607 = vunpack.c.l.b16 %v123
    %v608 = vunpack.c.h.b16 %v123
    %v609 = vunpack.c.l.b16 %v124
    %v610 = vunpack.c.h.b16 %v124
    %v611 = vunpack.c.l.b16 %v125
    %v612 = vunpack.c.h.b16 %v125
    %v613 = vunpack.c.l.b16 %v126
    %v614 = vunpack.c.h.b16 %v126
    %v615 = vunpack.c.l.b16 %v127
    %v616 = vunpack.c.h.b16 %v127
    %v617 = vunpack.c.l.b16 %v128
    %v618 = vunpack.c.h.b16 %v128
    %v619 = vunpack.c.l.b16 %v129
    %v620 = vunpack.c.h.b16 %v129
    %v621 = vunpack.c.l.b16 %v130
    %v622 = vunpack.c.h.b16 %v130
    %v623 = vunpack.c.l.b16 %v131
    %v624 = vunpack.c.h.b16 %v131
    %v625 = vunpack.c.l.b16 %v132
    %v626 = vunpack.c.h.b16 %v132
    %v627 = vunpack.c.l.b16 %v133
    %v628 = vunpack.c.h.b16 %v133
    %v629 = vunpack.c.l.b16 %v134
    %v630 = vunpack.c.h.b16 %v134
    %v631 = vunpack.c.l.b16 %v135
    %v632 = vunpack.c.h.b16 %v135
    %v633 = vunpack.c.l.b16 %v136
    %v634 = vunpack.c.h.b16 %v136
    %v635 = vunpack.c.l.b16 %v137
    %v636 = vunpack.c.h.b16 %v137
    %v637 = vunpack.c.l.b16 %v138
    %v638 = vunpack.c.h.b16 %v138
    %v639 = vunpack.c.l.b16 %v139
    %v640 = vunpack.c.h.b16 %v139
    %v641 = vunpack.c.l.b16 %v140
    %v642 = vunpack.c.h.b16 %v140
    %v643 = vunpack.c.l.b16 %v141
    %v644 = vunpack.c.h.b16 %v141
    %v645 = vunpack.c.l.b16 %v142
    %v646 = vunpack.c.h.b16 %v142
    %v647 = vunpack.c.l.b16 %v143
    %v648 = vunpack.c.h.b16 %v143
    %v649 = vunpack.c.l.b16 %v144
    %v650 = vunpack.c.h.b16 %v144
    %v651 = vunpack.c.l.b16 %v145
    %v652 = vunpack.c.h.b16 %v145
    %v653 = vunpack.c.l.b16 %v146
    %v654 = vunpack.c.h.b16 %v146
    %v655 = vunpack.c.l.b16 %v147
    %v656 = vunpack.c.h.b16 %v147
    %v657 = vunpack.c.l.b16 %v148
    %v658 = vunpack.c.h.b16 %v148
    %v659 = vunpack.c.l.b16 %v149
    %v660 = vunpack.c.h.b16 %v149
    %v661 = vunpack.c.l.b16 %v150
    %v662 = vunpack.c.h.b16 %v150
    %v663 = vunpack.c.l.b16 %v151
    %v664 = vunpack.c.h.b16 %v151
    %v665 = vunpack.c.l.b16 %v152
    %v666 = vunpack.c.h.b16 %v152
    %v667 = vunpack.c.l.b16 %v153
    %v668 = vunpack.c.h.b16 %v153
    %v669 = vunpack.c.l.b16 %v154
    %v670 = vunpack.c.h.b16 %v154
    %v671 = vunpack.c.l.b16 %v155
    %v672 = vunpack.c.h.b16 %v155
    %v673 = vunpack.c.l.b16 %v156
    %v674 = vunpack.c.h.b16 %v156
    %v675 = vunpack.c.l.b16 %v157
    %v676 = vunpack.c.h.b16 %v157
    %v677 = vunpack.c.l.b16 %v158
    %v678 = vunpack.c.h.b16 %v158
    %v679 = vunpack.c.l.b16 %v159
    %v680 = vunpack.c.h.b16 %v159
    %v681 = vunpack.c.l.b16 %v160
    %v682 = vunpack.c.h.b16 %v160
    %v683 = vunpack.c.l.b16 %v161
    %v684 = vunpack.c.h.b16 %v161
    %v685 = vunpack.c.l.b16 %v162
    %v686 = vunpack.c.h.b16 %v162
    %v687 = vunpack.c.l.b16 %v163
    %v688 = vunpack.c.h.b16 %v163
    %v689 = vunpack.c.l.b16 %v164
    %v690 = vunpack.c.h.b16 %v164
    %v691 = vunpack.c.l.b16 %v165
    %v692 = vunpack.c.h.b16 %v165
    %v693 = vunpack.c.l.b16 %v166
    %v694 = vunpack.c.h.b16 %v166
    %v695 = vunpack.c.l.b16 %v167
    %v696 = vunpack.c.h.b16 %v167
    %v697 = vunpack.c.l.b16 %v168
    %v698 = vunpack.c.h.b16 %v168
    %v699 = vunpack.c.l.b16 %v169
    %v700 = vunpack.c.h.b16 %v169
    %v701 = vunpack.c.l.b16 %v170
    %v702 = vunpack.c.h.b16 %v170
    %v703 = vunpack.c.l.b16 %v171
    %v704 = vunpack.c.h.b16 %v171
    %v705 = vunpack.c.l.b16 %v172
    %v706 = vunpack.c.h.b16 %v172
    %v707 = vunpack.c.l.b16 %v173
    %v708 = vunpack.c.h.b16 %v173
    %v709 = vunpack.c.l.b16 %v174
    %v710 = vunpack.c.h.b16 %v174
    %v711 = vunpack.c.l.b16 %v175
    %v712 = vunpack.c.h.b16 %v175
    %v713 = vunpack.c.l.b16 %v176
    %v714 = vunpack.c.h.b16 %v176
    %v715 = vunpack.c.l.b16 %v177
    %v716 = vunpack.c.h.b16 %v177
    %v717 = vunpack.c.l.b16 %v178
    %v718 = vunpack.c.h.b16 %v178
    %v719 = vunpack.c.l.b16 %v179
    %v720 = vunpack.c.h.b16 %v179
    %v721 = vunpack.c.l.b16 %v180
    %v722 = vunpack.c.h.b16 %v180
    %v723 = vunpack.c.l.b16 %v181
    %v724 = vunpack.c.h.b16 %v181
    %v725 = vunpack.c.l.b16 %v182
    %v726 = vunpack.c.h.b16 %v182
    %v727 = vunpack.c.l.b16 %v183
    %v728 = vunpack.c.h.b16 %v183
    %v729 = vunpack.c.l.b16 %v184
    %v730 = vunpack.c.h.b16 %v184
    %v731 = vunpack.c.l.b16 %v185
    %v732 = vunpack.c.h.b16 %v185
    %v733 = vunpack.c.l.b16 %v186
    %v734 = vunpack.c.h.b16 %v186
    %v735 = vunpack.c.l.b16 %v187
    %v736 = vunpack.c.h.b16 %v187
    %v737 = vunpack.c.l.b16 %v188
    %v738 = vunpack.c.h.b16 %v188
    %v739 = vunpack.c.l.b16 %v189
    %v740 = vunpack.c.h.b16 %v189
    %v741 = vunpack.c.l.b16 %v190
    %v742 = vunpack.c.h.b16 %v190
    %v743 = vunpack.c.l.b16 %v191
    %v744 = vunpack.c.h.b16 %v191
    %v745 = vunpack.c.l.b16 %v192
    %v746 = vunpack.c.h.b16 %v192
    %v747 = vunpack.c.l.b16 %v193
    %v748 = vunpack.c.h.b16 %v193
    %v749 = vunpack.c.l.b16 %v194
    %v750 = vunpack.c.h.b16 %v194
    %v751 = vunpack.c.l.b16 %v195
    %v752 = vunpack.c.h.b16 %v195
    %v753 = vunpack.c.l.b16 %v196
    %v754 = vunpack.c.h.b16 %v196
    %v755 = vunpack.c.l.b16 %v197
    %v756 = vunpack.c.h.b16 %v197
    %v757 = vunpack.c.l.b16 %v198
    %v758 = vunpack.c.h.b16 %v198
    %v759 = vunpack.c.l.b16 %v199
    %v760 = vunpack.c.h.b16 %v199
    %v761 = vunpack.c.l.b16 %v200
    %v762 = vunpack.c.h.b16 %v200
    %v763 = vunpack.c.l.b16 %v201
    %v764 = vunpack.c.h.b16 %v201
    %v765 = vunpack.c.l.b16 %v202
    %v766 = vunpack.c.h.b16 %v202
    %v767 = vunpack.c.l.b16 %v203
    %v768 = vunpack.c.h.b16 %v203
    %v769 = vunpack.c.l.b16 %v204
    %v770 = vunpack.c.h.b16 %v204
    %v771 = vunpack.c.l.b16 %v205
    %v772 = vunpack.c.h.b16 %v205
    %v773 = vunpack.c.l.b16 %v206
    %v774 = vunpack.c.h.b16 %v206
    %v775 = vunpack.c.l.b16 %v207
    %v776 = vunpack.c.h.b16 %v207
    %v777 = vunpack.c.l.b16 %v208
    %v778 = vunpack.c.h.b16 %v208
    %v779 = vunpack.c.l.b16 %v209
    %v780 = vunpack.c.h.b16 %v209
    %v781 = vunpack.c.l.b16 %v210
    %v782 = vunpack.c.h.b16 %v210
    %v783 = vunpack.c.l.b16 %v211
    %v784 = vunpack.c.h.b16 %v211
    %v785 = vunpack.c.l.b16 %v212
    %v786 = vunpack.c.h.b16 %v212
    %v787 = vunpack.c.l.b16 %v213
    %v788 = vunpack.c.h.b16 %v213
    %v789 = vunpack.c.l.b16 %v214
    %v790 = vunpack.c.h.b16 %v214
    %v791 = vunpack.c.l.b16 %v215
    %v792 = vunpack.c.h.b16 %v215
    %v793 = vunpack.c.l.b16 %v216
    %v794 = vunpack.c.h.b16 %v216
    %v795 = vunpack.c.l.b16 %v217
    %v796 = vunpack.c.h.b16 %v217
    %v797 = vunpack.c.l.b16 %v218
    %v798 = vunpack.c.h.b16 %v218
    %v799 = vunpack.c.l.b16 %v219
    %v800 = vunpack.c.h.b16 %v219
    %v801 = vunpack.c.l.b16 %v220
    %v802 = vunpack.c.h.b16 %v220
    %v803 = vunpack.c.l.b16 %v221
    %v804 = vunpack.c.h.b16 %v221
    %v805 = vunpack.c.l.b16 %v222
    %v806 = vunpack.c.h.b16 %v222
    %v807 = vunpack.c.l.b16 %v223
    %v808 = vunpack.c.h.b16 %v223
    %v809 = vunpack.c.l.b16 %v224
    %v810 = vunpack.c.h.b16 %v224
    %v811 = vunpack.c.l.b16 %v225
    %v812 = vunpack.c.h.b16 %v225
    %v813 = vunpack.c.l.b16 %v226
    %v814 = vunpack.c.h.b16 %v226
    %v815 = vunpack.c.l.b16 %v227
    %v816 = vunpack.c.h.b16 %v227
    %v817 = vunpack.c.l.b16 %v228
    %v818 = vunpack.c.h.b16 %v228
    %v819 = vunpack.c.l.b16 %v229
    %v820 = vunpack.c.h.b16 %v229
    %v821 = vunpack.c.l.b16 %v230
    %v822 = vunpack.c.h.b16 %v230
    %v823 = vunpack.c.l.b16 %v231
    %v824 = vunpack.c.h.b16 %v231
    %v825 = vunpack.c.l.b16 %v232
    %v826 = vunpack.c.h.b16 %v232
    %v827 = vunpack.c.l.b16 %v233
    %v828 = vunpack.c.h.b16 %v233
    %v829 = vunpack.c.l.b16 %v234
    %v830 = vunpack.c.h.b16 %v234
    %v831 = vunpack.c.l.b16 %v235
    %v832 = vunpack.c.h.b16 %v235
    %v833 = vunpack.c.l.b16 %v236
    %v834 = vunpack.c.h.b16 %v236
    %v835 = vunpack.c.l.b16 %v237
    %v836 = vunpack.c.h.b16 %v237
    %v837 = vunpack.c.l.b16 %v238
    %v838 = vunpack.c.h.b16 %v238
    %v839 = vunpack.c.l.b16 %v239
    %v840 = vunpack.c.h.b16 %v239
    %v841 = vunpack.c.l.b16 %v240
    %v842 = vunpack.c.h.b16 %v240
    %v843 = vunpack.c.l.b16 %v241
    %v844 = vunpack.c.h.b16 %v241
    %v845 = vunpack.c.l.b16 %v242
    %v846 = vunpack.c.h.b16 %v242
    %v847 = vunpack.c.l.b16 %v243
    %v848 = vunpack.c.h.b16 %v243
    %v849 = vunpack.c.l.b16 %v244
    %v850 = vunpack.c.h.b16 %v244
    %v851 = vunpack.c.l.b16 %v245
    %v852 = vunpack.c.h.b16 %v245
    %v853 = vunpack.c.l.b16 %v246
    %v854 = vunpack.c.h.b16 %v246
    %v855 = vunpack.c.l.b16 %v247
    %v856 = vunpack.c.h.b16 %v247
    %v857 = vunpack.c.l.b16 %v248
    %v858 = vunpack.c.h.b16 %v248
    %v859 = vunpack.c.l.b16 %v249
    %v860 = vunpack.c.h.b16 %v249
    %v861 = vunpack.c.l.b16 %v250
    %v862 = vunpack.c.h.b16 %v250
    %v863 = vunpack.c.l.b16 %v251
    %v864 = vunpack.c.h.b16 %v251
    %v865 = vunpack.c.l.b16 %v252
    %v866 = vunpack.c.h.b16 %v252
    %v867 = vunpack.c.l.b16 %v253
    %v868 = vunpack.c.h.b16 %v253
    %v869 = vunpack.c.l.b16 %v254
    %v870 = vunpack.c.h.b16 %v254
    %v871 = vunpack.c.l.b16 %v255
    %v872 = vunpack.c.h.b16 %v255
    %v873 = vunpack.c.l.b16 %v256
    %v874 = vunpack.c.h.b16 %v256
    %v875 = vunpack.c.l.b16 %v257
    %v876 = vunpack.c.h.b16 %v257
    %v877 = vunpack.c.l.b16 %v258
    %v878 = vunpack.c.h.b16 %v258
    %v879 = vunpack.c.l.b16 %v259
    %v880 = vunpack.c.h.b16 %v259
    %v881 = vunpack.c.l.b16 %v260
    %v882 = vunpack.c.h.b16 %v260
    %v883 = vunpack.c.l.b16 %v261
    %v884 = vunpack.c.h.b16 %v261
    %v885 = vunpack.c.l.b16 %v262
    %v886 = vunpack.c.h.b16 %v262
    %v887 = vunpack.c.l.b16 %v263
    %v888 = vunpack.c.h.b16 %v263
    %v889 = vunpack.c.l.b16 %v264
    %v890 = vunpack.c.h.b16 %v264
    %v891 = vunpack.c.l.b16 %v265
    %v892 = vunpack.c.h.b16 %v265
    %v893 = vunpack.c.l.b16 %v266
    %v894 = vunpack.c.h.b16 %v266
    %v895 = vunpack.c.l.b16 %v267
    %v896 = vunpack.c.h.b16 %v267
    %v897 = vunpack.c.l.b16 %v268
    %v898 = vunpack.c.h.b16 %v268
    %v899 = vunpack.c.l.b16 %v269
    %v900 = vunpack.c.h.b16 %v269
    %v901 = vunpack.c.l.b16 %v270
    %v902 = vunpack.c.h.b16 %v270
    %v903 = vunpack.c.l.b16 %v271
    %v904 = vunpack.c.h.b16 %v271
    %v905 = vunpack.c.l.b16 %v272
    %v906 = vunpack.c.h.b16 %v272
    %v907 = vunpack.c.l.b16 %v273
    %v908 = vunpack.c.h.b16 %v273
    %v909 = vunpack.c.l.b16 %v274
    %v910 = vunpack.c.h.b16 %v274
    %v911 = vunpack.c.l.b16 %v275
    %v912 = vunpack.c.h.b16 %v275
    %v913 = vunpack.c.l.b16 %v276
    %v914 = vunpack.c.h.b16 %v276
    %v915 = vunpack.c.l.b16 %v277
    %v916 = vunpack.c.h.b16 %v277
    %v917 = vunpack.c.l.b16 %v278
    %v918 = vunpack.c.h.b16 %v278
    %v919 = vunpack.c.l.b16 %v279
    %v920 = vunpack.c.h.b16 %v279
    %v921 = vunpack.c.l.b16 %v280
    %v922 = vunpack.c.h.b16 %v280
    %v923 = vunpack.c.l.b16 %v281
    %v924 = vunpack.c.h.b16 %v281
    %v925 = vunpack.c.l.b16 %v282
    %v926 = vunpack.c.h.b16 %v282
    %v927 = vunpack.c.l.b16 %v283
    %v928 = vunpack.c.h.b16 %v283
    %v929 = vunpack.c.l.b16 %v284
    %v930 = vunpack.c.h.b16 %v284
    %v931 = vunpack.c.l.b16 %v285
    %v932 = vunpack.c.h.b16 %v285
    %v933 = vunpack.c.l.b16 %v286
    %v934 = vunpack.c.h.b16 %v286
    %v935 = vunpack.c.l.b16 %v287
    %v936 = vunpack.c.h.b16 %v287
    %v937 = vunpack.c.l.b16 %v288
    %v938 = vunpack.c.h.b16 %v288
    %v939 = vunpack.c.l.b16 %v289
    %v940 = vunpack.c.h.b16 %v289
    %v941 = vunpack.c.l.b16 %v290
    %v942 = vunpack.c.h.b16 %v290
    %v943 = vunpack.c.l.b16 %v291
    %v944 = vunpack.c.h.b16 %v291
    %v945 = vunpack.c.l.b16 %v292
    %v946 = vunpack.c.h.b16 %v292
    %v947 = vunpack.c.l.b16 %v293
    %v948 = vunpack.c.h.b16 %v293
    %v949 = vunpack.c.l.b16 %v294
    %v950 = vunpack.c.h.b16 %v294
    %v951 = vunpack.c.l.b16 %v295
    %v952 = vunpack.c.h.b16 %v295
    %v953 = vunpack.c.l.b16 %v296
    %v954 = vunpack.c.h.b16 %v296
    %v955 = vunpack.c.l.b16 %v297
    %v956 = vunpack.c.h.b16 %v297
    %v957 = vunpack.c.l.b16 %v298
    %v958 = vunpack.c.h.b16 %v298
    %v959 = vunpack.c.l.b16 %v299
    %v960 = vunpack.c.h.b16 %v299
    %v961 = vunpack.c.l.b16 %v300
    %v962 = vunpack.c.h.b16 %v300
    %v963 = vunpack.c.l.b16 %v301
    %v964 = vunpack.c.h.b16 %v301
    %v965 = vunpack.c.l.b16 %v302
    %v966 = vunpack.c.h.b16 %v302
    %v967 = vunpack.c.l.b16 %v303
    %v968 = vunpack.c.h.b16 %v303
    %v969 = vunpack.c.l.b16 %v304
    %v970 = vunpack.c.h.b16 %v304
    %v971 = vunpack.c.l.b16 %v305
    %v972 = vunpack.c.h.b16 %v305
    %v973 = vunpack.c.l.b16 %v306
    %v974 = vunpack.c.h.b16 %v306
    %v975 = vunpack.c.l.b16 %v307
    %v976 = vunpack.c.h.b16 %v307
    %v977 = vunpack.c.l.b16 %v308
    %v978 = vunpack.c.h.b16 %v308
    %v979 = vunpack.c.l.b16 %v309
    %v980 = vunpack.c.h.b16 %v309
    %v981 = vunpack.c.l.b16 %v310
    %v982 = vunpack.c.h.b16 %v310
    %v983 = vunpack.c.l.b16 %v311
    %v984 = vunpack.c.h.b16 %v311
    %v985 = vunpack.c.l.b16 %v312
    %v986 = vunpack.c.h.b16 %v312
    %v987 = vunpack.c.l.b16 %v313
    %v988 = vunpack.c.h.b16 %v313
    %v989 = vunpack.c.l.b16 %v314
    %v990 = vunpack.c.h.b16 %v314
    %v991 = vunpack.c.l.b16 %v315
    %v992 = vunpack.c.h.b16 %v315
    %v993 = vunpack.c.l.b16 %v316
    %v994 = vunpack.c.h.b16 %v316
    %v995 = vunpack.c.l.b16 %v317
    %v996 = vunpack.c.h.b16 %v317
    %v997 = vunpack.c.l.b16 %v318
    %v998 = vunpack.c.h.b16 %v318
    %v999 = vunpack.c.l.b16 %v319
    %v1000 = vunpack.c.h.b16 %v319
    %v1001 = vunpack.c.l.b16 %v320
    %v1002 = vunpack.c.h.b16 %v320
    %v1003 = vunpack.c.l.b16 %v321
    %v1004 = vunpack.c.h.b16 %v321
    %v1005 = vunpack.c.l.b16 %v322
    %v1006 = vunpack.c.h.b16 %v322
    %v1007 = vunpack.c.l.b16 %v323
    %v1008 = vunpack.c.h.b16 %v323
    %v1009 = vunpack.c.l.b16 %v324
    %v1010 = vunpack.c.h.b16 %v324
    %v1011 = vunpack.c.l.b16 %v325
    %v1012 = vunpack.c.h.b16 %v325
    %v1013 = vunpack.c.l.b16 %v326
    %v1014 = vunpack.c.h.b16 %v326
    %v1015 = vunpack.c.l.b16 %v327
    %v1016 = vunpack.c.h.b16 %v327
    %v1017 = vunpack.c.l.b16 %v328
    %v1018 = vunpack.c.h.b16 %v328
    %v1019 = vunpack.c.l.b16 %v329
    %v1020 = vunpack.c.h.b16 %v329
    %v1021 = vunpack.c.l.b16 %v330
    %v1022 = vunpack.c.h.b16 %v330
    %v1023 = vunpack.c.l.b16 %v331
    %v1024 = vunpack.c.h.b16 %v331
    %v1025 = vunpack.c.l.b16 %v332
    %v1026 = vunpack.c.h.b16 %v332
    %v1027 = vpack.c.b16 %v583, %v579
    %v1028 = vpack.c.b16 %v584, %v580
    %v1029 = vpack.c.b16 %v585, %v581
    %v1030 = vpack.c.b16 %v586, %v582
    %v1031 = vpack.c.b16 %v591, %v587
    %v1032 = vpack.c.b16 %v592, %v588
    %v1033 = vpack.c.b16 %v593, %v589
    %v1034 = vpack.c.b16 %v594, %v590
    %v1035 = vpack.c.b16 %v599, %v595
    %v1036 = vpack.c.b16 %v600, %v596
    %v1037 = vpack.c.b16 %v601, %v597
    %v1038 = vpack.c.b16 %v602, %v598
    %v1039 = vpack.c.b16 %v607, %v603
    %v1040 = vpack.c.b16 %v608, %v604
    %v1041 = vpack.c.b16 %v609, %v605
    %v1042 = vpack.c.b16 %v610, %v606
    %v1043 = vpack.c.b16 %v615, %v611
    %v1044 = vpack.c.b16 %v616, %v612
    %v1045 = vpack.c.b16 %v617, %v613
    %v1046 = vpack.c.b16 %v618, %v614
    %v1047 = vpack.c.b16 %v623, %v619
    %v1048 = vpack.c.b16 %v624, %v620
    %v1049 = vpack.c.b16 %v625, %v621
    %v1050 = vpack.c.b16 %v626, %v622
    %v1051 = vpack.c.b16 %v631, %v627
    %v1052 = vpack.c.b16 %v632, %v628
    %v1053 = vpack.c.b16 %v633, %v629
    %v1054 = vpack.c.b16 %v634, %v630
    %v1055 = vpack.c.b16 %v639, %v635
    %v1056 = vpack.c.b16 %v640, %v636
    %v1057 = vpack.c.b16 %v641, %v637
    %v1058 = vpack.c.b16 %v642, %v638
    %v1059 = vpack.c.b16 %v647, %v643
    %v1060 = vpack.c.b16 %v648, %v644
    %v1061 = vpack.c.b16 %v649, %v645
    %v1062 = vpack.c.b16 %v650, %v646
    %v1063 = vpack.c.b16 %v655, %v651
    %v1064 = vpack.c.b16 %v656, %v652
    %v1065 = vpack.c.b16 %v657, %v653
    %v1066 = vpack.c.b16 %v658, %v654
    %v1067 = vpack.c.b16 %v663, %v659
    %v1068 = vpack.c.b16 %v664, %v660
    %v1069 = vpack.c.b16 %v665, %v661
    %v1070 = vpack.c.b16 %v666, %v662
    %v1071 = vpack.c.b16 %v671, %v667
    %v1072 = vpack.c.b16 %v672, %v668
    %v1073 = vpack.c.b16 %v673, %v669
    %v1074 = vpack.c.b16 %v674, %v670
    %v1075 = vpack.c.b16 %v679, %v675
    %v1076 = vpack.c.b16 %v680, %v676
    %v1077 = vpack.c.b16 %v681, %v677
    %v1078 = vpack.c.b16 %v682, %v678
    %v1079 = vpack.c.b16 %v687, %v683
    %v1080 = vpack.c.b16 %v688, %v684
    %v1081 = vpack.c.b16 %v689, %v685
    %v1082 = vpack.c.b16 %v690, %v686
    %v1083 = vpack.c.b16 %v695, %v691
    %v1084 = vpack.c.b16 %v696, %v692
    %v1085 = vpack.c.b16 %v697, %v693
    %v1086 = vpack.c.b16 %v698, %v694
    %v1087 = vpack.c.b16 %v703, %v699
    %v1088 = vpack.c.b16 %v704, %v700
    %v1089 = vpack.c.b16 %v705, %v701
    %v1090 = vpack.c.b16 %v706, %v702
    %v1091 = vpack.c.b16 %v711, %v707
    %v1092 = vpack.c.b16 %v712, %v708
    %v1093 = vpack.c.b16 %v713, %v709
    %v1094 = vpack.c.b16 %v714, %v710
    %v1095 = vpack.c.b16 %v719, %v715
    %v1096 = vpack.c.b16 %v720, %v716
    %v1097 = vpack.c.b16 %v721, %v717
    %v1098 = vpack.c.b16 %v722, %v718
    %v1099 = vpack.c.b16 %v727, %v723
    %v1100 = vpack.c.b16 %v728, %v724
    %v1101 = vpack.c.b16 %v729, %v725
    %v1102 = vpack.c.b16 %v730, %v726
    %v1103 = vpack.c.b16 %v735, %v731
    %v1104 = vpack.c.b16 %v736, %v732
    %v1105 = vpack.c.b16 %v737, %v733
    %v1106 = vpack.c.b16 %v738, %v734
    %v1107 = vpack.c.b16 %v743, %v739
    %v1108 = vpack.c.b16 %v744, %v740
    %v1109 = vpack.c.b16 %v745, %v741
    %v1110 = vpack.c.b16 %v746, %v742
    %v1111 = vpack.c.b16 %v751, %v747
    %v1112 = vpack.c.b16 %v752, %v748
    %v1113 = vpack.c.b16 %v753, %v749
    %v1114 = vpack.c.b16 %v754, %v750
    %v1115 = vpack.c.b16 %v759, %v755
    %v1116 = vpack.c.b16 %v760, %v756
    %v1117 = vpack.c.b16 %v761, %v757
    %v1118 = vpack.c.b16 %v762, %v758
    %v1119 = vpack.c.b16 %v767, %v763
    %v1120 = vpack.c.b16 %v768, %v764
    %v1121 = vpack.c.b16 %v769, %v765
    %v1122 = vpack.c.b16 %v770, %v766
    %v1123 = vpack.c.b16 %v775, %v771
    %v1124 = vpack.c.b16 %v776, %v772
    %v1125 = vpack.c.b16 %v777, %v773
    %v1126 = vpack.c.b16 %v778, %v774
    %v1127 = vpack.c.b16 %v783, %v779
    %v1128 = vpack.c.b16 %v784, %v780
    %v1129 = vpack.c.b16 %v785, %v781
    %v1130 = vpack.c.b16 %v786, %v782
    %v1131 = vpack.c.b16 %v791, %v787
    %v1132 = vpack.c.b16 %v792, %v788
    %v1133 = vpack.c.b16 %v793, %v789
    %v1134 = vpack.c.b16 %v794, %v790
    %v1135 = vpack.c.b16 %v799, %v795
    %v1136 = vpack.c.b16 %v800, %v796
    %v1137 = vpack.c.b16 %v801, %v797
    %v1138 = vpack.c.b16 %v802, %v798
    %v1139 = vpack.c.b16 %v807, %v803
    %v1140 = vpack.c.b16 %v808, %v804
    %v1141 = vpack.c.b16 %v809, %v805
    %v1142 = vpack.c.b16 %v810, %v806
    %v1143 = vpack.c.b16 %v815, %v811
    %v1144 = vpack.c.b16 %v816, %v812
    %v1145 = vpack.c.b16 %v817, %v813
    %v1146 = vpack.c.b16 %v818, %v814
    %v1147 = vpack.c.b16 %v823, %v819
    %v1148 = vpack.c.b16 %v824, %v820
    %v1149 = vpack.c.b16 %v825, %v821
    %v1150 = vpack.c.b16 %v826, %v822
    %v1151 = vpack.c.b16 %v831, %v827
    %v1152 = vpack.c.b16 %v832, %v828
    %v1153 = vpack.c.b16 %v833, %v829
    %v1154 = vpack.c.b16 %v834, %v830
    %v1155 = vpack.c.b16 %v839, %v835
    %v1156 = vpack.c.b16 %v840, %v836
    %v1157 = vpack.c.b16 %v841, %v837
    %v1158 = vpack.c.b16 %v842, %v838
    %v1159 = vpack.c.b16 %v847, %v843
    %v1160 = vpack.c.b16 %v848, %v844
    %v1161 = vpack.c.b16 %v849, %v845
    %v1162 = vpack.c.b16 %v850, %v846
    %v1163 = vpack.c.b16 %v855, %v851
    %v1164 = vpack.c.b16 %v856, %v852
    %v1165 = vpack.c.b16 %v857, %v853
    %v1166 = vpack.c.b16 %v858, %v854
    %v1167 = vpack.c.b16 %v863, %v859
    %v1168 = vpack.c.b16 %v864, %v860
    %v1169 = vpack.c.b16 %v865, %v861
    %v1170 = vpack.c.b16 %v866, %v862
    %v1171 = vpack.c.b16 %v871, %v867
    %v1172 = vpack.c.b16 %v872, %v868
    %v1173 = vpack.c.b16 %v873, %v869
    %v1174 = vpack.c.b16 %v874, %v870
    %v1175 = vpack.c.b16 %v879, %v875
    %v1176 = vpack.c.b16 %v880, %v876
    %v1177 = vpack.c.b16 %v881, %v877
    %v1178 = vpack.c.b16 %v882, %v878
    %v1179 = vpack.c.b16 %v887, %v883
    %v1180 = vpack.c.b16 %v888, %v884
    %v1181 = vpack.c.b16 %v889, %v885
    %v1182 = vpack.c.b16 %v890, %v886
    %v1183 = vpack.c.b16 %v895, %v891
    %v1184 = vpack.c.b16 %v896, %v892
    %v1185 = vpack.c.b16 %v897, %v893
    %v1186 = vpack.c.b16 %v898, %v894
    %v1187 = vpack.c.b16 %v903, %v899
    %v1188 = vpack.c.b16 %v904, %v900
    %v1189 = vpack.c.b16 %v905, %v901
    %v1190 = vpack.c.b16 %v906, %v902
    %v1191 = vpack.c.b16 %v911, %v907
    %v1192 = vpack.c.b16 %v912, %v908
    %v1193 = vpack.c.b16 %v913, %v909
    %v1194 = vpack.c.b16 %v914, %v910
    %v1195 = vpack.c.b16 %v919, %v915
    %v1196 = vpack.c.b16 %v920, %v916
    %v1197 = vpack.c.b16 %v921, %v917
    %v1198 = vpack.c.b16 %v922, %v918
    %v1199 = vpack.c.b16 %v927, %v923
    %v1200 = vpack.c.b16 %v928, %v924
    %v1201 = vpack.c.b16 %v929, %v925
    %v1202 = vpack.c.b16 %v930, %v926
    %v1203 = vpack.c.b16 %v935, %v931
    %v1204 = vpack.c.b16 %v936, %v932
    %v1205 = vpack.c.b16 %v937, %v933
    %v1206 = vpack.c.b16 %v938, %v934
    %v1207 = vpack.c.b16 %v943, %v939
    %v1208 = vpack.c.b16 %v944, %v940
    %v1209 = vpack.c.b16 %v945, %v941
    %v1210 = vpack.c.b16 %v946, %v942
    %v1211 = vpack.c.b16 %v951, %v947
    %v1212 = vpack.c.b16 %v952, %v948
    %v1213 = vpack.c.b16 %v953, %v949
    %v1214 = vpack.c.b16 %v954, %v950
    %v1215 = vpack.c.b16 %v959, %v955
    %v1216 = vpack.c.b16 %v960, %v956
    %v1217 = vpack.c.b16 %v961, %v957
    %v1218 = vpack.c.b16 %v962, %v958
    %v1219 = vpack.c.b16 %v967, %v963
    %v1220 = vpack.c.b16 %v968, %v964
    %v1221 = vpack.c.b16 %v969, %v965
    %v1222 = vpack.c.b16 %v970, %v966
    %v1223 = vpack.c.b16 %v975, %v971
    %v1224 = vpack.c.b16 %v976, %v972
    %v1225 = vpack.c.b16 %v977, %v973
    %v1226 = vpack.c.b16 %v978, %v974
    %v1227 = vpack.c.b16 %v983, %v979
    %v1228 = vpack.c.b16 %v984, %v980
    %v1229 = vpack.c.b16 %v985, %v981
    %v1230 = vpack.c.b16 %v986, %v982
    %v1231 = vpack.c.b16 %v991, %v987
    %v1232 = vpack.c.b16 %v992, %v988
    %v1233 = vpack.c.b16 %v993, %v989
    %v1234 = vpack.c.b16 %v994, %v990
    %v1235 = vpack.c.b16 %v999, %v995
    %v1236 = vpack.c.b16 %v1000, %v996
    %v1237 = vpack.c.b16 %v1001, %v997
    %v1238 = vpack.c.b16 %v1002, %v998
    %v1239 = vpack.c.b16 %v1007, %v1003
    %v1240 = vpack.c.b16 %v1008, %v1004
    %v1241 = vpack.c.b16 %v1009, %v1005
    %v1242 = vpack.c.b16 %v1010, %v1006
    %v1243 = vpack.c.b16 %v1015, %v1011
    %v1244 = vpack.c.b16 %v1016, %v1012
    %v1245 = vpack.c.b16 %v1017, %v1013
    %v1246 = vpack.c.b16 %v1018, %v1014
    %v1247 = vpack.c.b16 %v1023, %v1019
    %v1248 = vpack.c.b16 %v1024, %v1020
    %v1249 = vpack.c.b16 %v1025, %v1021
    %v1250 = vpack.c.b16 %v1026, %v1022
    %1475 = vmatprep.subr.bf16.mxu0 %v1028
    %1476 = vmatpush1.bf16.msra.mxu0 %v1027
    %1477 = vmatprep.subr.bf16.mxu0 %v1032
    %1478 = vmatpush1.bf16.msra.mxu0 %v1031
    %1479 = vmatprep.subr.bf16.mxu0 %v1036
    %1480 = vmatpush1.bf16.msra.mxu0 %v1035
    %1481 = vmatprep.subr.bf16.mxu0 %v1040
    %1482 = vmatpush1.bf16.msra.mxu0 %v1039
    %1483 = vmatprep.subr.bf16.mxu0 %v1044
    %1484 = vmatpush1.bf16.msra.mxu0 %v1043
    %1485 = vmatprep.subr.bf16.mxu0 %v1048
    %1486 = vmatpush1.bf16.msra.mxu0 %v1047
    %1487 = vmatprep.subr.bf16.mxu0 %v1052
    %1488 = vmatpush1.bf16.msra.mxu0 %v1051
    %1489 = vmatprep.subr.bf16.mxu0 %v1056
    %1490 = vmatpush1.bf16.msra.mxu0 %v1055
    %1491 = vmatprep.subr.bf16.mxu0 %v1060
    %1492 = vmatpush1.bf16.msra.mxu0 %v1059
    %1493 = vmatprep.subr.bf16.mxu0 %v1064
    %1494 = vmatpush1.bf16.msra.mxu0 %v1063
    %1495 = vmatprep.subr.bf16.mxu0 %v1068
    %1496 = vmatpush1.bf16.msra.mxu0 %v1067
    %1497 = vmatprep.subr.bf16.mxu0 %v1072
    %1498 = vmatpush1.bf16.msra.mxu0 %v1071
    %1499 = vmatprep.subr.bf16.mxu0 %v1076
    %1500 = vmatpush1.bf16.msra.mxu0 %v1075
    %1501 = vmatprep.subr.bf16.mxu0 %v1080
    %1502 = vmatpush1.bf16.msra.mxu0 %v1079
    %1503 = vmatprep.subr.bf16.mxu0 %v1084
    %1504 = vmatpush1.bf16.msra.mxu0 %v1083
    %1505 = vmatprep.subr.bf16.mxu0 %v1088
    %1506 = vmatpush1.bf16.msra.mxu0 %v1087
    %1507 = vmatprep.mubr.bf16.mxu0 %v103
    %1508 = vmatmul.mubr.bf16.gmra.mrb[0].mxu0 %v102
    %v1509 = vpop.f32.mrb[0].mxu0
    %v1510 = vadd.f32 %v338, %v1509
    %v1511 = vpop.f32.mrb[0].mxu0
    %v1512 = vadd.f32 %v342, %v1511
    %v1513 = vpop.f32.mrb[0].mxu0
    %v1514 = vpop.f32.mrb[0].mxu0
    %1515 = vdwg.mxu0
    %1516 = vmatprep.subr.bf16.mxu0 %v1092
    %1517 = vmatpush1.bf16.msra.mxu0 %v1091
    %1518 = vmatprep.subr.bf16.mxu0 %v1096
    %1519 = vmatpush1.bf16.msra.mxu0 %v1095
    %1520 = vmatprep.subr.bf16.mxu0 %v1100
    %1521 = vmatpush1.bf16.msra.mxu0 %v1099
    %1522 = vmatprep.subr.bf16.mxu0 %v1104
    %1523 = vmatpush1.bf16.msra.mxu0 %v1103
    %1524 = vmatprep.subr.bf16.mxu0 %v1108
    %1525 = vmatpush1.bf16.msra.mxu0 %v1107
    %1526 = vmatprep.subr.bf16.mxu0 %v1112
    %1527 = vmatpush1.bf16.msra.mxu0 %v1111
    %1528 = vmatprep.subr.bf16.mxu0 %v1116
    %1529 = vmatpush1.bf16.msra.mxu0 %v1115
    %1530 = vmatprep.subr.bf16.mxu0 %v1120
    %1531 = vmatpush1.bf16.msra.mxu0 %v1119
    %1532 = vmatprep.subr.bf16.mxu0 %v1124
    %1533 = vmatpush1.bf16.msra.mxu0 %v1123
    %1534 = vmatprep.subr.bf16.mxu0 %v1128
    %1535 = vmatpush1.bf16.msra.mxu0 %v1127
    %1536 = vmatprep.subr.bf16.mxu0 %v1132
    %1537 = vmatpush1.bf16.msra.mxu0 %v1131
    %1538 = vmatprep.subr.bf16.mxu0 %v1136
    %1539 = vmatpush1.bf16.msra.mxu0 %v1135
    %1540 = vmatprep.subr.bf16.mxu0 %v1140
    %1541 = vmatpush1.bf16.msra.mxu0 %v1139
    %1542 = vmatprep.subr.bf16.mxu0 %v1144
    %1543 = vmatpush1.bf16.msra.mxu0 %v1143
    %1544 = vmatprep.subr.bf16.mxu0 %v1148
    %1545 = vmatpush1.bf16.msra.mxu0 %v1147
    %1546 = vmatprep.subr.bf16.mxu0 %v1152
    %1547 = vmatpush1.bf16.msra.mxu0 %v1151
    %1548 = vmatprep.mubr.bf16.mxu0 %v105
    %1549 = vmatmul.mubr.bf16.gmra.mrb[0].mxu0 %v104
    %v1550 = vpop.f32.mrb[0].mxu0
    %v1551 = vadd.f32 %v1510, %v1550
    %v1552 = vpop.f32.mrb[0].mxu0
    %v1553 = vadd.f32 %v1512, %v1552
    %v1554 = vpop.f32.mrb[0].mxu0
    %v1555 = vpop.f32.mrb[0].mxu0
    %1556 = vdwg.mxu0
    %1557 = vmatprep.subr.bf16.mxu0 %v1156
    %1558 = vmatpush1.bf16.msra.mxu0 %v1155
    %1559 = vmatprep.subr.bf16.mxu0 %v1160
    %1560 = vmatpush1.bf16.msra.mxu0 %v1159
    %1561 = vmatprep.subr.bf16.mxu0 %v1164
    %1562 = vmatpush1.bf16.msra.mxu0 %v1163
    %1563 = vmatprep.subr.bf16.mxu0 %v1168
    %1564 = vmatpush1.bf16.msra.mxu0 %v1167
    %1565 = vmatprep.subr.bf16.mxu0 %v1172
    %1566 = vmatpush1.bf16.msra.mxu0 %v1171
    %1567 = vmatprep.subr.bf16.mxu0 %v1176
    %1568 = vmatpush1.bf16.msra.mxu0 %v1175
    %1569 = vmatprep.subr.bf16.mxu0 %v1180
    %1570 = vmatpush1.bf16.msra.mxu0 %v1179
    %1571 = vmatprep.subr.bf16.mxu0 %v1184
    %1572 = vmatpush1.bf16.msra.mxu0 %v1183
    %1573 = vmatprep.subr.bf16.mxu0 %v1188
    %1574 = vmatpush1.bf16.msra.mxu0 %v1187
    %1575 = vmatprep.subr.bf16.mxu0 %v1192
    %1576 = vmatpush1.bf16.msra.mxu0 %v1191
    %1577 = vmatprep.subr.bf16.mxu0 %v1196
    %1578 = vmatpush1.bf16.msra.mxu0 %v1195
    %1579 = vmatprep.subr.bf16.mxu0 %v1200
    %1580 = vmatpush1.bf16.msra.mxu0 %v1199
    %1581 = vmatprep.subr.bf16.mxu0 %v1204
    %1582 = vmatpush1.bf16.msra.mxu0 %v1203
    %1583 = vmatprep.subr.bf16.mxu0 %v1208
    %1584 = vmatpush1.bf16.msra.mxu0 %v1207
    %1585 = vmatprep.subr.bf16.mxu0 %v1212
    %1586 = vmatpush1.bf16.msra.mxu0 %v1211
    %1587 = vmatprep.subr.bf16.mxu0 %v1216
    %1588 = vmatpush1.bf16.msra.mxu0 %v1215
    %1589 = vmatprep.mubr.bf16.mxu0 %v107
    %1590 = vmatmul.mubr.bf16.gmra.mrb[0].mxu0 %v106
    %v1591 = vpop.f32.mrb[0].mxu0
    %v1592 = vadd.f32 %v1551, %v1591
    %v1593 = vpop.f32.mrb[0].mxu0
    %v1594 = vadd.f32 %v1553, %v1593
    %v1595 = vpop.f32.mrb[0].mxu0
    %v1596 = vpop.f32.mrb[0].mxu0
    %1597 = vdwg.mxu0
    %1598 = vmatprep.subr.bf16.mxu0 %v1220
    %1599 = vmatpush1.bf16.msra.mxu0 %v1219
    %1600 = vmatprep.subr.bf16.mxu0 %v1224
    %1601 = vmatpush1.bf16.msra.mxu0 %v1223
    %1602 = vmatprep.subr.bf16.mxu0 %v1228
    %1603 = vmatpush1.bf16.msra.mxu0 %v1227
    %1604 = vmatprep.subr.bf16.mxu0 %v1232
    %1605 = vmatpush1.bf16.msra.mxu0 %v1231
    %1606 = vmatprep.subr.bf16.mxu0 %v1236
    %1607 = vmatpush1.bf16.msra.mxu0 %v1235
    %1608 = vmatprep.subr.bf16.mxu0 %v1240
    %1609 = vmatpush1.bf16.msra.mxu0 %v1239
    %1610 = vmatprep.subr.bf16.mxu0 %v1244
    %1611 = vmatpush1.bf16.msra.mxu0 %v1243
    %1612 = vmatprep.subr.bf16.mxu0 %v1248
    %1613 = vmatpush1.bf16.msra.mxu0 %v1247
    %1614 = vmatprep.subr.bf16.mxu0 0
    %1615 = vmatpush1.bf16.msra.mxu0 0
    %1616 = vmatprep.subr.bf16.mxu0 0
    %1617 = vmatpush1.bf16.msra.mxu0 0
    %1618 = vmatprep.subr.bf16.mxu0 0
    %1619 = vmatpush1.bf16.msra.mxu0 0
    %1620 = vmatprep.subr.bf16.mxu0 0
    %1621 = vmatpush1.bf16.msra.mxu0 0
    %1622 = vmatprep.subr.bf16.mxu0 0
    %1623 = vmatpush1.bf16.msra.mxu0 0
    %1624 = vmatprep.subr.bf16.mxu0 0
    %1625 = vmatpush1.bf16.msra.mxu0 0
    %1626 = vmatprep.subr.bf16.mxu0 0
    %1627 = vmatpush1.bf16.msra.mxu0 0
    %1628 = vmatprep.subr.bf16.mxu0 0
    %1629 = vmatpush1.bf16.msra.mxu0 0
    %1630 = vmatprep.mubr.bf16.mxu0 0
    %1631 = vmatmul.mubr.bf16.gmra.mrb[0].mxu0 %v108
    %v1632 = vpop.f32.mrb[0].mxu0
    %v1633 = vadd.f32 %v1592, %v1632
    %v1634 = vpop.f32.mrb[0].mxu0
    %v1635 = vadd.f32 %v1594, %v1634
    %v1636 = vpop.f32.mrb[0].mxu0
    %v1637 = vpop.f32.mrb[0].mxu0
    %1638 = vdwg.mxu0
    %1639 = vmatprep.subr.bf16.mxu0 %v1030
    %1640 = vmatpush1.bf16.msra.mxu0 %v1029
    %1641 = vmatprep.subr.bf16.mxu0 %v1034
    %1642 = vmatpush1.bf16.msra.mxu0 %v1033
    %1643 = vmatprep.subr.bf16.mxu0 %v1038
    %1644 = vmatpush1.bf16.msra.mxu0 %v1037
    %1645 = vmatprep.subr.bf16.mxu0 %v1042
    %1646 = vmatpush1.bf16.msra.mxu0 %v1041
    %1647 = vmatprep.subr.bf16.mxu0 %v1046
    %1648 = vmatpush1.bf16.msra.mxu0 %v1045
    %1649 = vmatprep.subr.bf16.mxu0 %v1050
    %1650 = vmatpush1.bf16.msra.mxu0 %v1049
    %1651 = vmatprep.subr.bf16.mxu0 %v1054
    %1652 = vmatpush1.bf16.msra.mxu0 %v1053
    %1653 = vmatprep.subr.bf16.mxu0 %v1058
    %1654 = vmatpush1.bf16.msra.mxu0 %v1057
    %1655 = vmatprep.subr.bf16.mxu0 %v1062
    %1656 = vmatpush1.bf16.msra.mxu0 %v1061
    %1657 = vmatprep.subr.bf16.mxu0 %v1066
    %1658 = vmatpush1.bf16.msra.mxu0 %v1065
    %1659 = vmatprep.subr.bf16.mxu0 %v1070
    %1660 = vmatpush1.bf16.msra.mxu0 %v1069
    %1661 = vmatprep.subr.bf16.mxu0 %v1074
    %1662 = vmatpush1.bf16.msra.mxu0 %v1073
    %1663 = vmatprep.subr.bf16.mxu0 %v1078
    %1664 = vmatpush1.bf16.msra.mxu0 %v1077
    %1665 = vmatprep.subr.bf16.mxu0 %v1082
    %1666 = vmatpush1.bf16.msra.mxu0 %v1081
    %1667 = vmatprep.subr.bf16.mxu0 %v1086
    %1668 = vmatpush1.bf16.msra.mxu0 %v1085
    %1669 = vmatprep.subr.bf16.mxu0 %v1090
    %1670 = vmatpush1.bf16.msra.mxu0 %v1089
    %1671 = vmatprep.mubr.bf16.mxu0 %v103
    %1672 = vmatmul.mubr.bf16.gmra.mrb[0].mxu0 %v102
    %v1673 = vpop.f32.mrb[0].mxu0
    %v1674 = vadd.f32 %v346, %v1673
    %v1675 = vpop.f32.mrb[0].mxu0
    %v1676 = vadd.f32 %v350, %v1675
    %v1677 = vpop.f32.mrb[0].mxu0
    %v1678 = vpop.f32.mrb[0].mxu0
    %1679 = vdwg.mxu0
    %1680 = vmatprep.subr.bf16.mxu0 %v1094
    %1681 = vmatpush1.bf16.msra.mxu0 %v1093
    %1682 = vmatprep.subr.bf16.mxu0 %v1098
    %1683 = vmatpush1.bf16.msra.mxu0 %v1097
    %1684 = vmatprep.subr.bf16.mxu0 %v1102
    %1685 = vmatpush1.bf16.msra.mxu0 %v1101
    %1686 = vmatprep.subr.bf16.mxu0 %v1106
    %1687 = vmatpush1.bf16.msra.mxu0 %v1105
    %1688 = vmatprep.subr.bf16.mxu0 %v1110
    %1689 = vmatpush1.bf16.msra.mxu0 %v1109
    %1690 = vmatprep.subr.bf16.mxu0 %v1114
    %1691 = vmatpush1.bf16.msra.mxu0 %v1113
    %1692 = vmatprep.subr.bf16.mxu0 %v1118
    %1693 = vmatpush1.bf16.msra.mxu0 %v1117
    %1694 = vmatprep.subr.bf16.mxu0 %v1122
    %1695 = vmatpush1.bf16.msra.mxu0 %v1121
    %1696 = vmatprep.subr.bf16.mxu0 %v1126
    %1697 = vmatpush1.bf16.msra.mxu0 %v1125
    %1698 = vmatprep.subr.bf16.mxu0 %v1130
    %1699 = vmatpush1.bf16.msra.mxu0 %v1129
    %1700 = vmatprep.subr.bf16.mxu0 %v1134
    %1701 = vmatpush1.bf16.msra.mxu0 %v1133
    %1702 = vmatprep.subr.bf16.mxu0 %v1138
    %1703 = vmatpush1.bf16.msra.mxu0 %v1137
    %1704 = vmatprep.subr.bf16.mxu0 %v1142
    %1705 = vmatpush1.bf16.msra.mxu0 %v1141
    %1706 = vmatprep.subr.bf16.mxu0 %v1146
    %1707 = vmatpush1.bf16.msra.mxu0 %v1145
    %1708 = vmatprep.subr.bf16.mxu0 %v1150
    %1709 = vmatpush1.bf16.msra.mxu0 %v1149
    %1710 = vmatprep.subr.bf16.mxu0 %v1154
    %1711 = vmatpush1.bf16.msra.mxu0 %v1153
    %1712 = vmatprep.mubr.bf16.mxu0 %v105
    %1713 = vmatmul.mubr.bf16.gmra.mrb[0].mxu0 %v104
    %v1714 = vpop.f32.mrb[0].mxu0
    %v1715 = vadd.f32 %v1674, %v1714
    %v1716 = vpop.f32.mrb[0].mxu0
    %v1717 = vadd.f32 %v1676, %v1716
    %v1718 = vpop.f32.mrb[0].mxu0
    %v1719 = vpop.f32.mrb[0].mxu0
    %1720 = vdwg.mxu0
    %1721 = vmatprep.subr.bf16.mxu0 %v1158
    %1722 = vmatpush1.bf16.msra.mxu0 %v1157
    %1723 = vmatprep.subr.bf16.mxu0 %v1162
    %1724 = vmatpush1.bf16.msra.mxu0 %v1161
    %1725 = vmatprep.subr.bf16.mxu0 %v1166
    %1726 = vmatpush1.bf16.msra.mxu0 %v1165
    %1727 = vmatprep.subr.bf16.mxu0 %v1170
    %1728 = vmatpush1.bf16.msra.mxu0 %v1169
    %1729 = vmatprep.subr.bf16.mxu0 %v1174
    %1730 = vmatpush1.bf16.msra.mxu0 %v1173
    %1731 = vmatprep.subr.bf16.mxu0 %v1178
    %1732 = vmatpush1.bf16.msra.mxu0 %v1177
    %1733 = vmatprep.subr.bf16.mxu0 %v1182
    %1734 = vmatpush1.bf16.msra.mxu0 %v1181
    %1735 = vmatprep.subr.bf16.mxu0 %v1186
    %1736 = vmatpush1.bf16.msra.mxu0 %v1185
    %1737 = vmatprep.subr.bf16.mxu0 %v1190
    %1738 = vmatpush1.bf16.msra.mxu0 %v1189
    %1739 = vmatprep.subr.bf16.mxu0 %v1194
    %1740 = vmatpush1.bf16.msra.mxu0 %v1193
    %1741 = vmatprep.subr.bf16.mxu0 %v1198
    %1742 = vmatpush1.bf16.msra.mxu0 %v1197
    %1743 = vmatprep.subr.bf16.mxu0 %v1202
    %1744 = vmatpush1.bf16.msra.mxu0 %v1201
    %1745 = vmatprep.subr.bf16.mxu0 %v1206
    %1746 = vmatpush1.bf16.msra.mxu0 %v1205
    %1747 = vmatprep.subr.bf16.mxu0 %v1210
    %1748 = vmatpush1.bf16.msra.mxu0 %v1209
    %1749 = vmatprep.subr.bf16.mxu0 %v1214
    %1750 = vmatpush1.bf16.msra.mxu0 %v1213
    %1751 = vmatprep.subr.bf16.mxu0 %v1218
    %1752 = vmatpush1.bf16.msra.mxu0 %v1217
    %1753 = vmatprep.mubr.bf16.mxu0 %v107
    %1754 = vmatmul.mubr.bf16.gmra.mrb[0].mxu0 %v106
    %v1755 = vpop.f32.mrb[0].mxu0
    %v1756 = vadd.f32 %v1715, %v1755
    %v1757 = vpop.f32.mrb[0].mxu0
    %v1758 = vadd.f32 %v1717, %v1757
    %v1759 = vpop.f32.mrb[0].mxu0
    %v1760 = vpop.f32.mrb[0].mxu0
    %1761 = vdwg.mxu0
    %1762 = vmatprep.subr.bf16.mxu0 %v1222
    %1763 = vmatpush1.bf16.msra.mxu0 %v1221
    %1764 = vmatprep.subr.bf16.mxu0 %v1226
    %1765 = vmatpush1.bf16.msra.mxu0 %v1225
    %1766 = vmatprep.subr.bf16.mxu0 %v1230
    %1767 = vmatpush1.bf16.msra.mxu0 %v1229
    %1768 = vmatprep.subr.bf16.mxu0 %v1234
    %1769 = vmatpush1.bf16.msra.mxu0 %v1233
    %1770 = vmatprep.subr.bf16.mxu0 %v1238
    %1771 = vmatpush1.bf16.msra.mxu0 %v1237
    %1772 = vmatprep.subr.bf16.mxu0 %v1242
    %1773 = vmatpush1.bf16.msra.mxu0 %v1241
    %1774 = vmatprep.subr.bf16.mxu0 %v1246
    %1775 = vmatpush1.bf16.msra.mxu0 %v1245
    %1776 = vmatprep.subr.bf16.mxu0 %v1250
    %1777 = vmatpush1.bf16.msra.mxu0 %v1249
    %1778 = vmatprep.subr.bf16.mxu0 0
    %1779 = vmatpush1.bf16.msra.mxu0 0
    %1780 = vmatprep.subr.bf16.mxu0 0
    %1781 = vmatpush1.bf16.msra.mxu0 0
    %1782 = vmatprep.subr.bf16.mxu0 0
    %1783 = vmatpush1.bf16.msra.mxu0 0
    %1784 = vmatprep.subr.bf16.mxu0 0
    %1785 = vmatpush1.bf16.msra.mxu0 0
    %1786 = vmatprep.subr.bf16.mxu0 0
    %1787 = vmatpush1.bf16.msra.mxu0 0
    %1788 = vmatprep.subr.bf16.mxu0 0
    %1789 = vmatpush1.bf16.msra.mxu0 0
    %1790 = vmatprep.subr.bf16.mxu0 0
    %1791 = vmatpush1.bf16.msra.mxu0 0
    %1792 = vmatprep.subr.bf16.mxu0 0
    %1793 = vmatpush1.bf16.msra.mxu0 0
    %1794 = vmatprep.mubr.bf16.mxu0 0
    %1795 = vmatmul.mubr.bf16.gmra.mrb[0].mxu0 %v108
    %v1796 = vpop.f32.mrb[0].mxu0
    %v1797 = vadd.f32 %v1756, %v1796
    %v1798 = vpop.f32.mrb[0].mxu0
    %v1799 = vadd.f32 %v1758, %v1798
    %v1800 = vpop.f32.mrb[0].mxu0
    %v1801 = vpop.f32.mrb[0].mxu0
    %1802 = vdwg.mxu0
    %v1803 = vmax.f32 %v1633, 0.0
    %v1804 = vmax.f32 %v1635, 0.0
    %v1805 = vmax.f32 %v1797, 0.0
    %v1806 = vmax.f32 %v1799, 0.0
    %v1807 = vpack.c.bf16 %v1803, %v1803
    %v1808 = vpack.c.bf16 %v1804, %v1804
    %v1809 = vpack.c.bf16 %v1805, %v1805
    %v1810 = vpack.c.bf16 %v1806, %v1806
    %v1811 = vld [vmem:[%s3] sm:$0xff]
    %v1812 = vld [vmem:[%s3 + $0x8] sm:$0xff]
    %v1813 = vld [vmem:[%s3 + $0x10] sm:$0xff]
    %v1814 = vld [vmem:[%s3 + $0x18] sm:$0xff]
    %v1815 = vld [vmem:[%s3 + $0x20] sm:$0xff]
    %v1816 = vld [vmem:[%s3 + $0x28] sm:$0xff]
    %v1817 = vld [vmem:[%s3 + $0x30] sm:$0xff]
    %v1818 = vld [vmem:[%s3 + $0x38] sm:$0xff]
    %v1819 = vld [vmem:[%s3 + $0x40] sm:$0xff]
    %v1820 = vld [vmem:[%s3 + $0x48] sm:$0xff]
    %v1821 = vld [vmem:[%s3 + $0x50] sm:$0xff]
    %v1822 = vld [vmem:[%s3 + $0x58] sm:$0xff]
    %v1823 = vld [vmem:[%s3 + $0x60] sm:$0xff]
    %v1824 = vld [vmem:[%s3 + $0x68] sm:$0xff]
    %v1825 = vld [vmem:[%s3 + $0x70] sm:$0xff]
    %v1826 = vld [vmem:[%s3 + $0x78] sm:$0xff]
    %v1827 = vld [vmem:[%s3 + $0x80] sm:$0xff]
    %v1828 = vld [vmem:[%s3 + $0x88] sm:$0xff]
    %v1829 = vld [vmem:[%s3 + $0x90] sm:$0xff]
    %v1830 = vld [vmem:[%s3 + $0x98] sm:$0xff]
    %v1831 = vld [vmem:[%s3 + $0xa0] sm:$0xff]
    %v1832 = vld [vmem:[%s3 + $0xa8] sm:$0xff]
    %v1833 = vld [vmem:[%s3 + $0xb0] sm:$0xff]
    %v1834 = vld [vmem:[%s3 + $0xb8] sm:$0xff]
    %v1835 = vld [vmem:[%s3 + $0xc0] sm:$0xff]
    %v1836 = vld [vmem:[%s3 + $0xc8] sm:$0xff]
    %v1837 = vld [vmem:[%s3 + $0xd0] sm:$0xff]
    %v1838 = vld [vmem:[%s3 + $0xd8] sm:$0xff]
    %v1839 = vld [vmem:[%s3 + $0xe0] sm:$0xff]
    %v1840 = vld [vmem:[%s3 + $0xe8] sm:$0xff]
    %v1841 = vld [vmem:[%s3 + $0xf0] sm:$0xff]
    %v1842 = vld [vmem:[%s3 + $0xf8] sm:$0xff]
    %v1843 = vld [vmem:[%s3 + $0x100] sm:$0xff]
    %v1844 = vld [vmem:[%s3 + $0x108] sm:$0xff]
    %v1845 = vld [vmem:[%s3 + $0x110] sm:$0xff]
    %v1846 = vld [vmem:[%s3 + $0x118] sm:$0xff]
    %v1847 = vld [vmem:[%s3 + $0x120] sm:$0xff]
    %v1848 = vld [vmem:[%s3 + $0x128] sm:$0xff]
    %v1849 = vld [vmem:[%s3 + $0x130] sm:$0xff]
    %v1850 = vld [vmem:[%s3 + $0x138] sm:$0xff]
    %v1851 = vld [vmem:[%s3 + $0x140] sm:$0xff]
    %v1852 = vld [vmem:[%s3 + $0x148] sm:$0xff]
    %v1853 = vld [vmem:[%s3 + $0x150] sm:$0xff]
    %v1854 = vld [vmem:[%s3 + $0x158] sm:$0xff]
    %v1855 = vld [vmem:[%s3 + $0x160] sm:$0xff]
    %v1856 = vld [vmem:[%s3 + $0x168] sm:$0xff]
    %v1857 = vld [vmem:[%s3 + $0x170] sm:$0xff]
    %v1858 = vld [vmem:[%s3 + $0x178] sm:$0xff]
    %v1859 = vld [vmem:[%s3 + $0x180] sm:$0xff]
    %v1860 = vld [vmem:[%s3 + $0x188] sm:$0xff]
    %v1861 = vld [vmem:[%s3 + $0x190] sm:$0xff]
    %v1862 = vld [vmem:[%s3 + $0x198] sm:$0xff]
    %v1863 = vld [vmem:[%s3 + $0x1a0] sm:$0xff]
    %v1864 = vld [vmem:[%s3 + $0x1a8] sm:$0xff]
    %v1865 = vld [vmem:[%s3 + $0x1b0] sm:$0xff]
    %v1866 = vld [vmem:[%s3 + $0x1b8] sm:$0xff]
    %v1867 = vld [vmem:[%s3 + $0x1c0] sm:$0xff]
    %v1868 = vld [vmem:[%s3 + $0x1c8] sm:$0xff]
    %v1869 = vld [vmem:[%s3 + $0x1d0] sm:$0xff]
    %v1870 = vld [vmem:[%s3 + $0x1d8] sm:$0xff]
    %v1871 = vld [vmem:[%s3 + $0x1e0] sm:$0xff]
    %v1872 = vld [vmem:[%s3 + $0x1e8] sm:$0xff]
    %v1873 = vld [vmem:[%s3 + $0x1f0] sm:$0xff]
    %v1874 = vld [vmem:[%s3 + $0x1f8] sm:$0xff]
    %v1875 = vld [vmem:[%s4] sm:$0x3]
    %v1877 = vlaneseq
    %v1878 = vshrl.u32 %v1877, 7
    %v1879 = vsub.s32 0, %v1878
    %v1880 = vrot.slane %v1875, %v1879
    %v1881 = vlaneseq
    %v1882 = vshrl.u32 %v1881, 7
    %v1883 = vsub.s32 1, %v1882
    %v1884 = vrot.slane %v1875, %v1883
    %v1951 = vunpack.c.l.b16 %v1811
    %v1952 = vunpack.c.h.b16 %v1811
    %v1953 = vunpack.c.l.b16 %v1812
    %v1954 = vunpack.c.h.b16 %v1812
    %v1955 = vunpack.c.l.b16 %v1813
    %v1956 = vunpack.c.h.b16 %v1813
    %v1957 = vunpack.c.l.b16 %v1814
    %v1958 = vunpack.c.h.b16 %v1814
    %v1959 = vunpack.c.l.b16 %v1815
    %v1960 = vunpack.c.h.b16 %v1815
    %v1961 = vunpack.c.l.b16 %v1816
    %v1962 = vunpack.c.h.b16 %v1816
    %v1963 = vunpack.c.l.b16 %v1817
    %v1964 = vunpack.c.h.b16 %v1817
    %v1965 = vunpack.c.l.b16 %v1818
    %v1966 = vunpack.c.h.b16 %v1818
    %v1967 = vunpack.c.l.b16 %v1819
    %v1968 = vunpack.c.h.b16 %v1819
    %v1969 = vunpack.c.l.b16 %v1820
    %v1970 = vunpack.c.h.b16 %v1820
    %v1971 = vunpack.c.l.b16 %v1821
    %v1972 = vunpack.c.h.b16 %v1821
    %v1973 = vunpack.c.l.b16 %v1822
    %v1974 = vunpack.c.h.b16 %v1822
    %v1975 = vunpack.c.l.b16 %v1823
    %v1976 = vunpack.c.h.b16 %v1823
    %v1977 = vunpack.c.l.b16 %v1824
    %v1978 = vunpack.c.h.b16 %v1824
    %v1979 = vunpack.c.l.b16 %v1825
    %v1980 = vunpack.c.h.b16 %v1825
    %v1981 = vunpack.c.l.b16 %v1826
    %v1982 = vunpack.c.h.b16 %v1826
    %v1983 = vunpack.c.l.b16 %v1827
    %v1984 = vunpack.c.h.b16 %v1827
    %v1985 = vunpack.c.l.b16 %v1828
    %v1986 = vunpack.c.h.b16 %v1828
    %v1987 = vunpack.c.l.b16 %v1829
    %v1988 = vunpack.c.h.b16 %v1829
    %v1989 = vunpack.c.l.b16 %v1830
    %v1990 = vunpack.c.h.b16 %v1830
    %v1991 = vunpack.c.l.b16 %v1831
    %v1992 = vunpack.c.h.b16 %v1831
    %v1993 = vunpack.c.l.b16 %v1832
    %v1994 = vunpack.c.h.b16 %v1832
    %v1995 = vunpack.c.l.b16 %v1833
    %v1996 = vunpack.c.h.b16 %v1833
    %v1997 = vunpack.c.l.b16 %v1834
    %v1998 = vunpack.c.h.b16 %v1834
    %v1999 = vunpack.c.l.b16 %v1835
    %v2000 = vunpack.c.h.b16 %v1835
    %v2001 = vunpack.c.l.b16 %v1836
    %v2002 = vunpack.c.h.b16 %v1836
    %v2003 = vunpack.c.l.b16 %v1837
    %v2004 = vunpack.c.h.b16 %v1837
    %v2005 = vunpack.c.l.b16 %v1838
    %v2006 = vunpack.c.h.b16 %v1838
    %v2007 = vunpack.c.l.b16 %v1839
    %v2008 = vunpack.c.h.b16 %v1839
    %v2009 = vunpack.c.l.b16 %v1840
    %v2010 = vunpack.c.h.b16 %v1840
    %v2011 = vunpack.c.l.b16 %v1841
    %v2012 = vunpack.c.h.b16 %v1841
    %v2013 = vunpack.c.l.b16 %v1842
    %v2014 = vunpack.c.h.b16 %v1842
    %v2015 = vunpack.c.l.b16 %v1843
    %v2016 = vunpack.c.h.b16 %v1843
    %v2017 = vunpack.c.l.b16 %v1844
    %v2018 = vunpack.c.h.b16 %v1844
    %v2019 = vunpack.c.l.b16 %v1845
    %v2020 = vunpack.c.h.b16 %v1845
    %v2021 = vunpack.c.l.b16 %v1846
    %v2022 = vunpack.c.h.b16 %v1846
    %v2023 = vunpack.c.l.b16 %v1847
    %v2024 = vunpack.c.h.b16 %v1847
    %v2025 = vunpack.c.l.b16 %v1848
    %v2026 = vunpack.c.h.b16 %v1848
    %v2027 = vunpack.c.l.b16 %v1849
    %v2028 = vunpack.c.h.b16 %v1849
    %v2029 = vunpack.c.l.b16 %v1850
    %v2030 = vunpack.c.h.b16 %v1850
    %v2031 = vunpack.c.l.b16 %v1851
    %v2032 = vunpack.c.h.b16 %v1851
    %v2033 = vunpack.c.l.b16 %v1852
    %v2034 = vunpack.c.h.b16 %v1852
    %v2035 = vunpack.c.l.b16 %v1853
    %v2036 = vunpack.c.h.b16 %v1853
    %v2037 = vunpack.c.l.b16 %v1854
    %v2038 = vunpack.c.h.b16 %v1854
    %v2039 = vunpack.c.l.b16 %v1855
    %v2040 = vunpack.c.h.b16 %v1855
    %v2041 = vunpack.c.l.b16 %v1856
    %v2042 = vunpack.c.h.b16 %v1856
    %v2043 = vunpack.c.l.b16 %v1857
    %v2044 = vunpack.c.h.b16 %v1857
    %v2045 = vunpack.c.l.b16 %v1858
    %v2046 = vunpack.c.h.b16 %v1858
    %v2047 = vunpack.c.l.b16 %v1859
    %v2048 = vunpack.c.h.b16 %v1859
    %v2049 = vunpack.c.l.b16 %v1860
    %v2050 = vunpack.c.h.b16 %v1860
    %v2051 = vunpack.c.l.b16 %v1861
    %v2052 = vunpack.c.h.b16 %v1861
    %v2053 = vunpack.c.l.b16 %v1862
    %v2054 = vunpack.c.h.b16 %v1862
    %v2055 = vunpack.c.l.b16 %v1863
    %v2056 = vunpack.c.h.b16 %v1863
    %v2057 = vunpack.c.l.b16 %v1864
    %v2058 = vunpack.c.h.b16 %v1864
    %v2059 = vunpack.c.l.b16 %v1865
    %v2060 = vunpack.c.h.b16 %v1865
    %v2061 = vunpack.c.l.b16 %v1866
    %v2062 = vunpack.c.h.b16 %v1866
    %v2063 = vunpack.c.l.b16 %v1867
    %v2064 = vunpack.c.h.b16 %v1867
    %v2065 = vunpack.c.l.b16 %v1868
    %v2066 = vunpack.c.h.b16 %v1868
    %v2067 = vunpack.c.l.b16 %v1869
    %v2068 = vunpack.c.h.b16 %v1869
    %v2069 = vunpack.c.l.b16 %v1870
    %v2070 = vunpack.c.h.b16 %v1870
    %v2071 = vunpack.c.l.b16 %v1871
    %v2072 = vunpack.c.h.b16 %v1871
    %v2073 = vunpack.c.l.b16 %v1872
    %v2074 = vunpack.c.h.b16 %v1872
    %v2075 = vunpack.c.l.b16 %v1873
    %v2076 = vunpack.c.h.b16 %v1873
    %v2077 = vunpack.c.l.b16 %v1874
    %v2078 = vunpack.c.h.b16 %v1874
    %v2079 = vpack.c.b16 %v1953, %v1951
    %v2080 = vpack.c.b16 %v1954, %v1952
    %v2081 = vpack.c.b16 %v1957, %v1955
    %v2082 = vpack.c.b16 %v1958, %v1956
    %v2083 = vpack.c.b16 %v1961, %v1959
    %v2084 = vpack.c.b16 %v1962, %v1960
    %v2085 = vpack.c.b16 %v1965, %v1963
    %v2086 = vpack.c.b16 %v1966, %v1964
    %v2087 = vpack.c.b16 %v1969, %v1967
    %v2088 = vpack.c.b16 %v1970, %v1968
    %v2089 = vpack.c.b16 %v1973, %v1971
    %v2090 = vpack.c.b16 %v1974, %v1972
    %v2091 = vpack.c.b16 %v1977, %v1975
    %v2092 = vpack.c.b16 %v1978, %v1976
    %v2093 = vpack.c.b16 %v1981, %v1979
    %v2094 = vpack.c.b16 %v1982, %v1980
    %v2095 = vpack.c.b16 %v1985, %v1983
    %v2096 = vpack.c.b16 %v1986, %v1984
    %v2097 = vpack.c.b16 %v1989, %v1987
    %v2098 = vpack.c.b16 %v1990, %v1988
    %v2099 = vpack.c.b16 %v1993, %v1991
    %v2100 = vpack.c.b16 %v1994, %v1992
    %v2101 = vpack.c.b16 %v1997, %v1995
    %v2102 = vpack.c.b16 %v1998, %v1996
    %v2103 = vpack.c.b16 %v2001, %v1999
    %v2104 = vpack.c.b16 %v2002, %v2000
    %v2105 = vpack.c.b16 %v2005, %v2003
    %v2106 = vpack.c.b16 %v2006, %v2004
    %v2107 = vpack.c.b16 %v2009, %v2007
    %v2108 = vpack.c.b16 %v2010, %v2008
    %v2109 = vpack.c.b16 %v2013, %v2011
    %v2110 = vpack.c.b16 %v2014, %v2012
    %v2111 = vpack.c.b16 %v2017, %v2015
    %v2112 = vpack.c.b16 %v2018, %v2016
    %v2113 = vpack.c.b16 %v2021, %v2019
    %v2114 = vpack.c.b16 %v2022, %v2020
    %v2115 = vpack.c.b16 %v2025, %v2023
    %v2116 = vpack.c.b16 %v2026, %v2024
    %v2117 = vpack.c.b16 %v2029, %v2027
    %v2118 = vpack.c.b16 %v2030, %v2028
    %v2119 = vpack.c.b16 %v2033, %v2031
    %v2120 = vpack.c.b16 %v2034, %v2032
    %v2121 = vpack.c.b16 %v2037, %v2035
    %v2122 = vpack.c.b16 %v2038, %v2036
    %v2123 = vpack.c.b16 %v2041, %v2039
    %v2124 = vpack.c.b16 %v2042, %v2040
    %v2125 = vpack.c.b16 %v2045, %v2043
    %v2126 = vpack.c.b16 %v2046, %v2044
    %v2127 = vpack.c.b16 %v2049, %v2047
    %v2128 = vpack.c.b16 %v2050, %v2048
    %v2129 = vpack.c.b16 %v2053, %v2051
    %v2130 = vpack.c.b16 %v2054, %v2052
    %v2131 = vpack.c.b16 %v2057, %v2055
    %v2132 = vpack.c.b16 %v2058, %v2056
    %v2133 = vpack.c.b16 %v2061, %v2059
    %v2134 = vpack.c.b16 %v2062, %v2060
    %v2135 = vpack.c.b16 %v2065, %v2063
    %v2136 = vpack.c.b16 %v2066, %v2064
    %v2137 = vpack.c.b16 %v2069, %v2067
    %v2138 = vpack.c.b16 %v2070, %v2068
    %v2139 = vpack.c.b16 %v2073, %v2071
    %v2140 = vpack.c.b16 %v2074, %v2072
    %v2141 = vpack.c.b16 %v2077, %v2075
    %v2142 = vpack.c.b16 %v2078, %v2076
    %2207 = vmatprep.subr.bf16.mxu0 %v2080
    %2208 = vmatpush1.bf16.msra.mxu0 %v2079
    %2209 = vmatprep.subr.bf16.mxu0 %v2082
    %2210 = vmatpush1.bf16.msra.mxu0 %v2081
    %2211 = vmatprep.subr.bf16.mxu0 %v2084
    %2212 = vmatpush1.bf16.msra.mxu0 %v2083
    %2213 = vmatprep.subr.bf16.mxu0 %v2086
    %2214 = vmatpush1.bf16.msra.mxu0 %v2085
    %2215 = vmatprep.subr.bf16.mxu0 %v2088
    %2216 = vmatpush1.bf16.msra.mxu0 %v2087
    %2217 = vmatprep.subr.bf16.mxu0 %v2090
    %2218 = vmatpush1.bf16.msra.mxu0 %v2089
    %2219 = vmatprep.subr.bf16.mxu0 %v2092
    %2220 = vmatpush1.bf16.msra.mxu0 %v2091
    %2221 = vmatprep.subr.bf16.mxu0 %v2094
    %2222 = vmatpush1.bf16.msra.mxu0 %v2093
    %2223 = vmatprep.subr.bf16.mxu0 %v2096
    %2224 = vmatpush1.bf16.msra.mxu0 %v2095
    %2225 = vmatprep.subr.bf16.mxu0 %v2098
    %2226 = vmatpush1.bf16.msra.mxu0 %v2097
    %2227 = vmatprep.subr.bf16.mxu0 %v2100
    %2228 = vmatpush1.bf16.msra.mxu0 %v2099
    %2229 = vmatprep.subr.bf16.mxu0 %v2102
    %2230 = vmatpush1.bf16.msra.mxu0 %v2101
    %2231 = vmatprep.subr.bf16.mxu0 %v2104
    %2232 = vmatpush1.bf16.msra.mxu0 %v2103
    %2233 = vmatprep.subr.bf16.mxu0 %v2106
    %2234 = vmatpush1.bf16.msra.mxu0 %v2105
    %2235 = vmatprep.subr.bf16.mxu0 %v2108
    %2236 = vmatpush1.bf16.msra.mxu0 %v2107
    %2237 = vmatprep.subr.bf16.mxu0 %v2110
    %2238 = vmatpush1.bf16.msra.mxu0 %v2109
    %2239 = vmatprep.mubr.bf16.mxu0 %v1808
    %2240 = vmatmul.mubr.bf16.gmra.mrb[0].mxu0 %v1807
    %v2241 = vpop.f32.mrb[0].mxu0
    %v2242 = vadd.f32 %v1880, %v2241
    %v2243 = vpop.f32.mrb[0].mxu0
    %v2244 = vadd.f32 %v1884, %v2243
    %v2245 = vpop.f32.mrb[0].mxu0
    %v2246 = vpop.f32.mrb[0].mxu0
    %2247 = vdwg.mxu0
    %2248 = vmatprep.subr.bf16.mxu0 %v2112
    %2249 = vmatpush1.bf16.msra.mxu0 %v2111
    %2250 = vmatprep.subr.bf16.mxu0 %v2114
    %2251 = vmatpush1.bf16.msra.mxu0 %v2113
    %2252 = vmatprep.subr.bf16.mxu0 %v2116
    %2253 = vmatpush1.bf16.msra.mxu0 %v2115
    %2254 = vmatprep.subr.bf16.mxu0 %v2118
    %2255 = vmatpush1.bf16.msra.mxu0 %v2117
    %2256 = vmatprep.subr.bf16.mxu0 %v2120
    %2257 = vmatpush1.bf16.msra.mxu0 %v2119
    %2258 = vmatprep.subr.bf16.mxu0 %v2122
    %2259 = vmatpush1.bf16.msra.mxu0 %v2121
    %2260 = vmatprep.subr.bf16.mxu0 %v2124
    %2261 = vmatpush1.bf16.msra.mxu0 %v2123
    %2262 = vmatprep.subr.bf16.mxu0 %v2126
    %2263 = vmatpush1.bf16.msra.mxu0 %v2125
    %2264 = vmatprep.subr.bf16.mxu0 %v2128
    %2265 = vmatpush1.bf16.msra.mxu0 %v2127
    %2266 = vmatprep.subr.bf16.mxu0 %v2130
    %2267 = vmatpush1.bf16.msra.mxu0 %v2129
    %2268 = vmatprep.subr.bf16.mxu0 %v2132
    %2269 = vmatpush1.bf16.msra.mxu0 %v2131
    %2270 = vmatprep.subr.bf16.mxu0 %v2134
    %2271 = vmatpush1.bf16.msra.mxu0 %v2133
    %2272 = vmatprep.subr.bf16.mxu0 %v2136
    %2273 = vmatpush1.bf16.msra.mxu0 %v2135
    %2274 = vmatprep.subr.bf16.mxu0 %v2138
    %2275 = vmatpush1.bf16.msra.mxu0 %v2137
    %2276 = vmatprep.subr.bf16.mxu0 %v2140
    %2277 = vmatpush1.bf16.msra.mxu0 %v2139
    %2278 = vmatprep.subr.bf16.mxu0 %v2142
    %2279 = vmatpush1.bf16.msra.mxu0 %v2141
    %2280 = vmatprep.mubr.bf16.mxu0 %v1810
    %2281 = vmatmul.mubr.bf16.gmra.mrb[0].mxu0 %v1809
    %v2282 = vpop.f32.mrb[0].mxu0
    %v2283 = vadd.f32 %v2242, %v2282
    %v2284 = vpop.f32.mrb[0].mxu0
    %v2285 = vadd.f32 %v2244, %v2284
    %v2286 = vpop.f32.mrb[0].mxu0
    %v2287 = vpop.f32.mrb[0].mxu0
    %2288 = vdwg.mxu0
    %v2289 = vmax.f32 %v2283, 0.0
    %v2290 = vmax.f32 %v2285, 0.0
    %v2291 = vpack.c.bf16 %v2289, %v2289
    %v2292 = vpack.c.bf16 %v2290, %v2290
    %v2293 = vld [vmem:[%s5] sm:$0xff]
    %v2294 = vld [vmem:[%s5 + $0x8] sm:$0xff]
    %v2295 = vld [vmem:[%s5 + $0x10] sm:$0xff]
    %v2296 = vld [vmem:[%s5 + $0x18] sm:$0xff]
    %v2297 = vld [vmem:[%s5 + $0x20] sm:$0xff]
    %v2298 = vld [vmem:[%s5 + $0x28] sm:$0xff]
    %v2299 = vld [vmem:[%s5 + $0x30] sm:$0xff]
    %v2300 = vld [vmem:[%s5 + $0x38] sm:$0xff]
    %v2301 = vld [vmem:[%s5 + $0x40] sm:$0xff]
    %v2302 = vld [vmem:[%s5 + $0x48] sm:$0xff]
    %v2303 = vld [vmem:[%s5 + $0x50] sm:$0xff]
    %v2304 = vld [vmem:[%s5 + $0x58] sm:$0xff]
    %v2305 = vld [vmem:[%s5 + $0x60] sm:$0xff]
    %v2306 = vld [vmem:[%s5 + $0x68] sm:$0xff]
    %v2307 = vld [vmem:[%s5 + $0x70] sm:$0xff]
    %v2308 = vld [vmem:[%s5 + $0x78] sm:$0xff]
    %v2309 = vld [vmem:[%s5 + $0x80] sm:$0xff]
    %v2310 = vld [vmem:[%s5 + $0x88] sm:$0xff]
    %v2311 = vld [vmem:[%s5 + $0x90] sm:$0xff]
    %v2312 = vld [vmem:[%s5 + $0x98] sm:$0xff]
    %v2313 = vld [vmem:[%s5 + $0xa0] sm:$0xff]
    %v2314 = vld [vmem:[%s5 + $0xa8] sm:$0xff]
    %v2315 = vld [vmem:[%s5 + $0xb0] sm:$0xff]
    %v2316 = vld [vmem:[%s5 + $0xb8] sm:$0xff]
    %v2317 = vld [vmem:[%s5 + $0xc0] sm:$0xff]
    %v2318 = vld [vmem:[%s5 + $0xc8] sm:$0xff]
    %v2319 = vld [vmem:[%s5 + $0xd0] sm:$0xff]
    %v2320 = vld [vmem:[%s5 + $0xd8] sm:$0xff]
    %v2321 = vld [vmem:[%s5 + $0xe0] sm:$0xff]
    %v2322 = vld [vmem:[%s5 + $0xe8] sm:$0xff]
    %v2323 = vld [vmem:[%s5 + $0xf0] sm:$0xff]
    %v2324 = vld [vmem:[%s5 + $0xf8] sm:$0xff]
    %v2325 = vld [vmem:[%s6] sm:$0x3]
    %v2327 = vlaneseq
    %v2328 = vshrl.u32 %v2327, 7
    %v2329 = vsub.s32 0, %v2328
    %v2330 = vrot.slane %v2325, %v2329
    %v2331 = vlaneseq
    %v2332 = vshrl.u32 %v2331, 7
    %v2333 = vsub.s32 1, %v2332
    %v2334 = vrot.slane %v2325, %v2333
    %v2369 = vunpack.c.l.b16 %v2293
    %v2370 = vunpack.c.h.b16 %v2293
    %v2371 = vunpack.c.l.b16 %v2294
    %v2372 = vunpack.c.h.b16 %v2294
    %v2373 = vunpack.c.l.b16 %v2295
    %v2374 = vunpack.c.h.b16 %v2295
    %v2375 = vunpack.c.l.b16 %v2296
    %v2376 = vunpack.c.h.b16 %v2296
    %v2377 = vunpack.c.l.b16 %v2297
    %v2378 = vunpack.c.h.b16 %v2297
    %v2379 = vunpack.c.l.b16 %v2298
    %v2380 = vunpack.c.h.b16 %v2298
    %v2381 = vunpack.c.l.b16 %v2299
    %v2382 = vunpack.c.h.b16 %v2299
    %v2383 = vunpack.c.l.b16 %v2300
    %v2384 = vunpack.c.h.b16 %v2300
    %v2385 = vunpack.c.l.b16 %v2301
    %v2386 = vunpack.c.h.b16 %v2301
    %v2387 = vunpack.c.l.b16 %v2302
    %v2388 = vunpack.c.h.b16 %v2302
    %v2389 = vunpack.c.l.b16 %v2303
    %v2390 = vunpack.c.h.b16 %v2303
    %v2391 = vunpack.c.l.b16 %v2304
    %v2392 = vunpack.c.h.b16 %v2304
    %v2393 = vunpack.c.l.b16 %v2305
    %v2394 = vunpack.c.h.b16 %v2305
    %v2395 = vunpack.c.l.b16 %v2306
    %v2396 = vunpack.c.h.b16 %v2306
    %v2397 = vunpack.c.l.b16 %v2307
    %v2398 = vunpack.c.h.b16 %v2307
    %v2399 = vunpack.c.l.b16 %v2308
    %v2400 = vunpack.c.h.b16 %v2308
    %v2401 = vunpack.c.l.b16 %v2309
    %v2402 = vunpack.c.h.b16 %v2309
    %v2403 = vunpack.c.l.b16 %v2310
    %v2404 = vunpack.c.h.b16 %v2310
    %v2405 = vunpack.c.l.b16 %v2311
    %v2406 = vunpack.c.h.b16 %v2311
    %v2407 = vunpack.c.l.b16 %v2312
    %v2408 = vunpack.c.h.b16 %v2312
    %v2409 = vunpack.c.l.b16 %v2313
    %v2410 = vunpack.c.h.b16 %v2313
    %v2411 = vunpack.c.l.b16 %v2314
    %v2412 = vunpack.c.h.b16 %v2314
    %v2413 = vunpack.c.l.b16 %v2315
    %v2414 = vunpack.c.h.b16 %v2315
    %v2415 = vunpack.c.l.b16 %v2316
    %v2416 = vunpack.c.h.b16 %v2316
    %v2417 = vunpack.c.l.b16 %v2317
    %v2418 = vunpack.c.h.b16 %v2317
    %v2419 = vunpack.c.l.b16 %v2318
    %v2420 = vunpack.c.h.b16 %v2318
    %v2421 = vunpack.c.l.b16 %v2319
    %v2422 = vunpack.c.h.b16 %v2319
    %v2423 = vunpack.c.l.b16 %v2320
    %v2424 = vunpack.c.h.b16 %v2320
    %v2425 = vunpack.c.l.b16 %v2321
    %v2426 = vunpack.c.h.b16 %v2321
    %v2427 = vunpack.c.l.b16 %v2322
    %v2428 = vunpack.c.h.b16 %v2322
    %v2429 = vunpack.c.l.b16 %v2323
    %v2430 = vunpack.c.h.b16 %v2323
    %v2431 = vunpack.c.l.b16 %v2324
    %v2432 = vunpack.c.h.b16 %v2324
    %v2433 = vpack.c.b16 %v2371, %v2369
    %v2434 = vpack.c.b16 %v2372, %v2370
    %v2435 = vpack.c.b16 %v2375, %v2373
    %v2436 = vpack.c.b16 %v2376, %v2374
    %v2437 = vpack.c.b16 %v2379, %v2377
    %v2438 = vpack.c.b16 %v2380, %v2378
    %v2439 = vpack.c.b16 %v2383, %v2381
    %v2440 = vpack.c.b16 %v2384, %v2382
    %v2441 = vpack.c.b16 %v2387, %v2385
    %v2442 = vpack.c.b16 %v2388, %v2386
    %v2443 = vpack.c.b16 %v2391, %v2389
    %v2444 = vpack.c.b16 %v2392, %v2390
    %v2445 = vpack.c.b16 %v2395, %v2393
    %v2446 = vpack.c.b16 %v2396, %v2394
    %v2447 = vpack.c.b16 %v2399, %v2397
    %v2448 = vpack.c.b16 %v2400, %v2398
    %v2449 = vpack.c.b16 %v2403, %v2401
    %v2450 = vpack.c.b16 %v2404, %v2402
    %v2451 = vpack.c.b16 %v2407, %v2405
    %v2452 = vpack.c.b16 %v2408, %v2406
    %v2453 = vpack.c.b16 %v2411, %v2409
    %v2454 = vpack.c.b16 %v2412, %v2410
    %v2455 = vpack.c.b16 %v2415, %v2413
    %v2456 = vpack.c.b16 %v2416, %v2414
    %v2457 = vpack.c.b16 %v2419, %v2417
    %v2458 = vpack.c.b16 %v2420, %v2418
    %v2459 = vpack.c.b16 %v2423, %v2421
    %v2460 = vpack.c.b16 %v2424, %v2422
    %v2461 = vpack.c.b16 %v2427, %v2425
    %v2462 = vpack.c.b16 %v2428, %v2426
    %v2463 = vpack.c.b16 %v2431, %v2429
    %v2464 = vpack.c.b16 %v2432, %v2430
    %2497 = vmatprep.subr.bf16.mxu0 %v2434
    %2498 = vmatpush1.bf16.msra.mxu0 %v2433
    %2499 = vmatprep.subr.bf16.mxu0 %v2436
    %2500 = vmatpush1.bf16.msra.mxu0 %v2435
    %2501 = vmatprep.subr.bf16.mxu0 %v2438
    %2502 = vmatpush1.bf16.msra.mxu0 %v2437
    %2503 = vmatprep.subr.bf16.mxu0 %v2440
    %2504 = vmatpush1.bf16.msra.mxu0 %v2439
    %2505 = vmatprep.subr.bf16.mxu0 %v2442
    %2506 = vmatpush1.bf16.msra.mxu0 %v2441
    %2507 = vmatprep.subr.bf16.mxu0 %v2444
    %2508 = vmatpush1.bf16.msra.mxu0 %v2443
    %2509 = vmatprep.subr.bf16.mxu0 %v2446
    %2510 = vmatpush1.bf16.msra.mxu0 %v2445
    %2511 = vmatprep.subr.bf16.mxu0 %v2448
    %2512 = vmatpush1.bf16.msra.mxu0 %v2447
    %2513 = vmatprep.subr.bf16.mxu0 %v2450
    %2514 = vmatpush1.bf16.msra.mxu0 %v2449
    %2515 = vmatprep.subr.bf16.mxu0 %v2452
    %2516 = vmatpush1.bf16.msra.mxu0 %v2451
    %2517 = vmatprep.subr.bf16.mxu0 %v2454
    %2518 = vmatpush1.bf16.msra.mxu0 %v2453
    %2519 = vmatprep.subr.bf16.mxu0 %v2456
    %2520 = vmatpush1.bf16.msra.mxu0 %v2455
    %2521 = vmatprep.subr.bf16.mxu0 %v2458
    %2522 = vmatpush1.bf16.msra.mxu0 %v2457
    %2523 = vmatprep.subr.bf16.mxu0 %v2460
    %2524 = vmatpush1.bf16.msra.mxu0 %v2459
    %2525 = vmatprep.subr.bf16.mxu0 %v2462
    %2526 = vmatpush1.bf16.msra.mxu0 %v2461
    %2527 = vmatprep.subr.bf16.mxu0 %v2464
    %2528 = vmatpush1.bf16.msra.mxu0 %v2463
    %2529 = vmatprep.mubr.bf16.mxu0 %v2292
    %2530 = vmatmul.mubr.bf16.gmra.mrb[0].mxu0 %v2291
    %v2531 = vpop.f32.mrb[0].mxu0
    %v2532 = vadd.f32 %v2330, %v2531
    %v2533 = vpop.f32.mrb[0].mxu0
    %v2534 = vadd.f32 %v2334, %v2533
    %v2535 = vpop.f32.mrb[0].mxu0
    %v2536 = vpop.f32.mrb[0].mxu0
    %2537 = vdwg.mxu0
    %v2538 = vmul.f32 %v2534, 0.5
    %v2539 = vmul.f32 %v2538, 1.442695
    %v2540 = vpow.pop %v2539
    %v2541 = vld [vmem:[%s7] sm:$0xff]
    %v2542 = vmul.f32 %v2540, %v2541
    %v2543 = vadd.f32 %v2532, %v2542
    %2544 = vst [vmem:[#allocation8] sm:$0xff] %v2532
    %2545 = vst [vmem:[#allocation9] sm:$0xff] %v2534
    %2546 = vst [vmem:[#allocation11] sm:$0xff] %v2543
    %v2547 = vpack.c.bf16 %v2543, %v2543
    %v2548 = vld [vmem:[%s8] sm:$0xff]
    %v2549 = vld [vmem:[%s8 + $0x8] sm:$0xff]
    %v2550 = vld [vmem:[%s8 + $0x10] sm:$0xff]
    %v2551 = vld [vmem:[%s8 + $0x18] sm:$0xff]
    %v2552 = vld [vmem:[%s8 + $0x20] sm:$0xff]
    %v2553 = vld [vmem:[%s8 + $0x28] sm:$0xff]
    %v2554 = vld [vmem:[%s8 + $0x30] sm:$0xff]
    %v2555 = vld [vmem:[%s8 + $0x38] sm:$0xff]
    %v2556 = vld [vmem:[%s8 + $0x40] sm:$0xff]
    %v2557 = vld [vmem:[%s8 + $0x48] sm:$0xff]
    %v2558 = vld [vmem:[%s8 + $0x50] sm:$0xff]
    %v2559 = vld [vmem:[%s8 + $0x58] sm:$0xff]
    %v2560 = vld [vmem:[%s8 + $0x60] sm:$0xff]
    %v2561 = vld [vmem:[%s8 + $0x68] sm:$0xff]
    %v2562 = vld [vmem:[%s8 + $0x70] sm:$0xff]
    %v2563 = vld [vmem:[%s8 + $0x78] sm:$0xff]
    %v2564 = vld [vmem:[%s9] sm:$0x3]
    %v2566 = vlaneseq
    %v2567 = vshrl.u32 %v2566, 7
    %v2568 = vsub.s32 0, %v2567
    %v2569 = vrot.slane %v2564, %v2568
    %v2570 = vlaneseq
    %v2571 = vshrl.u32 %v2570, 7
    %v2572 = vsub.s32 1, %v2571
    %v2573 = vrot.slane %v2564, %v2572
    %v2592 = vunpack.c.l.b16 %v2548
    %v2593 = vunpack.c.h.b16 %v2548
    %v2594 = vunpack.c.l.b16 %v2549
    %v2595 = vunpack.c.h.b16 %v2549
    %v2596 = vunpack.c.l.b16 %v2550
    %v2597 = vunpack.c.h.b16 %v2550
    %v2598 = vunpack.c.l.b16 %v2551
    %v2599 = vunpack.c.h.b16 %v2551
    %v2600 = vunpack.c.l.b16 %v2552
    %v2601 = vunpack.c.h.b16 %v2552
    %v2602 = vunpack.c.l.b16 %v2553
    %v2603 = vunpack.c.h.b16 %v2553
    %v2604 = vunpack.c.l.b16 %v2554
    %v2605 = vunpack.c.h.b16 %v2554
    %v2606 = vunpack.c.l.b16 %v2555
    %v2607 = vunpack.c.h.b16 %v2555
    %v2608 = vunpack.c.l.b16 %v2556
    %v2609 = vunpack.c.h.b16 %v2556
    %v2610 = vunpack.c.l.b16 %v2557
    %v2611 = vunpack.c.h.b16 %v2557
    %v2612 = vunpack.c.l.b16 %v2558
    %v2613 = vunpack.c.h.b16 %v2558
    %v2614 = vunpack.c.l.b16 %v2559
    %v2615 = vunpack.c.h.b16 %v2559
    %v2616 = vunpack.c.l.b16 %v2560
    %v2617 = vunpack.c.h.b16 %v2560
    %v2618 = vunpack.c.l.b16 %v2561
    %v2619 = vunpack.c.h.b16 %v2561
    %v2620 = vunpack.c.l.b16 %v2562
    %v2621 = vunpack.c.h.b16 %v2562
    %v2622 = vunpack.c.l.b16 %v2563
    %v2623 = vunpack.c.h.b16 %v2563
    %v2624 = vpack.c.b16 %v2594, %v2592
    %v2625 = vpack.c.b16 %v2595, %v2593
    %v2626 = vpack.c.b16 %v2598, %v2596
    %v2627 = vpack.c.b16 %v2599, %v2597
    %v2628 = vpack.c.b16 %v2602, %v2600
    %v2629 = vpack.c.b16 %v2603, %v2601
    %v2630 = vpack.c.b16 %v2606, %v2604
    %v2631 = vpack.c.b16 %v2607, %v2605
    %v2632 = vpack.c.b16 %v2610, %v2608
    %v2633 = vpack.c.b16 %v2611, %v2609
    %v2634 = vpack.c.b16 %v2614, %v2612
    %v2635 = vpack.c.b16 %v2615, %v2613
    %v2636 = vpack.c.b16 %v2618, %v2616
    %v2637 = vpack.c.b16 %v2619, %v2617
    %v2638 = vpack.c.b16 %v2622, %v2620
    %v2639 = vpack.c.b16 %v2623, %v2621
    %2656 = vmatprep.subr.bf16.mxu0 %v2625
    %2657 = vmatpush1.bf16.msra.mxu0 %v2624
    %2658 = vmatprep.subr.bf16.mxu0 %v2627
    %2659 = vmatpush1.bf16.msra.mxu0 %v2626
    %2660 = vmatprep.subr.bf16.mxu0 %v2629
    %2661 = vmatpush1.bf16.msra.mxu0 %v2628
    %2662 = vmatprep.subr.bf16.mxu0 %v2631
    %2663 = vmatpush1.bf16.msra.mxu0 %v2630
    %2664 = vmatprep.subr.bf16.mxu0 %v2633
    %2665 = vmatpush1.bf16.msra.mxu0 %v2632
    %2666 = vmatprep.subr.bf16.mxu0 %v2635
    %2667 = vmatpush1.bf16.msra.mxu0 %v2634
    %2668 = vmatprep.subr.bf16.mxu0 %v2637
    %2669 = vmatpush1.bf16.msra.mxu0 %v2636
    %2670 = vmatprep.subr.bf16.mxu0 %v2639
    %2671 = vmatpush1.bf16.msra.mxu0 %v2638
    %2672 = vmatprep.subr.bf16.mxu0 0
    %2673 = vmatpush1.bf16.msra.mxu0 0
    %2674 = vmatprep.subr.bf16.mxu0 0
    %2675 = vmatpush1.bf16.msra.mxu0 0
    %2676 = vmatprep.subr.bf16.mxu0 0
    %2677 = vmatpush1.bf16.msra.mxu0 0
    %2678 = vmatprep.subr.bf16.mxu0 0
    %2679 = vmatpush1.bf16.msra.mxu0 0
    %2680 = vmatprep.subr.bf16.mxu0 0
    %2681 = vmatpush1.bf16.msra.mxu0 0
    %2682 = vmatprep.subr.bf16.mxu0 0
    %2683 = vmatpush1.bf16.msra.mxu0 0
    %2684 = vmatprep.subr.bf16.mxu0 0
    %2685 = vmatpush1.bf16.msra.mxu0 0
    %2686 = vmatprep.subr.bf16.mxu0 0
    %2687 = vmatpush1.bf16.msra.mxu0 0
    %2688 = vmatprep.mubr.bf16.mxu0 0
    %2689 = vmatmul.mubr.bf16.gmra.mrb[0].mxu0 %v2547
    %v2690 = vpop.f32.mrb[0].mxu0
    %v2691 = vadd.f32 %v2569, %v2690
    %v2692 = vpop.f32.mrb[0].mxu0
    %v2693 = vadd.f32 %v2573, %v2692
    %v2694 = vpop.f32.mrb[0].mxu0
    %v2695 = vpop.f32.mrb[0].mxu0
    %2696 = vdwg.mxu0
    %v2697 = vpack.c.bf16 %v2691, %v2691
    %v2698 = vpack.c.bf16 %v2693, %v2693
    %v2699 = vld [vmem:[#allocation5] sm:$0xff]
    %v2700 = vld [vmem:[#allocation5 + $0x8] sm:$0xff]
    %v2701 = vld [vmem:[#allocation5 + $0x10] sm:$0xff]
    %v2702 = vld [vmem:[#allocation5 + $0x18] sm:$0xff]
    %v2703 = vld [vmem:[#allocation5 + $0x20] sm:$0xff]
    %v2704 = vld [vmem:[#allocation5 + $0x28] sm:$0xff]
    %v2705 = vld [vmem:[#allocation5 + $0x30] sm:$0xff]
    %v2706 = vld [vmem:[#allocation5 + $0x38] sm:$0xff]
    %v2707 = vld [vmem:[#allocation5 + $0x40] sm:$0xff]
    %v2708 = vld [vmem:[#allocation5 + $0x48] sm:$0xff]
    %v2709 = vld [vmem:[#allocation5 + $0x50] sm:$0xff]
    %v2710 = vld [vmem:[#allocation5 + $0x58] sm:$0xff]
    %v2711 = vld [vmem:[#allocation5 + $0x60] sm:$0xff]
    %v2712 = vld [vmem:[#allocation5 + $0x68] sm:$0xff]
    %v2713 = vld [vmem:[#allocation5 + $0x70] sm:$0xff]
    %v2714 = vld [vmem:[#allocation5 + $0x78] sm:$0xff]
    %v2715 = vld [vmem:[#allocation5 + $0x80] sm:$0xff]
    %v2716 = vld [vmem:[#allocation5 + $0x88] sm:$0xff]
    %v2717 = vld [vmem:[#allocation5 + $0x90] sm:$0xff]
    %v2718 = vld [vmem:[#allocation5 + $0x98] sm:$0xff]
    %v2719 = vld [vmem:[#allocation5 + $0xa0] sm:$0xff]
    %v2720 = vld [vmem:[#allocation5 + $0xa8] sm:$0xff]
    %v2721 = vld [vmem:[#allocation5 + $0xb0] sm:$0xff]
    %v2722 = vld [vmem:[#allocation5 + $0xb8] sm:$0xff]
    %v2723 = vld [vmem:[#allocation5 + $0xc0] sm:$0xff]
    %v2724 = vld [vmem:[#allocation5 + $0xc8] sm:$0xff]
    %v2725 = vld [vmem:[#allocation5 + $0xd0] sm:$0xff]
    %v2726 = vld [vmem:[#allocation5 + $0xd8] sm:$0xff]
    %v2727 = vld [vmem:[#allocation5 + $0xe0] sm:$0xff]
    %v2728 = vld [vmem:[#allocation5 + $0xe8] sm:$0xff]
    %v2729 = vld [vmem:[#allocation5 + $0xf0] sm:$0xff]
    %v2730 = vld [vmem:[#allocation5 + $0xf8] sm:$0xff]
    %v2731 = vld [vmem:[#allocation5 + $0x100] sm:$0xff]
    %v2732 = vld [vmem:[#allocation5 + $0x108] sm:$0xff]
    %v2733 = vld [vmem:[#allocation5 + $0x110] sm:$0xff]
    %v2734 = vld [vmem:[#allocation5 + $0x118] sm:$0xff]
    %v2735 = vld [vmem:[#allocation5 + $0x120] sm:$0xff]
    %v2736 = vld [vmem:[#allocation5 + $0x128] sm:$0xff]
    %v2737 = vld [vmem:[#allocation5 + $0x130] sm:$0xff]
    %v2738 = vld [vmem:[#allocation5 + $0x138] sm:$0xff]
    %v2739 = vld [vmem:[#allocation5 + $0x140] sm:$0xff]
    %v2740 = vld [vmem:[#allocation5 + $0x148] sm:$0xff]
    %v2741 = vld [vmem:[#allocation5 + $0x150] sm:$0xff]
    %v2742 = vld [vmem:[#allocation5 + $0x158] sm:$0xff]
    %v2743 = vld [vmem:[#allocation5 + $0x160] sm:$0xff]
    %v2744 = vld [vmem:[#allocation5 + $0x168] sm:$0xff]
    %v2745 = vld [vmem:[#allocation5 + $0x170] sm:$0xff]
    %v2746 = vld [vmem:[#allocation5 + $0x178] sm:$0xff]
    %v2747 = vld [vmem:[#allocation5 + $0x180] sm:$0xff]
    %v2748 = vld [vmem:[#allocation5 + $0x188] sm:$0xff]
    %v2749 = vld [vmem:[#allocation5 + $0x190] sm:$0xff]
    %v2750 = vld [vmem:[#allocation5 + $0x198] sm:$0xff]
    %v2751 = vld [vmem:[#allocation5 + $0x1a0] sm:$0xff]
    %v2752 = vld [vmem:[#allocation5 + $0x1a8] sm:$0xff]
    %v2753 = vld [vmem:[#allocation5 + $0x1b0] sm:$0xff]
    %v2754 = vld [vmem:[#allocation5 + $0x1b8] sm:$0xff]
    %v2755 = vld [vmem:[#allocation5 + $0x1c0] sm:$0xff]
    %v2756 = vld [vmem:[#allocation5 + $0x1c8] sm:$0xff]
    %v2757 = vld [vmem:[#allocation5 + $0x1d0] sm:$0xff]
    %v2758 = vld [vmem:[#allocation5 + $0x1d8] sm:$0xff]
    %v2759 = vld [vmem:[#allocation5 + $0x1e0] sm:$0xff]
    %v2760 = vld [vmem:[#allocation5 + $0x1e8] sm:$0xff]
    %v2761 = vld [vmem:[#allocation5 + $0x1f0] sm:$0xff]
    %v2762 = vld [vmem:[#allocation5 + $0x1f8] sm:$0xff]
    %v2763 = vld [vmem:[%s11] sm:$0xf]
    %v2765 = vlaneseq
    %v2766 = vshrl.u32 %v2765, 7
    %v2767 = vsub.s32 0, %v2766
    %v2768 = vrot.slane %v2763, %v2767
    %v2769 = vlaneseq
    %v2770 = vshrl.u32 %v2769, 7
    %v2771 = vsub.s32 1, %v2770
    %v2772 = vrot.slane %v2763, %v2771
    %v2773 = vlaneseq
    %v2774 = vshrl.u32 %v2773, 7
    %v2775 = vsub.s32 2, %v2774
    %v2776 = vrot.slane %v2763, %v2775
    %v2777 = vlaneseq
    %v2778 = vshrl.u32 %v2777, 7
    %v2779 = vsub.s32 3, %v2778
    %v2780 = vrot.slane %v2763, %v2779
    %v2849 = vunpack.c.l.b16 %v2699
    %v2850 = vunpack.c.h.b16 %v2699
    %v2851 = vunpack.c.l.b16 %v2700
    %v2852 = vunpack.c.h.b16 %v2700
    %v2853 = vunpack.c.l.b16 %v2701
    %v2854 = vunpack.c.h.b16 %v2701
    %v2855 = vunpack.c.l.b16 %v2702
    %v2856 = vunpack.c.h.b16 %v2702
    %v2857 = vunpack.c.l.b16 %v2703
    %v2858 = vunpack.c.h.b16 %v2703
    %v2859 = vunpack.c.l.b16 %v2704
    %v2860 = vunpack.c.h.b16 %v2704
    %v2861 = vunpack.c.l.b16 %v2705
    %v2862 = vunpack.c.h.b16 %v2705
    %v2863 = vunpack.c.l.b16 %v2706
    %v2864 = vunpack.c.h.b16 %v2706
    %v2865 = vunpack.c.l.b16 %v2707
    %v2866 = vunpack.c.h.b16 %v2707
    %v2867 = vunpack.c.l.b16 %v2708
    %v2868 = vunpack.c.h.b16 %v2708
    %v2869 = vunpack.c.l.b16 %v2709
    %v2870 = vunpack.c.h.b16 %v2709
    %v2871 = vunpack.c.l.b16 %v2710
    %v2872 = vunpack.c.h.b16 %v2710
    %v2873 = vunpack.c.l.b16 %v2711
    %v2874 = vunpack.c.h.b16 %v2711
    %v2875 = vunpack.c.l.b16 %v2712
    %v2876 = vunpack.c.h.b16 %v2712
    %v2877 = vunpack.c.l.b16 %v2713
    %v2878 = vunpack.c.h.b16 %v2713
    %v2879 = vunpack.c.l.b16 %v2714
    %v2880 = vunpack.c.h.b16 %v2714
    %v2881 = vunpack.c.l.b16 %v2715
    %v2882 = vunpack.c.h.b16 %v2715
    %v2883 = vunpack.c.l.b16 %v2716
    %v2884 = vunpack.c.h.b16 %v2716
    %v2885 = vunpack.c.l.b16 %v2717
    %v2886 = vunpack.c.h.b16 %v2717
    %v2887 = vunpack.c.l.b16 %v2718
    %v2888 = vunpack.c.h.b16 %v2718
    %v2889 = vunpack.c.l.b16 %v2719
    %v2890 = vunpack.c.h.b16 %v2719
    %v2891 = vunpack.c.l.b16 %v2720
    %v2892 = vunpack.c.h.b16 %v2720
    %v2893 = vunpack.c.l.b16 %v2721
    %v2894 = vunpack.c.h.b16 %v2721
    %v2895 = vunpack.c.l.b16 %v2722
    %v2896 = vunpack.c.h.b16 %v2722
    %v2897 = vunpack.c.l.b16 %v2723
    %v2898 = vunpack.c.h.b16 %v2723
    %v2899 = vunpack.c.l.b16 %v2724
    %v2900 = vunpack.c.h.b16 %v2724
    %v2901 = vunpack.c.l.b16 %v2725
    %v2902 = vunpack.c.h.b16 %v2725
    %v2903 = vunpack.c.l.b16 %v2726
    %v2904 = vunpack.c.h.b16 %v2726
    %v2905 = vunpack.c.l.b16 %v2727
    %v2906 = vunpack.c.h.b16 %v2727
    %v2907 = vunpack.c.l.b16 %v2728
    %v2908 = vunpack.c.h.b16 %v2728
    %v2909 = vunpack.c.l.b16 %v2729
    %v2910 = vunpack.c.h.b16 %v2729
    %v2911 = vunpack.c.l.b16 %v2730
    %v2912 = vunpack.c.h.b16 %v2730
    %v2913 = vunpack.c.l.b16 %v2731
    %v2914 = vunpack.c.h.b16 %v2731
    %v2915 = vunpack.c.l.b16 %v2732
    %v2916 = vunpack.c.h.b16 %v2732
    %v2917 = vunpack.c.l.b16 %v2733
    %v2918 = vunpack.c.h.b16 %v2733
    %v2919 = vunpack.c.l.b16 %v2734
    %v2920 = vunpack.c.h.b16 %v2734
    %v2921 = vunpack.c.l.b16 %v2735
    %v2922 = vunpack.c.h.b16 %v2735
    %v2923 = vunpack.c.l.b16 %v2736
    %v2924 = vunpack.c.h.b16 %v2736
    %v2925 = vunpack.c.l.b16 %v2737
    %v2926 = vunpack.c.h.b16 %v2737
    %v2927 = vunpack.c.l.b16 %v2738
    %v2928 = vunpack.c.h.b16 %v2738
    %v2929 = vunpack.c.l.b16 %v2739
    %v2930 = vunpack.c.h.b16 %v2739
    %v2931 = vunpack.c.l.b16 %v2740
    %v2932 = vunpack.c.h.b16 %v2740
    %v2933 = vunpack.c.l.b16 %v2741
    %v2934 = vunpack.c.h.b16 %v2741
    %v2935 = vunpack.c.l.b16 %v2742
    %v2936 = vunpack.c.h.b16 %v2742
    %v2937 = vunpack.c.l.b16 %v2743
    %v2938 = vunpack.c.h.b16 %v2743
    %v2939 = vunpack.c.l.b16 %v2744
    %v2940 = vunpack.c.h.b16 %v2744
    %v2941 = vunpack.c.l.b16 %v2745
    %v2942 = vunpack.c.h.b16 %v2745
    %v2943 = vunpack.c.l.b16 %v2746
    %v2944 = vunpack.c.h.b16 %v2746
    %v2945 = vunpack.c.l.b16 %v2747
    %v2946 = vunpack.c.h.b16 %v2747
    %v2947 = vunpack.c.l.b16 %v2748
    %v2948 = vunpack.c.h.b16 %v2748
    %v2949 = vunpack.c.l.b16 %v2749
    %v2950 = vunpack.c.h.b16 %v2749
    %v2951 = vunpack.c.l.b16 %v2750
    %v2952 = vunpack.c.h.b16 %v2750
    %v2953 = vunpack.c.l.b16 %v2751
    %v2954 = vunpack.c.h.b16 %v2751
    %v2955 = vunpack.c.l.b16 %v2752
    %v2956 = vunpack.c.h.b16 %v2752
    %v2957 = vunpack.c.l.b16 %v2753
    %v2958 = vunpack.c.h.b16 %v2753
    %v2959 = vunpack.c.l.b16 %v2754
    %v2960 = vunpack.c.h.b16 %v2754
    %v2961 = vunpack.c.l.b16 %v2755
    %v2962 = vunpack.c.h.b16 %v2755
    %v2963 = vunpack.c.l.b16 %v2756
    %v2964 = vunpack.c.h.b16 %v2756
    %v2965 = vunpack.c.l.b16 %v2757
    %v2966 = vunpack.c.h.b16 %v2757
    %v2967 = vunpack.c.l.b16 %v2758
    %v2968 = vunpack.c.h.b16 %v2758
    %v2969 = vunpack.c.l.b16 %v2759
    %v2970 = vunpack.c.h.b16 %v2759
    %v2971 = vunpack.c.l.b16 %v2760
    %v2972 = vunpack.c.h.b16 %v2760
    %v2973 = vunpack.c.l.b16 %v2761
    %v2974 = vunpack.c.h.b16 %v2761
    %v2975 = vunpack.c.l.b16 %v2762
    %v2976 = vunpack.c.h.b16 %v2762
    %v2977 = vpack.c.b16 %v2853, %v2849
    %v2978 = vpack.c.b16 %v2854, %v2850
    %v2979 = vpack.c.b16 %v2855, %v2851
    %v2980 = vpack.c.b16 %v2856, %v2852
    %v2981 = vpack.c.b16 %v2861, %v2857
    %v2982 = vpack.c.b16 %v2862, %v2858
    %v2983 = vpack.c.b16 %v2863, %v2859
    %v2984 = vpack.c.b16 %v2864, %v2860
    %v2985 = vpack.c.b16 %v2869, %v2865
    %v2986 = vpack.c.b16 %v2870, %v2866
    %v2987 = vpack.c.b16 %v2871, %v2867
    %v2988 = vpack.c.b16 %v2872, %v2868
    %v2989 = vpack.c.b16 %v2877, %v2873
    %v2990 = vpack.c.b16 %v2878, %v2874
    %v2991 = vpack.c.b16 %v2879, %v2875
    %v2992 = vpack.c.b16 %v2880, %v2876
    %v2993 = vpack.c.b16 %v2885, %v2881
    %v2994 = vpack.c.b16 %v2886, %v2882
    %v2995 = vpack.c.b16 %v2887, %v2883
    %v2996 = vpack.c.b16 %v2888, %v2884
    %v2997 = vpack.c.b16 %v2893, %v2889
    %v2998 = vpack.c.b16 %v2894, %v2890
    %v2999 = vpack.c.b16 %v2895, %v2891
    %v3000 = vpack.c.b16 %v2896, %v2892
    %v3001 = vpack.c.b16 %v2901, %v2897
    %v3002 = vpack.c.b16 %v2902, %v2898
    %v3003 = vpack.c.b16 %v2903, %v2899
    %v3004 = vpack.c.b16 %v2904, %v2900
    %v3005 = vpack.c.b16 %v2909, %v2905
    %v3006 = vpack.c.b16 %v2910, %v2906
    %v3007 = vpack.c.b16 %v2911, %v2907
    %v3008 = vpack.c.b16 %v2912, %v2908
    %v3009 = vpack.c.b16 %v2917, %v2913
    %v3010 = vpack.c.b16 %v2918, %v2914
    %v3011 = vpack.c.b16 %v2919, %v2915
    %v3012 = vpack.c.b16 %v2920, %v2916
    %v3013 = vpack.c.b16 %v2925, %v2921
    %v3014 = vpack.c.b16 %v2926, %v2922
    %v3015 = vpack.c.b16 %v2927, %v2923
    %v3016 = vpack.c.b16 %v2928, %v2924
    %v3017 = vpack.c.b16 %v2933, %v2929
    %v3018 = vpack.c.b16 %v2934, %v2930
    %v3019 = vpack.c.b16 %v2935, %v2931
    %v3020 = vpack.c.b16 %v2936, %v2932
    %v3021 = vpack.c.b16 %v2941, %v2937
    %v3022 = vpack.c.b16 %v2942, %v2938
    %v3023 = vpack.c.b16 %v2943, %v2939
    %v3024 = vpack.c.b16 %v2944, %v2940
    %v3025 = vpack.c.b16 %v2949, %v2945
    %v3026 = vpack.c.b16 %v2950, %v2946
    %v3027 = vpack.c.b16 %v2951, %v2947
    %v3028 = vpack.c.b16 %v2952, %v2948
    %v3029 = vpack.c.b16 %v2957, %v2953
    %v3030 = vpack.c.b16 %v2958, %v2954
    %v3031 = vpack.c.b16 %v2959, %v2955
    %v3032 = vpack.c.b16 %v2960, %v2956
    %v3033 = vpack.c.b16 %v2965, %v2961
    %v3034 = vpack.c.b16 %v2966, %v2962
    %v3035 = vpack.c.b16 %v2967, %v2963
    %v3036 = vpack.c.b16 %v2968, %v2964
    %v3037 = vpack.c.b16 %v2973, %v2969
    %v3038 = vpack.c.b16 %v2974, %v2970
    %v3039 = vpack.c.b16 %v2975, %v2971
    %v3040 = vpack.c.b16 %v2976, %v2972
    %3105 = vmatprep.subr.bf16.mxu0 %v2978
    %3106 = vmatpush1.bf16.msra.mxu0 %v2977
    %3107 = vmatprep.subr.bf16.mxu0 %v2982
    %3108 = vmatpush1.bf16.msra.mxu0 %v2981
    %3109 = vmatprep.subr.bf16.mxu0 %v2986
    %3110 = vmatpush1.bf16.msra.mxu0 %v2985
    %3111 = vmatprep.subr.bf16.mxu0 %v2990
    %3112 = vmatpush1.bf16.msra.mxu0 %v2989
    %3113 = vmatprep.subr.bf16.mxu0 %v2994
    %3114 = vmatpush1.bf16.msra.mxu0 %v2993
    %3115 = vmatprep.subr.bf16.mxu0 %v2998
    %3116 = vmatpush1.bf16.msra.mxu0 %v2997
    %3117 = vmatprep.subr.bf16.mxu0 %v3002
    %3118 = vmatpush1.bf16.msra.mxu0 %v3001
    %3119 = vmatprep.subr.bf16.mxu0 %v3006
    %3120 = vmatpush1.bf16.msra.mxu0 %v3005
    %3121 = vmatprep.subr.bf16.mxu0 %v3010
    %3122 = vmatpush1.bf16.msra.mxu0 %v3009
    %3123 = vmatprep.subr.bf16.mxu0 %v3014
    %3124 = vmatpush1.bf16.msra.mxu0 %v3013
    %3125 = vmatprep.subr.bf16.mxu0 %v3018
    %3126 = vmatpush1.bf16.msra.mxu0 %v3017
    %3127 = vmatprep.subr.bf16.mxu0 %v3022
    %3128 = vmatpush1.bf16.msra.mxu0 %v3021
    %3129 = vmatprep.subr.bf16.mxu0 %v3026
    %3130 = vmatpush1.bf16.msra.mxu0 %v3025
    %3131 = vmatprep.subr.bf16.mxu0 %v3030
    %3132 = vmatpush1.bf16.msra.mxu0 %v3029
    %3133 = vmatprep.subr.bf16.mxu0 %v3034
    %3134 = vmatpush1.bf16.msra.mxu0 %v3033
    %3135 = vmatprep.subr.bf16.mxu0 %v3038
    %3136 = vmatpush1.bf16.msra.mxu0 %v3037
    %3137 = vmatprep.mubr.bf16.mxu0 %v2698
    %3138 = vmatmul.mubr.bf16.gmra.mrb[0].mxu0 %v2697
    %v3139 = vpop.f32.mrb[0].mxu0
    %v3140 = vadd.f32 %v2768, %v3139
    %v3141 = vpop.f32.mrb[0].mxu0
    %v3142 = vadd.f32 %v2772, %v3141
    %v3143 = vpop.f32.mrb[0].mxu0
    %v3144 = vpop.f32.mrb[0].mxu0
    %3145 = vdwg.mxu0
    %3146 = vmatprep.subr.bf16.mxu0 %v2980
    %3147 = vmatpush1.bf16.msra.mxu0 %v2979
    %3148 = vmatprep.subr.bf16.mxu0 %v2984
    %3149 = vmatpush1.bf16.msra.mxu0 %v2983
    %3150 = vmatprep.subr.bf16.mxu0 %v2988
    %3151 = vmatpush1.bf16.msra.mxu0 %v2987
    %3152 = vmatprep.subr.bf16.mxu0 %v2992
    %3153 = vmatpush1.bf16.msra.mxu0 %v2991
    %3154 = vmatprep.subr.bf16.mxu0 %v2996
    %3155 = vmatpush1.bf16.msra.mxu0 %v2995
    %3156 = vmatprep.subr.bf16.mxu0 %v3000
    %3157 = vmatpush1.bf16.msra.mxu0 %v2999
    %3158 = vmatprep.subr.bf16.mxu0 %v3004
    %3159 = vmatpush1.bf16.msra.mxu0 %v3003
    %3160 = vmatprep.subr.bf16.mxu0 %v3008
    %3161 = vmatpush1.bf16.msra.mxu0 %v3007
    %3162 = vmatprep.subr.bf16.mxu0 %v3012
    %3163 = vmatpush1.bf16.msra.mxu0 %v3011
    %3164 = vmatprep.subr.bf16.mxu0 %v3016
    %3165 = vmatpush1.bf16.msra.mxu0 %v3015
    %3166 = vmatprep.subr.bf16.mxu0 %v3020
    %3167 = vmatpush1.bf16.msra.mxu0 %v3019
    %3168 = vmatprep.subr.bf16.mxu0 %v3024
    %3169 = vmatpush1.bf16.msra.mxu0 %v3023
    %3170 = vmatprep.subr.bf16.mxu0 %v3028
    %3171 = vmatpush1.bf16.msra.mxu0 %v3027
    %3172 = vmatprep.subr.bf16.mxu0 %v3032
    %3173 = vmatpush1.bf16.msra.mxu0 %v3031
    %3174 = vmatprep.subr.bf16.mxu0 %v3036
    %3175 = vmatpush1.bf16.msra.mxu0 %v3035
    %3176 = vmatprep.subr.bf16.mxu0 %v3040
    %3177 = vmatpush1.bf16.msra.mxu0 %v3039
    %3178 = vmatprep.mubr.bf16.mxu0 %v2698
    %3179 = vmatmul.mubr.bf16.gmra.mrb[0].mxu0 %v2697
    %v3180 = vpop.f32.mrb[0].mxu0
    %v3181 = vadd.f32 %v2776, %v3180
    %v3182 = vpop.f32.mrb[0].mxu0
    %v3183 = vadd.f32 %v2780, %v3182
    %v3184 = vpop.f32.mrb[0].mxu0
    %v3185 = vpop.f32.mrb[0].mxu0
    %3186 = vdwg.mxu0
    %v3187 = vmax.f32 %v3140, 0.0
    %v3188 = vmax.f32 %v3142, 0.0
    %v3189 = vmax.f32 %v3181, 0.0
    %v3190 = vmax.f32 %v3183, 0.0
    %v3191 = vpack.c.bf16 %v3187, %v3187
    %v3192 = vpack.c.bf16 %v3188, %v3188
    %v3193 = vpack.c.bf16 %v3189, %v3189
    %v3194 = vpack.c.bf16 %v3190, %v3190
    %v3195 = vld [vmem:[#allocation7] sm:$0xff]
    %v3196 = vld [vmem:[#allocation7 + $0x8] sm:$0xff]
    %v3197 = vld [vmem:[#allocation7 + $0x10] sm:$0xff]
    %v3198 = vld [vmem:[#allocation7 + $0x18] sm:$0xf]
    %v3199 = vld [vmem:[#allocation7 + $0x1c] sm:$0xff]
    %v3200 = vld [vmem:[#allocation7 + $0x24] sm:$0xff]
    %v3201 = vld [vmem:[#allocation7 + $0x2c] sm:$0xff]
    %v3202 = vld [vmem:[#allocation7 + $0x34] sm:$0xf]
    %v3203 = vld [vmem:[#allocation7 + $0x38] sm:$0xff]
    %v3204 = vld [vmem:[#allocation7 + $0x40] sm:$0xff]
    %v3205 = vld [vmem:[#allocation7 + $0x48] sm:$0xff]
    %v3206 = vld [vmem:[#allocation7 + $0x50] sm:$0xf]
    %v3207 = vld [vmem:[#allocation7 + $0x54] sm:$0xff]
    %v3208 = vld [vmem:[#allocation7 + $0x5c] sm:$0xff]
    %v3209 = vld [vmem:[#allocation7 + $0x64] sm:$0xff]
    %v3210 = vld [vmem:[#allocation7 + $0x6c] sm:$0xf]
    %v3211 = vld [vmem:[#allocation7 + $0x70] sm:$0xff]
    %v3212 = vld [vmem:[#allocation7 + $0x78] sm:$0xff]
    %v3213 = vld [vmem:[#allocation7 + $0x80] sm:$0xff]
    %v3214 = vld [vmem:[#allocation7 + $0x88] sm:$0xf]
    %v3215 = vld [vmem:[#allocation7 + $0x8c] sm:$0xff]
    %v3216 = vld [vmem:[#allocation7 + $0x94] sm:$0xff]
    %v3217 = vld [vmem:[#allocation7 + $0x9c] sm:$0xff]
    %v3218 = vld [vmem:[#allocation7 + $0xa4] sm:$0xf]
    %v3219 = vld [vmem:[#allocation7 + $0xa8] sm:$0xff]
    %v3220 = vld [vmem:[#allocation7 + $0xb0] sm:$0xff]
    %v3221 = vld [vmem:[#allocation7 + $0xb8] sm:$0xff]
    %v3222 = vld [vmem:[#allocation7 + $0xc0] sm:$0xf]
    %v3223 = vld [vmem:[#allocation7 + $0xc4] sm:$0xff]
    %v3224 = vld [vmem:[#allocation7 + $0xcc] sm:$0xff]
    %v3225 = vld [vmem:[#allocation7 + $0xd4] sm:$0xff]
    %v3226 = vld [vmem:[#allocation7 + $0xdc] sm:$0xf]
    %v3227 = vld [vmem:[#allocation7 + $0xe0] sm:$0xff]
    %v3228 = vld [vmem:[#allocation7 + $0xe8] sm:$0xff]
    %v3229 = vld [vmem:[#allocation7 + $0xf0] sm:$0xff]
    %v3230 = vld [vmem:[#allocation7 + $0xf8] sm:$0xf]
    %v3231 = vld [vmem:[#allocation7 + $0xfc] sm:$0xff]
    %v3232 = vld [vmem:[#allocation7 + $0x104] sm:$0xff]
    %v3233 = vld [vmem:[#allocation7 + $0x10c] sm:$0xff]
    %v3234 = vld [vmem:[#allocation7 + $0x114] sm:$0xf]
    %v3235 = vld [vmem:[#allocation7 + $0x118] sm:$0xff]
    %v3236 = vld [vmem:[#allocation7 + $0x120] sm:$0xff]
    %v3237 = vld [vmem:[#allocation7 + $0x128] sm:$0xff]
    %v3238 = vld [vmem:[#allocation7 + $0x130] sm:$0xf]
    %v3239 = vld [vmem:[#allocation7 + $0x134] sm:$0xff]
    %v3240 = vld [vmem:[#allocation7 + $0x13c] sm:$0xff]
    %v3241 = vld [vmem:[#allocation7 + $0x144] sm:$0xff]
    %v3242 = vld [vmem:[#allocation7 + $0x14c] sm:$0xf]
    %v3243 = vld [vmem:[#allocation7 + $0x150] sm:$0xff]
    %v3244 = vld [vmem:[#allocation7 + $0x158] sm:$0xff]
    %v3245 = vld [vmem:[#allocation7 + $0x160] sm:$0xff]
    %v3246 = vld [vmem:[#allocation7 + $0x168] sm:$0xf]
    %v3247 = vld [vmem:[#allocation7 + $0x16c] sm:$0xff]
    %v3248 = vld [vmem:[#allocation7 + $0x174] sm:$0xff]
    %v3249 = vld [vmem:[#allocation7 + $0x17c] sm:$0xff]
    %v3250 = vld [vmem:[#allocation7 + $0x184] sm:$0xf]
    %v3251 = vld [vmem:[#allocation7 + $0x188] sm:$0xff]
    %v3252 = vld [vmem:[#allocation7 + $0x190] sm:$0xff]
    %v3253 = vld [vmem:[#allocation7 + $0x198] sm:$0xff]
    %v3254 = vld [vmem:[#allocation7 + $0x1a0] sm:$0xf]
    %v3255 = vld [vmem:[#allocation7 + $0x1a4] sm:$0xff]
    %v3256 = vld [vmem:[#allocation7 + $0x1ac] sm:$0xff]
    %v3257 = vld [vmem:[#allocation7 + $0x1b4] sm:$0xff]
    %v3258 = vld [vmem:[#allocation7 + $0x1bc] sm:$0xf]
    %v3259 = vld [vmem:[#allocation7 + $0x1c0] sm:$0xff]
    %v3260 = vld [vmem:[#allocation7 + $0x1c8] sm:$0xff]
    %v3261 = vld [vmem:[#allocation7 + $0x1d0] sm:$0xff]
    %v3262 = vld [vmem:[#allocation7 + $0x1d8] sm:$0xf]
    %v3263 = vld [vmem:[#allocation7 + $0x1dc] sm:$0xff]
    %v3264 = vld [vmem:[#allocation7 + $0x1e4] sm:$0xff]
    %v3265 = vld [vmem:[#allocation7 + $0x1ec] sm:$0xff]
    %v3266 = vld [vmem:[#allocation7 + $0x1f4] sm:$0xf]
    %v3267 = vld [vmem:[#allocation7 + $0x1f8] sm:$0xff]
    %v3268 = vld [vmem:[#allocation7 + $0x200] sm:$0xff]
    %v3269 = vld [vmem:[#allocation7 + $0x208] sm:$0xff]
    %v3270 = vld [vmem:[#allocation7 + $0x210] sm:$0xf]
    %v3271 = vld [vmem:[#allocation7 + $0x214] sm:$0xff]
    %v3272 = vld [vmem:[#allocation7 + $0x21c] sm:$0xff]
    %v3273 = vld [vmem:[#allocation7 + $0x224] sm:$0xff]
    %v3274 = vld [vmem:[#allocation7 + $0x22c] sm:$0xf]
    %v3275 = vld [vmem:[#allocation7 + $0x230] sm:$0xff]
    %v3276 = vld [vmem:[#allocation7 + $0x238] sm:$0xff]
    %v3277 = vld [vmem:[#allocation7 + $0x240] sm:$0xff]
    %v3278 = vld [vmem:[#allocation7 + $0x248] sm:$0xf]
    %v3279 = vld [vmem:[#allocation7 + $0x24c] sm:$0xff]
    %v3280 = vld [vmem:[#allocation7 + $0x254] sm:$0xff]
    %v3281 = vld [vmem:[#allocation7 + $0x25c] sm:$0xff]
    %v3282 = vld [vmem:[#allocation7 + $0x264] sm:$0xf]
    %v3283 = vld [vmem:[#allocation7 + $0x268] sm:$0xff]
    %v3284 = vld [vmem:[#allocation7 + $0x270] sm:$0xff]
    %v3285 = vld [vmem:[#allocation7 + $0x278] sm:$0xff]
    %v3286 = vld [vmem:[#allocation7 + $0x280] sm:$0xf]
    %v3287 = vld [vmem:[#allocation7 + $0x284] sm:$0xff]
    %v3288 = vld [vmem:[#allocation7 + $0x28c] sm:$0xff]
    %v3289 = vld [vmem:[#allocation7 + $0x294] sm:$0xff]
    %v3290 = vld [vmem:[#allocation7 + $0x29c] sm:$0xf]
    %v3291 = vld [vmem:[#allocation7 + $0x2a0] sm:$0xff]
    %v3292 = vld [vmem:[#allocation7 + $0x2a8] sm:$0xff]
    %v3293 = vld [vmem:[#allocation7 + $0x2b0] sm:$0xff]
    %v3294 = vld [vmem:[#allocation7 + $0x2b8] sm:$0xf]
    %v3295 = vld [vmem:[#allocation7 + $0x2bc] sm:$0xff]
    %v3296 = vld [vmem:[#allocation7 + $0x2c4] sm:$0xff]
    %v3297 = vld [vmem:[#allocation7 + $0x2cc] sm:$0xff]
    %v3298 = vld [vmem:[#allocation7 + $0x2d4] sm:$0xf]
    %v3299 = vld [vmem:[#allocation7 + $0x2d8] sm:$0xff]
    %v3300 = vld [vmem:[#allocation7 + $0x2e0] sm:$0xff]
    %v3301 = vld [vmem:[#allocation7 + $0x2e8] sm:$0xff]
    %v3302 = vld [vmem:[#allocation7 + $0x2f0] sm:$0xf]
    %v3303 = vld [vmem:[#allocation7 + $0x2f4] sm:$0xff]
    %v3304 = vld [vmem:[#allocation7 + $0x2fc] sm:$0xff]
    %v3305 = vld [vmem:[#allocation7 + $0x304] sm:$0xff]
    %v3306 = vld [vmem:[#allocation7 + $0x30c] sm:$0xf]
    %v3307 = vld [vmem:[#allocation7 + $0x310] sm:$0xff]
    %v3308 = vld [vmem:[#allocation7 + $0x318] sm:$0xff]
    %v3309 = vld [vmem:[#allocation7 + $0x320] sm:$0xff]
    %v3310 = vld [vmem:[#allocation7 + $0x328] sm:$0xf]
    %v3311 = vld [vmem:[#allocation7 + $0x32c] sm:$0xff]
    %v3312 = vld [vmem:[#allocation7 + $0x334] sm:$0xff]
    %v3313 = vld [vmem:[#allocation7 + $0x33c] sm:$0xff]
    %v3314 = vld [vmem:[#allocation7 + $0x344] sm:$0xf]
    %v3315 = vld [vmem:[#allocation7 + $0x348] sm:$0xff]
    %v3316 = vld [vmem:[#allocation7 + $0x350] sm:$0xff]
    %v3317 = vld [vmem:[#allocation7 + $0x358] sm:$0xff]
    %v3318 = vld [vmem:[#allocation7 + $0x360] sm:$0xf]
    %v3319 = vld [vmem:[#allocation7 + $0x364] sm:$0xff]
    %v3320 = vld [vmem:[#allocation7 + $0x36c] sm:$0xff]
    %v3321 = vld [vmem:[#allocation7 + $0x374] sm:$0xff]
    %v3322 = vld [vmem:[#allocation7 + $0x37c] sm:$0xf]
    %v3323 = vld [vmem:[#allocation7 + $0x380] sm:$0xff]
    %v3324 = vld [vmem:[#allocation7 + $0x388] sm:$0xff]
    %v3325 = vld [vmem:[#allocation7 + $0x390] sm:$0xff]
    %v3326 = vld [vmem:[#allocation7 + $0x398] sm:$0xf]
    %v3327 = vld [vmem:[#allocation7 + $0x39c] sm:$0xff]
    %v3328 = vld [vmem:[#allocation7 + $0x3a4] sm:$0xff]
    %v3329 = vld [vmem:[#allocation7 + $0x3ac] sm:$0xff]
    %v3330 = vld [vmem:[#allocation7 + $0x3b4] sm:$0xf]
    %v3331 = vld [vmem:[#allocation7 + $0x3b8] sm:$0xff]
    %v3332 = vld [vmem:[#allocation7 + $0x3c0] sm:$0xff]
    %v3333 = vld [vmem:[#allocation7 + $0x3c8] sm:$0xff]
    %v3334 = vld [vmem:[#allocation7 + $0x3d0] sm:$0xf]
    %v3335 = vld [vmem:[#allocation7 + $0x3d4] sm:$0xff]
    %v3336 = vld [vmem:[#allocation7 + $0x3dc] sm:$0xff]
    %v3337 = vld [vmem:[#allocation7 + $0x3e4] sm:$0xff]
    %v3338 = vld [vmem:[#allocation7 + $0x3ec] sm:$0xf]
    %v3339 = vld [vmem:[#allocation7 + $0x3f0] sm:$0xff]
    %v3340 = vld [vmem:[#allocation7 + $0x3f8] sm:$0xff]
    %v3341 = vld [vmem:[#allocation7 + $0x400] sm:$0xff]
    %v3342 = vld [vmem:[#allocation7 + $0x408] sm:$0xf]
    %v3343 = vld [vmem:[#allocation7 + $0x40c] sm:$0xff]
    %v3344 = vld [vmem:[#allocation7 + $0x414] sm:$0xff]
    %v3345 = vld [vmem:[#allocation7 + $0x41c] sm:$0xff]
    %v3346 = vld [vmem:[#allocation7 + $0x424] sm:$0xf]
    %v3347 = vld [vmem:[#allocation7 + $0x428] sm:$0xff]
    %v3348 = vld [vmem:[#allocation7 + $0x430] sm:$0xff]
    %v3349 = vld [vmem:[#allocation7 + $0x438] sm:$0xff]
    %v3350 = vld [vmem:[#allocation7 + $0x440] sm:$0xf]
    %v3351 = vld [vmem:[#allocation7 + $0x444] sm:$0xff]
    %v3352 = vld [vmem:[#allocation7 + $0x44c] sm:$0xff]
    %v3353 = vld [vmem:[#allocation7 + $0x454] sm:$0xff]
    %v3354 = vld [vmem:[#allocation7 + $0x45c] sm:$0xf]
    %v3355 = vld [vmem:[#allocation7 + $0x460] sm:$0xff]
    %v3356 = vld [vmem:[#allocation7 + $0x468] sm:$0xff]
    %v3357 = vld [vmem:[#allocation7 + $0x470] sm:$0xff]
    %v3358 = vld [vmem:[#allocation7 + $0x478] sm:$0xf]
    %v3359 = vld [vmem:[#allocation7 + $0x47c] sm:$0xff]
    %v3360 = vld [vmem:[#allocation7 + $0x484] sm:$0xff]
    %v3361 = vld [vmem:[#allocation7 + $0x48c] sm:$0xff]
    %v3362 = vld [vmem:[#allocation7 + $0x494] sm:$0xf]
    %v3363 = vld [vmem:[#allocation7 + $0x498] sm:$0xff]
    %v3364 = vld [vmem:[#allocation7 + $0x4a0] sm:$0xff]
    %v3365 = vld [vmem:[#allocation7 + $0x4a8] sm:$0xff]
    %v3366 = vld [vmem:[#allocation7 + $0x4b0] sm:$0xf]
    %v3367 = vld [vmem:[#allocation7 + $0x4b4] sm:$0xff]
    %v3368 = vld [vmem:[#allocation7 + $0x4bc] sm:$0xff]
    %v3369 = vld [vmem:[#allocation7 + $0x4c4] sm:$0xff]
    %v3370 = vld [vmem:[#allocation7 + $0x4cc] sm:$0xf]
    %v3371 = vld [vmem:[#allocation7 + $0x4d0] sm:$0xff]
    %v3372 = vld [vmem:[#allocation7 + $0x4d8] sm:$0xff]
    %v3373 = vld [vmem:[#allocation7 + $0x4e0] sm:$0xff]
    %v3374 = vld [vmem:[#allocation7 + $0x4e8] sm:$0xf]
    %v3375 = vld [vmem:[#allocation7 + $0x4ec] sm:$0xff]
    %v3376 = vld [vmem:[#allocation7 + $0x4f4] sm:$0xff]
    %v3377 = vld [vmem:[#allocation7 + $0x4fc] sm:$0xff]
    %v3378 = vld [vmem:[#allocation7 + $0x504] sm:$0xf]
    %v3379 = vld [vmem:[#allocation7 + $0x508] sm:$0xff]
    %v3380 = vld [vmem:[#allocation7 + $0x510] sm:$0xff]
    %v3381 = vld [vmem:[#allocation7 + $0x518] sm:$0xff]
    %v3382 = vld [vmem:[#allocation7 + $0x520] sm:$0xf]
    %v3383 = vld [vmem:[#allocation7 + $0x524] sm:$0xff]
    %v3384 = vld [vmem:[#allocation7 + $0x52c] sm:$0xff]
    %v3385 = vld [vmem:[#allocation7 + $0x534] sm:$0xff]
    %v3386 = vld [vmem:[#allocation7 + $0x53c] sm:$0xf]
    %v3387 = vld [vmem:[#allocation7 + $0x540] sm:$0xff]
    %v3388 = vld [vmem:[#allocation7 + $0x548] sm:$0xff]
    %v3389 = vld [vmem:[#allocation7 + $0x550] sm:$0xff]
    %v3390 = vld [vmem:[#allocation7 + $0x558] sm:$0xf]
    %v3391 = vld [vmem:[#allocation7 + $0x55c] sm:$0xff]
    %v3392 = vld [vmem:[#allocation7 + $0x564] sm:$0xff]
    %v3393 = vld [vmem:[#allocation7 + $0x56c] sm:$0xff]
    %v3394 = vld [vmem:[#allocation7 + $0x574] sm:$0xf]
    %v3395 = vld [vmem:[#allocation7 + $0x578] sm:$0xff]
    %v3396 = vld [vmem:[#allocation7 + $0x580] sm:$0xff]
    %v3397 = vld [vmem:[#allocation7 + $0x588] sm:$0xff]
    %v3398 = vld [vmem:[#allocation7 + $0x590] sm:$0xf]
    %v3399 = vld [vmem:[#allocation7 + $0x594] sm:$0xff]
    %v3400 = vld [vmem:[#allocation7 + $0x59c] sm:$0xff]
    %v3401 = vld [vmem:[#allocation7 + $0x5a4] sm:$0xff]
    %v3402 = vld [vmem:[#allocation7 + $0x5ac] sm:$0xf]
    %v3403 = vld [vmem:[#allocation7 + $0x5b0] sm:$0xff]
    %v3404 = vld [vmem:[#allocation7 + $0x5b8] sm:$0xff]
    %v3405 = vld [vmem:[#allocation7 + $0x5c0] sm:$0xff]
    %v3406 = vld [vmem:[#allocation7 + $0x5c8] sm:$0xf]
    %v3407 = vld [vmem:[#allocation7 + $0x5cc] sm:$0xff]
    %v3408 = vld [vmem:[#allocation7 + $0x5d4] sm:$0xff]
    %v3409 = vld [vmem:[#allocation7 + $0x5dc] sm:$0xff]
    %v3410 = vld [vmem:[#allocation7 + $0x5e4] sm:$0xf]
    %v3411 = vld [vmem:[#allocation7 + $0x5e8] sm:$0xff]
    %v3412 = vld [vmem:[#allocation7 + $0x5f0] sm:$0xff]
    %v3413 = vld [vmem:[#allocation7 + $0x5f8] sm:$0xff]
    %v3414 = vld [vmem:[#allocation7 + $0x600] sm:$0xf]
    %v3415 = vld [vmem:[#allocation7 + $0x604] sm:$0xff]
    %v3416 = vld [vmem:[#allocation7 + $0x60c] sm:$0xff]
    %v3417 = vld [vmem:[#allocation7 + $0x614] sm:$0xff]
    %v3418 = vld [vmem:[#allocation7 + $0x61c] sm:$0xf]
    %v3419 = vld [vmem:[#allocation7 + $0x620] sm:$0xff]
    %v3420 = vld [vmem:[#allocation7 + $0x628] sm:$0xff]
    %v3421 = vld [vmem:[#allocation7 + $0x630] sm:$0xff]
    %v3422 = vld [vmem:[#allocation7 + $0x638] sm:$0xf]
    %v3423 = vld [vmem:[#allocation7 + $0x63c] sm:$0xff]
    %v3424 = vld [vmem:[#allocation7 + $0x644] sm:$0xff]
    %v3425 = vld [vmem:[#allocation7 + $0x64c] sm:$0xff]
    %v3426 = vld [vmem:[#allocation7 + $0x654] sm:$0xf]
    %v3427 = vld [vmem:[#allocation7 + $0x658] sm:$0xff]
    %v3428 = vld [vmem:[#allocation7 + $0x660] sm:$0xff]
    %v3429 = vld [vmem:[#allocation7 + $0x668] sm:$0xff]
    %v3430 = vld [vmem:[#allocation7 + $0x670] sm:$0xf]
    %v3431 = vld [vmem:[#allocation7 + $0x674] sm:$0xff]
    %v3432 = vld [vmem:[#allocation7 + $0x67c] sm:$0xff]
    %v3433 = vld [vmem:[#allocation7 + $0x684] sm:$0xff]
    %v3434 = vld [vmem:[#allocation7 + $0x68c] sm:$0xf]
    %v3435 = vld [vmem:[#allocation7 + $0x690] sm:$0xff]
    %v3436 = vld [vmem:[#allocation7 + $0x698] sm:$0xff]
    %v3437 = vld [vmem:[#allocation7 + $0x6a0] sm:$0xff]
    %v3438 = vld [vmem:[#allocation7 + $0x6a8] sm:$0xf]
    %v3439 = vld [vmem:[#allocation7 + $0x6ac] sm:$0xff]
    %v3440 = vld [vmem:[#allocation7 + $0x6b4] sm:$0xff]
    %v3441 = vld [vmem:[#allocation7 + $0x6bc] sm:$0xff]
    %v3442 = vld [vmem:[#allocation7 + $0x6c4] sm:$0xf]
    %v3443 = vld [vmem:[#allocation7 + $0x6c8] sm:$0xff]
    %v3444 = vld [vmem:[#allocation7 + $0x6d0] sm:$0xff]
    %v3445 = vld [vmem:[#allocation7 + $0x6d8] sm:$0xff]
    %v3446 = vld [vmem:[#allocation7 + $0x6e0] sm:$0xf]
    %v3447 = vld [vmem:[#allocation7 + $0x6e4] sm:$0xff]
    %v3448 = vld [vmem:[#allocation7 + $0x6ec] sm:$0xff]
    %v3449 = vld [vmem:[#allocation7 + $0x6f4] sm:$0xff]
    %v3450 = vld [vmem:[#allocation7 + $0x6fc] sm:$0xf]
    %v3451 = vld [vmem:[%s13] sm:$0xff]
    %v3453 = vlaneseq
    %v3454 = vshrl.u32 %v3453, 7
    %v3455 = vsub.s32 0, %v3454
    %v3456 = vrot.slane %v3451, %v3455
    %v3457 = vlaneseq
    %v3458 = vshrl.u32 %v3457, 7
    %v3459 = vsub.s32 1, %v3458
    %v3460 = vrot.slane %v3451, %v3459
    %v3461 = vlaneseq
    %v3462 = vshrl.u32 %v3461, 7
    %v3463 = vsub.s32 2, %v3462
    %v3464 = vrot.slane %v3451, %v3463
    %v3465 = vlaneseq
    %v3466 = vshrl.u32 %v3465, 7
    %v3467 = vsub.s32 3, %v3466
    %v3468 = vrot.slane %v3451, %v3467
    %v3469 = vlaneseq
    %v3470 = vshrl.u32 %v3469, 7
    %v3471 = vsub.s32 4, %v3470
    %v3472 = vrot.slane %v3451, %v3471
    %v3473 = vlaneseq
    %v3474 = vshrl.u32 %v3473, 7
    %v3475 = vsub.s32 5, %v3474
    %v3476 = vrot.slane %v3451, %v3475
    %v3477 = vlaneseq
    %v3478 = vshrl.u32 %v3477, 7
    %v3479 = vsub.s32 6, %v3478
    %v3480 = vrot.slane %v3451, %v3479
    %v3744 = vunpack.c.l.b16 %v3195
    %v3745 = vunpack.c.h.b16 %v3195
    %v3746 = vunpack.c.l.b16 %v3196
    %v3747 = vunpack.c.h.b16 %v3196
    %v3748 = vunpack.c.l.b16 %v3197
    %v3749 = vunpack.c.h.b16 %v3197
    %v3750 = vunpack.c.l.b16 %v3198
    %v3751 = vunpack.c.l.b16 %v3199
    %v3752 = vunpack.c.h.b16 %v3199
    %v3753 = vunpack.c.l.b16 %v3200
    %v3754 = vunpack.c.h.b16 %v3200
    %v3755 = vunpack.c.l.b16 %v3201
    %v3756 = vunpack.c.h.b16 %v3201
    %v3757 = vunpack.c.l.b16 %v3202
    %v3758 = vunpack.c.l.b16 %v3203
    %v3759 = vunpack.c.h.b16 %v3203
    %v3760 = vunpack.c.l.b16 %v3204
    %v3761 = vunpack.c.h.b16 %v3204
    %v3762 = vunpack.c.l.b16 %v3205
    %v3763 = vunpack.c.h.b16 %v3205
    %v3764 = vunpack.c.l.b16 %v3206
    %v3765 = vunpack.c.l.b16 %v3207
    %v3766 = vunpack.c.h.b16 %v3207
    %v3767 = vunpack.c.l.b16 %v3208
    %v3768 = vunpack.c.h.b16 %v3208
    %v3769 = vunpack.c.l.b16 %v3209
    %v3770 = vunpack.c.h.b16 %v3209
    %v3771 = vunpack.c.l.b16 %v3210
    %v3772 = vunpack.c.l.b16 %v3211
    %v3773 = vunpack.c.h.b16 %v3211
    %v3774 = vunpack.c.l.b16 %v3212
    %v3775 = vunpack.c.h.b16 %v3212
    %v3776 = vunpack.c.l.b16 %v3213
    %v3777 = vunpack.c.h.b16 %v3213
    %v3778 = vunpack.c.l.b16 %v3214
    %v3779 = vunpack.c.l.b16 %v3215
    %v3780 = vunpack.c.h.b16 %v3215
    %v3781 = vunpack.c.l.b16 %v3216
    %v3782 = vunpack.c.h.b16 %v3216
    %v3783 = vunpack.c.l.b16 %v3217
    %v3784 = vunpack.c.h.b16 %v3217
    %v3785 = vunpack.c.l.b16 %v3218
    %v3786 = vunpack.c.l.b16 %v3219
    %v3787 = vunpack.c.h.b16 %v3219
    %v3788 = vunpack.c.l.b16 %v3220
    %v3789 = vunpack.c.h.b16 %v3220
    %v3790 = vunpack.c.l.b16 %v3221
    %v3791 = vunpack.c.h.b16 %v3221
    %v3792 = vunpack.c.l.b16 %v3222
    %v3793 = vunpack.c.l.b16 %v3223
    %v3794 = vunpack.c.h.b16 %v3223
    %v3795 = vunpack.c.l.b16 %v3224
    %v3796 = vunpack.c.h.b16 %v3224
    %v3797 = vunpack.c.l.b16 %v3225
    %v3798 = vunpack.c.h.b16 %v3225
    %v3799 = vunpack.c.l.b16 %v3226
    %v3800 = vunpack.c.l.b16 %v3227
    %v3801 = vunpack.c.h.b16 %v3227
    %v3802 = vunpack.c.l.b16 %v3228
    %v3803 = vunpack.c.h.b16 %v3228
    %v3804 = vunpack.c.l.b16 %v3229
    %v3805 = vunpack.c.h.b16 %v3229
    %v3806 = vunpack.c.l.b16 %v3230
    %v3807 = vunpack.c.l.b16 %v3231
    %v3808 = vunpack.c.h.b16 %v3231
    %v3809 = vunpack.c.l.b16 %v3232
    %v3810 = vunpack.c.h.b16 %v3232
    %v3811 = vunpack.c.l.b16 %v3233
    %v3812 = vunpack.c.h.b16 %v3233
    %v3813 = vunpack.c.l.b16 %v3234
    %v3814 = vunpack.c.l.b16 %v3235
    %v3815 = vunpack.c.h.b16 %v3235
    %v3816 = vunpack.c.l.b16 %v3236
    %v3817 = vunpack.c.h.b16 %v3236
    %v3818 = vunpack.c.l.b16 %v3237
    %v3819 = vunpack.c.h.b16 %v3237
    %v3820 = vunpack.c.l.b16 %v3238
    %v3821 = vunpack.c.l.b16 %v3239
    %v3822 = vunpack.c.h.b16 %v3239
    %v3823 = vunpack.c.l.b16 %v3240
    %v3824 = vunpack.c.h.b16 %v3240
    %v3825 = vunpack.c.l.b16 %v3241
    %v3826 = vunpack.c.h.b16 %v3241
    %v3827 = vunpack.c.l.b16 %v3242
    %v3828 = vunpack.c.l.b16 %v3243
    %v3829 = vunpack.c.h.b16 %v3243
    %v3830 = vunpack.c.l.b16 %v3244
    %v3831 = vunpack.c.h.b16 %v3244
    %v3832 = vunpack.c.l.b16 %v3245
    %v3833 = vunpack.c.h.b16 %v3245
    %v3834 = vunpack.c.l.b16 %v3246
    %v3835 = vunpack.c.l.b16 %v3247
    %v3836 = vunpack.c.h.b16 %v3247
    %v3837 = vunpack.c.l.b16 %v3248
    %v3838 = vunpack.c.h.b16 %v3248
    %v3839 = vunpack.c.l.b16 %v3249
    %v3840 = vunpack.c.h.b16 %v3249
    %v3841 = vunpack.c.l.b16 %v3250
    %v3842 = vunpack.c.l.b16 %v3251
    %v3843 = vunpack.c.h.b16 %v3251
    %v3844 = vunpack.c.l.b16 %v3252
    %v3845 = vunpack.c.h.b16 %v3252
    %v3846 = vunpack.c.l.b16 %v3253
    %v3847 = vunpack.c.h.b16 %v3253
    %v3848 = vunpack.c.l.b16 %v3254
    %v3849 = vunpack.c.l.b16 %v3255
    %v3850 = vunpack.c.h.b16 %v3255
    %v3851 = vunpack.c.l.b16 %v3256
    %v3852 = vunpack.c.h.b16 %v3256
    %v3853 = vunpack.c.l.b16 %v3257
    %v3854 = vunpack.c.h.b16 %v3257
    %v3855 = vunpack.c.l.b16 %v3258
    %v3856 = vunpack.c.l.b16 %v3259
    %v3857 = vunpack.c.h.b16 %v3259
    %v3858 = vunpack.c.l.b16 %v3260
    %v3859 = vunpack.c.h.b16 %v3260
    %v3860 = vunpack.c.l.b16 %v3261
    %v3861 = vunpack.c.h.b16 %v3261
    %v3862 = vunpack.c.l.b16 %v3262
    %v3863 = vunpack.c.l.b16 %v3263
    %v3864 = vunpack.c.h.b16 %v3263
    %v3865 = vunpack.c.l.b16 %v3264
    %v3866 = vunpack.c.h.b16 %v3264
    %v3867 = vunpack.c.l.b16 %v3265
    %v3868 = vunpack.c.h.b16 %v3265
    %v3869 = vunpack.c.l.b16 %v3266
    %v3870 = vunpack.c.l.b16 %v3267
    %v3871 = vunpack.c.h.b16 %v3267
    %v3872 = vunpack.c.l.b16 %v3268
    %v3873 = vunpack.c.h.b16 %v3268
    %v3874 = vunpack.c.l.b16 %v3269
    %v3875 = vunpack.c.h.b16 %v3269
    %v3876 = vunpack.c.l.b16 %v3270
    %v3877 = vunpack.c.l.b16 %v3271
    %v3878 = vunpack.c.h.b16 %v3271
    %v3879 = vunpack.c.l.b16 %v3272
    %v3880 = vunpack.c.h.b16 %v3272
    %v3881 = vunpack.c.l.b16 %v3273
    %v3882 = vunpack.c.h.b16 %v3273
    %v3883 = vunpack.c.l.b16 %v3274
    %v3884 = vunpack.c.l.b16 %v3275
    %v3885 = vunpack.c.h.b16 %v3275
    %v3886 = vunpack.c.l.b16 %v3276
    %v3887 = vunpack.c.h.b16 %v3276
    %v3888 = vunpack.c.l.b16 %v3277
    %v3889 = vunpack.c.h.b16 %v3277
    %v3890 = vunpack.c.l.b16 %v3278
    %v3891 = vunpack.c.l.b16 %v3279
    %v3892 = vunpack.c.h.b16 %v3279
    %v3893 = vunpack.c.l.b16 %v3280
    %v3894 = vunpack.c.h.b16 %v3280
    %v3895 = vunpack.c.l.b16 %v3281
    %v3896 = vunpack.c.h.b16 %v3281
    %v3897 = vunpack.c.l.b16 %v3282
    %v3898 = vunpack.c.l.b16 %v3283
    %v3899 = vunpack.c.h.b16 %v3283
    %v3900 = vunpack.c.l.b16 %v3284
    %v3901 = vunpack.c.h.b16 %v3284
    %v3902 = vunpack.c.l.b16 %v3285
    %v3903 = vunpack.c.h.b16 %v3285
    %v3904 = vunpack.c.l.b16 %v3286
    %v3905 = vunpack.c.l.b16 %v3287
    %v3906 = vunpack.c.h.b16 %v3287
    %v3907 = vunpack.c.l.b16 %v3288
    %v3908 = vunpack.c.h.b16 %v3288
    %v3909 = vunpack.c.l.b16 %v3289
    %v3910 = vunpack.c.h.b16 %v3289
    %v3911 = vunpack.c.l.b16 %v3290
    %v3912 = vunpack.c.l.b16 %v3291
    %v3913 = vunpack.c.h.b16 %v3291
    %v3914 = vunpack.c.l.b16 %v3292
    %v3915 = vunpack.c.h.b16 %v3292
    %v3916 = vunpack.c.l.b16 %v3293
    %v3917 = vunpack.c.h.b16 %v3293
    %v3918 = vunpack.c.l.b16 %v3294
    %v3919 = vunpack.c.l.b16 %v3295
    %v3920 = vunpack.c.h.b16 %v3295
    %v3921 = vunpack.c.l.b16 %v3296
    %v3922 = vunpack.c.h.b16 %v3296
    %v3923 = vunpack.c.l.b16 %v3297
    %v3924 = vunpack.c.h.b16 %v3297
    %v3925 = vunpack.c.l.b16 %v3298
    %v3926 = vunpack.c.l.b16 %v3299
    %v3927 = vunpack.c.h.b16 %v3299
    %v3928 = vunpack.c.l.b16 %v3300
    %v3929 = vunpack.c.h.b16 %v3300
    %v3930 = vunpack.c.l.b16 %v3301
    %v3931 = vunpack.c.h.b16 %v3301
    %v3932 = vunpack.c.l.b16 %v3302
    %v3933 = vunpack.c.l.b16 %v3303
    %v3934 = vunpack.c.h.b16 %v3303
    %v3935 = vunpack.c.l.b16 %v3304
    %v3936 = vunpack.c.h.b16 %v3304
    %v3937 = vunpack.c.l.b16 %v3305
    %v3938 = vunpack.c.h.b16 %v3305
    %v3939 = vunpack.c.l.b16 %v3306
    %v3940 = vunpack.c.l.b16 %v3307
    %v3941 = vunpack.c.h.b16 %v3307
    %v3942 = vunpack.c.l.b16 %v3308
    %v3943 = vunpack.c.h.b16 %v3308
    %v3944 = vunpack.c.l.b16 %v3309
    %v3945 = vunpack.c.h.b16 %v3309
    %v3946 = vunpack.c.l.b16 %v3310
    %v3947 = vunpack.c.l.b16 %v3311
    %v3948 = vunpack.c.h.b16 %v3311
    %v3949 = vunpack.c.l.b16 %v3312
    %v3950 = vunpack.c.h.b16 %v3312
    %v3951 = vunpack.c.l.b16 %v3313
    %v3952 = vunpack.c.h.b16 %v3313
    %v3953 = vunpack.c.l.b16 %v3314
    %v3954 = vunpack.c.l.b16 %v3315
    %v3955 = vunpack.c.h.b16 %v3315
    %v3956 = vunpack.c.l.b16 %v3316
    %v3957 = vunpack.c.h.b16 %v3316
    %v3958 = vunpack.c.l.b16 %v3317
    %v3959 = vunpack.c.h.b16 %v3317
    %v3960 = vunpack.c.l.b16 %v3318
    %v3961 = vunpack.c.l.b16 %v3319
    %v3962 = vunpack.c.h.b16 %v3319
    %v3963 = vunpack.c.l.b16 %v3320
    %v3964 = vunpack.c.h.b16 %v3320
    %v3965 = vunpack.c.l.b16 %v3321
    %v3966 = vunpack.c.h.b16 %v3321
    %v3967 = vunpack.c.l.b16 %v3322
    %v3968 = vunpack.c.l.b16 %v3323
    %v3969 = vunpack.c.h.b16 %v3323
    %v3970 = vunpack.c.l.b16 %v3324
    %v3971 = vunpack.c.h.b16 %v3324
    %v3972 = vunpack.c.l.b16 %v3325
    %v3973 = vunpack.c.h.b16 %v3325
    %v3974 = vunpack.c.l.b16 %v3326
    %v3975 = vunpack.c.l.b16 %v3327
    %v3976 = vunpack.c.h.b16 %v3327
    %v3977 = vunpack.c.l.b16 %v3328
    %v3978 = vunpack.c.h.b16 %v3328
    %v3979 = vunpack.c.l.b16 %v3329
    %v3980 = vunpack.c.h.b16 %v3329
    %v3981 = vunpack.c.l.b16 %v3330
    %v3982 = vunpack.c.l.b16 %v3331
    %v3983 = vunpack.c.h.b16 %v3331
    %v3984 = vunpack.c.l.b16 %v3332
    %v3985 = vunpack.c.h.b16 %v3332
    %v3986 = vunpack.c.l.b16 %v3333
    %v3987 = vunpack.c.h.b16 %v3333
    %v3988 = vunpack.c.l.b16 %v3334
    %v3989 = vunpack.c.l.b16 %v3335
    %v3990 = vunpack.c.h.b16 %v3335
    %v3991 = vunpack.c.l.b16 %v3336
    %v3992 = vunpack.c.h.b16 %v3336
    %v3993 = vunpack.c.l.b16 %v3337
    %v3994 = vunpack.c.h.b16 %v3337
    %v3995 = vunpack.c.l.b16 %v3338
    %v3996 = vunpack.c.l.b16 %v3339
    %v3997 = vunpack.c.h.b16 %v3339
    %v3998 = vunpack.c.l.b16 %v3340
    %v3999 = vunpack.c.h.b16 %v3340
    %v4000 = vunpack.c.l.b16 %v3341
    %v4001 = vunpack.c.h.b16 %v3341
    %v4002 = vunpack.c.l.b16 %v3342
    %v4003 = vunpack.c.l.b16 %v3343
    %v4004 = vunpack.c.h.b16 %v3343
    %v4005 = vunpack.c.l.b16 %v3344
    %v4006 = vunpack.c.h.b16 %v3344
    %v4007 = vunpack.c.l.b16 %v3345
    %v4008 = vunpack.c.h.b16 %v3345
    %v4009 = vunpack.c.l.b16 %v3346
    %v4010 = vunpack.c.l.b16 %v3347
    %v4011 = vunpack.c.h.b16 %v3347
    %v4012 = vunpack.c.l.b16 %v3348
    %v4013 = vunpack.c.h.b16 %v3348
    %v4014 = vunpack.c.l.b16 %v3349
    %v4015 = vunpack.c.h.b16 %v3349
    %v4016 = vunpack.c.l.b16 %v3350
    %v4017 = vunpack.c.l.b16 %v3351
    %v4018 = vunpack.c.h.b16 %v3351
    %v4019 = vunpack.c.l.b16 %v3352
    %v4020 = vunpack.c.h.b16 %v3352
    %v4021 = vunpack.c.l.b16 %v3353
    %v4022 = vunpack.c.h.b16 %v3353
    %v4023 = vunpack.c.l.b16 %v3354
    %v4024 = vunpack.c.l.b16 %v3355
    %v4025 = vunpack.c.h.b16 %v3355
    %v4026 = vunpack.c.l.b16 %v3356
    %v4027 = vunpack.c.h.b16 %v3356
    %v4028 = vunpack.c.l.b16 %v3357
    %v4029 = vunpack.c.h.b16 %v3357
    %v4030 = vunpack.c.l.b16 %v3358
    %v4031 = vunpack.c.l.b16 %v3359
    %v4032 = vunpack.c.h.b16 %v3359
    %v4033 = vunpack.c.l.b16 %v3360
    %v4034 = vunpack.c.h.b16 %v3360
    %v4035 = vunpack.c.l.b16 %v3361
    %v4036 = vunpack.c.h.b16 %v3361
    %v4037 = vunpack.c.l.b16 %v3362
    %v4038 = vunpack.c.l.b16 %v3363
    %v4039 = vunpack.c.h.b16 %v3363
    %v4040 = vunpack.c.l.b16 %v3364
    %v4041 = vunpack.c.h.b16 %v3364
    %v4042 = vunpack.c.l.b16 %v3365
    %v4043 = vunpack.c.h.b16 %v3365
    %v4044 = vunpack.c.l.b16 %v3366
    %v4045 = vunpack.c.l.b16 %v3367
    %v4046 = vunpack.c.h.b16 %v3367
    %v4047 = vunpack.c.l.b16 %v3368
    %v4048 = vunpack.c.h.b16 %v3368
    %v4049 = vunpack.c.l.b16 %v3369
    %v4050 = vunpack.c.h.b16 %v3369
    %v4051 = vunpack.c.l.b16 %v3370
    %v4052 = vunpack.c.l.b16 %v3371
    %v4053 = vunpack.c.h.b16 %v3371
    %v4054 = vunpack.c.l.b16 %v3372
    %v4055 = vunpack.c.h.b16 %v3372
    %v4056 = vunpack.c.l.b16 %v3373
    %v4057 = vunpack.c.h.b16 %v3373
    %v4058 = vunpack.c.l.b16 %v3374
    %v4059 = vunpack.c.l.b16 %v3375
    %v4060 = vunpack.c.h.b16 %v3375
    %v4061 = vunpack.c.l.b16 %v3376
    %v4062 = vunpack.c.h.b16 %v3376
    %v4063 = vunpack.c.l.b16 %v3377
    %v4064 = vunpack.c.h.b16 %v3377
    %v4065 = vunpack.c.l.b16 %v3378
    %v4066 = vunpack.c.l.b16 %v3379
    %v4067 = vunpack.c.h.b16 %v3379
    %v4068 = vunpack.c.l.b16 %v3380
    %v4069 = vunpack.c.h.b16 %v3380
    %v4070 = vunpack.c.l.b16 %v3381
    %v4071 = vunpack.c.h.b16 %v3381
    %v4072 = vunpack.c.l.b16 %v3382
    %v4073 = vunpack.c.l.b16 %v3383
    %v4074 = vunpack.c.h.b16 %v3383
    %v4075 = vunpack.c.l.b16 %v3384
    %v4076 = vunpack.c.h.b16 %v3384
    %v4077 = vunpack.c.l.b16 %v3385
    %v4078 = vunpack.c.h.b16 %v3385
    %v4079 = vunpack.c.l.b16 %v3386
    %v4080 = vunpack.c.l.b16 %v3387
    %v4081 = vunpack.c.h.b16 %v3387
    %v4082 = vunpack.c.l.b16 %v3388
    %v4083 = vunpack.c.h.b16 %v3388
    %v4084 = vunpack.c.l.b16 %v3389
    %v4085 = vunpack.c.h.b16 %v3389
    %v4086 = vunpack.c.l.b16 %v3390
    %v4087 = vunpack.c.l.b16 %v3391
    %v4088 = vunpack.c.h.b16 %v3391
    %v4089 = vunpack.c.l.b16 %v3392
    %v4090 = vunpack.c.h.b16 %v3392
    %v4091 = vunpack.c.l.b16 %v3393
    %v4092 = vunpack.c.h.b16 %v3393
    %v4093 = vunpack.c.l.b16 %v3394
    %v4094 = vunpack.c.l.b16 %v3395
    %v4095 = vunpack.c.h.b16 %v3395
    %v4096 = vunpack.c.l.b16 %v3396
    %v4097 = vunpack.c.h.b16 %v3396
    %v4098 = vunpack.c.l.b16 %v3397
    %v4099 = vunpack.c.h.b16 %v3397
    %v4100 = vunpack.c.l.b16 %v3398
    %v4101 = vunpack.c.l.b16 %v3399
    %v4102 = vunpack.c.h.b16 %v3399
    %v4103 = vunpack.c.l.b16 %v3400
    %v4104 = vunpack.c.h.b16 %v3400
    %v4105 = vunpack.c.l.b16 %v3401
    %v4106 = vunpack.c.h.b16 %v3401
    %v4107 = vunpack.c.l.b16 %v3402
    %v4108 = vunpack.c.l.b16 %v3403
    %v4109 = vunpack.c.h.b16 %v3403
    %v4110 = vunpack.c.l.b16 %v3404
    %v4111 = vunpack.c.h.b16 %v3404
    %v4112 = vunpack.c.l.b16 %v3405
    %v4113 = vunpack.c.h.b16 %v3405
    %v4114 = vunpack.c.l.b16 %v3406
    %v4115 = vunpack.c.l.b16 %v3407
    %v4116 = vunpack.c.h.b16 %v3407
    %v4117 = vunpack.c.l.b16 %v3408
    %v4118 = vunpack.c.h.b16 %v3408
    %v4119 = vunpack.c.l.b16 %v3409
    %v4120 = vunpack.c.h.b16 %v3409
    %v4121 = vunpack.c.l.b16 %v3410
    %v4122 = vunpack.c.l.b16 %v3411
    %v4123 = vunpack.c.h.b16 %v3411
    %v4124 = vunpack.c.l.b16 %v3412
    %v4125 = vunpack.c.h.b16 %v3412
    %v4126 = vunpack.c.l.b16 %v3413
    %v4127 = vunpack.c.h.b16 %v3413
    %v4128 = vunpack.c.l.b16 %v3414
    %v4129 = vunpack.c.l.b16 %v3415
    %v4130 = vunpack.c.h.b16 %v3415
    %v4131 = vunpack.c.l.b16 %v3416
    %v4132 = vunpack.c.h.b16 %v3416
    %v4133 = vunpack.c.l.b16 %v3417
    %v4134 = vunpack.c.h.b16 %v3417
    %v4135 = vunpack.c.l.b16 %v3418
    %v4136 = vunpack.c.l.b16 %v3419
    %v4137 = vunpack.c.h.b16 %v3419
    %v4138 = vunpack.c.l.b16 %v3420
    %v4139 = vunpack.c.h.b16 %v3420
    %v4140 = vunpack.c.l.b16 %v3421
    %v4141 = vunpack.c.h.b16 %v3421
    %v4142 = vunpack.c.l.b16 %v3422
    %v4143 = vunpack.c.l.b16 %v3423
    %v4144 = vunpack.c.h.b16 %v3423
    %v4145 = vunpack.c.l.b16 %v3424
    %v4146 = vunpack.c.h.b16 %v3424
    %v4147 = vunpack.c.l.b16 %v3425
    %v4148 = vunpack.c.h.b16 %v3425
    %v4149 = vunpack.c.l.b16 %v3426
    %v4150 = vunpack.c.l.b16 %v3427
    %v4151 = vunpack.c.h.b16 %v3427
    %v4152 = vunpack.c.l.b16 %v3428
    %v4153 = vunpack.c.h.b16 %v3428
    %v4154 = vunpack.c.l.b16 %v3429
    %v4155 = vunpack.c.h.b16 %v3429
    %v4156 = vunpack.c.l.b16 %v3430
    %v4157 = vunpack.c.l.b16 %v3431
    %v4158 = vunpack.c.h.b16 %v3431
    %v4159 = vunpack.c.l.b16 %v3432
    %v4160 = vunpack.c.h.b16 %v3432
    %v4161 = vunpack.c.l.b16 %v3433
    %v4162 = vunpack.c.h.b16 %v3433
    %v4163 = vunpack.c.l.b16 %v3434
    %v4164 = vunpack.c.l.b16 %v3435
    %v4165 = vunpack.c.h.b16 %v3435
    %v4166 = vunpack.c.l.b16 %v3436
    %v4167 = vunpack.c.h.b16 %v3436
    %v4168 = vunpack.c.l.b16 %v3437
    %v4169 = vunpack.c.h.b16 %v3437
    %v4170 = vunpack.c.l.b16 %v3438
    %v4171 = vunpack.c.l.b16 %v3439
    %v4172 = vunpack.c.h.b16 %v3439
    %v4173 = vunpack.c.l.b16 %v3440
    %v4174 = vunpack.c.h.b16 %v3440
    %v4175 = vunpack.c.l.b16 %v3441
    %v4176 = vunpack.c.h.b16 %v3441
    %v4177 = vunpack.c.l.b16 %v3442
    %v4178 = vunpack.c.l.b16 %v3443
    %v4179 = vunpack.c.h.b16 %v3443
    %v4180 = vunpack.c.l.b16 %v3444
    %v4181 = vunpack.c.h.b16 %v3444
    %v4182 = vunpack.c.l.b16 %v3445
    %v4183 = vunpack.c.h.b16 %v3445
    %v4184 = vunpack.c.l.b16 %v3446
    %v4185 = vunpack.c.l.b16 %v3447
    %v4186 = vunpack.c.h.b16 %v3447
    %v4187 = vunpack.c.l.b16 %v3448
    %v4188 = vunpack.c.h.b16 %v3448
    %v4189 = vunpack.c.l.b16 %v3449
    %v4190 = vunpack.c.h.b16 %v3449
    %v4191 = vunpack.c.l.b16 %v3450
    %v4192 = vpack.c.b16 %v3751, %v3744
    %v4193 = vpack.c.b16 %v3752, %v3745
    %v4194 = vpack.c.b16 %v3753, %v3746
    %v4195 = vpack.c.b16 %v3754, %v3747
    %v4196 = vpack.c.b16 %v3755, %v3748
    %v4197 = vpack.c.b16 %v3756, %v3749
    %v4198 = vpack.c.b16 %v3757, %v3750
    %v4199 = vpack.c.b16 %v3765, %v3758
    %v4200 = vpack.c.b16 %v3766, %v3759
    %v4201 = vpack.c.b16 %v3767, %v3760
    %v4202 = vpack.c.b16 %v3768, %v3761
    %v4203 = vpack.c.b16 %v3769, %v3762
    %v4204 = vpack.c.b16 %v3770, %v3763
    %v4205 = vpack.c.b16 %v3771, %v3764
    %v4206 = vpack.c.b16 %v3779, %v3772
    %v4207 = vpack.c.b16 %v3780, %v3773
    %v4208 = vpack.c.b16 %v3781, %v3774
    %v4209 = vpack.c.b16 %v3782, %v3775
    %v4210 = vpack.c.b16 %v3783, %v3776
    %v4211 = vpack.c.b16 %v3784, %v3777
    %v4212 = vpack.c.b16 %v3785, %v3778
    %v4213 = vpack.c.b16 %v3793, %v3786
    %v4214 = vpack.c.b16 %v3794, %v3787
    %v4215 = vpack.c.b16 %v3795, %v3788
    %v4216 = vpack.c.b16 %v3796, %v3789
    %v4217 = vpack.c.b16 %v3797, %v3790
    %v4218 = vpack.c.b16 %v3798, %v3791
    %v4219 = vpack.c.b16 %v3799, %v3792
    %v4220 = vpack.c.b16 %v3807, %v3800
    %v4221 = vpack.c.b16 %v3808, %v3801
    %v4222 = vpack.c.b16 %v3809, %v3802
    %v4223 = vpack.c.b16 %v3810, %v3803
    %v4224 = vpack.c.b16 %v3811, %v3804
    %v4225 = vpack.c.b16 %v3812, %v3805
    %v4226 = vpack.c.b16 %v3813, %v3806
    %v4227 = vpack.c.b16 %v3821, %v3814
    %v4228 = vpack.c.b16 %v3822, %v3815
    %v4229 = vpack.c.b16 %v3823, %v3816
    %v4230 = vpack.c.b16 %v3824, %v3817
    %v4231 = vpack.c.b16 %v3825, %v3818
    %v4232 = vpack.c.b16 %v3826, %v3819
    %v4233 = vpack.c.b16 %v3827, %v3820
    %v4234 = vpack.c.b16 %v3835, %v3828
    %v4235 = vpack.c.b16 %v3836, %v3829
    %v4236 = vpack.c.b16 %v3837, %v3830
    %v4237 = vpack.c.b16 %v3838, %v3831
    %v4238 = vpack.c.b16 %v3839, %v3832
    %v4239 = vpack.c.b16 %v3840, %v3833
    %v4240 = vpack.c.b16 %v3841, %v3834
    %v4241 = vpack.c.b16 %v3849, %v3842
    %v4242 = vpack.c.b16 %v3850, %v3843
    %v4243 = vpack.c.b16 %v3851, %v3844
    %v4244 = vpack.c.b16 %v3852, %v3845
    %v4245 = vpack.c.b16 %v3853, %v3846
    %v4246 = vpack.c.b16 %v3854, %v3847
    %v4247 = vpack.c.b16 %v3855, %v3848
    %v4248 = vpack.c.b16 %v3863, %v3856
    %v4249 = vpack.c.b16 %v3864, %v3857
    %v4250 = vpack.c.b16 %v3865, %v3858
    %v4251 = vpack.c.b16 %v3866, %v3859
    %v4252 = vpack.c.b16 %v3867, %v3860
    %v4253 = vpack.c.b16 %v3868, %v3861
    %v4254 = vpack.c.b16 %v3869, %v3862
    %v4255 = vpack.c.b16 %v3877, %v3870
    %v4256 = vpack.c.b16 %v3878, %v3871
    %v4257 = vpack.c.b16 %v3879, %v3872
    %v4258 = vpack.c.b16 %v3880, %v3873
    %v4259 = vpack.c.b16 %v3881, %v3874
    %v4260 = vpack.c.b16 %v3882, %v3875
    %v4261 = vpack.c.b16 %v3883, %v3876
    %v4262 = vpack.c.b16 %v3891, %v3884
    %v4263 = vpack.c.b16 %v3892, %v3885
    %v4264 = vpack.c.b16 %v3893, %v3886
    %v4265 = vpack.c.b16 %v3894, %v3887
    %v4266 = vpack.c.b16 %v3895, %v3888
    %v4267 = vpack.c.b16 %v3896, %v3889
    %v4268 = vpack.c.b16 %v3897, %v3890
    %v4269 = vpack.c.b16 %v3905, %v3898
    %v4270 = vpack.c.b16 %v3906, %v3899
    %v4271 = vpack.c.b16 %v3907, %v3900
    %v4272 = vpack.c.b16 %v3908, %v3901
    %v4273 = vpack.c.b16 %v3909, %v3902
    %v4274 = vpack.c.b16 %v3910, %v3903
    %v4275 = vpack.c.b16 %v3911, %v3904
    %v4276 = vpack.c.b16 %v3919, %v3912
    %v4277 = vpack.c.b16 %v3920, %v3913
    %v4278 = vpack.c.b16 %v3921, %v3914
    %v4279 = vpack.c.b16 %v3922, %v3915
    %v4280 = vpack.c.b16 %v3923, %v3916
    %v4281 = vpack.c.b16 %v3924, %v3917
    %v4282 = vpack.c.b16 %v3925, %v3918
    %v4283 = vpack.c.b16 %v3933, %v3926
    %v4284 = vpack.c.b16 %v3934, %v3927
    %v4285 = vpack.c.b16 %v3935, %v3928
    %v4286 = vpack.c.b16 %v3936, %v3929
    %v4287 = vpack.c.b16 %v3937, %v3930
    %v4288 = vpack.c.b16 %v3938, %v3931
    %v4289 = vpack.c.b16 %v3939, %v3932
    %v4290 = vpack.c.b16 %v3947, %v3940
    %v4291 = vpack.c.b16 %v3948, %v3941
    %v4292 = vpack.c.b16 %v3949, %v3942
    %v4293 = vpack.c.b16 %v3950, %v3943
    %v4294 = vpack.c.b16 %v3951, %v3944
    %v4295 = vpack.c.b16 %v3952, %v3945
    %v4296 = vpack.c.b16 %v3953, %v3946
    %v4297 = vpack.c.b16 %v3961, %v3954
    %v4298 = vpack.c.b16 %v3962, %v3955
    %v4299 = vpack.c.b16 %v3963, %v3956
    %v4300 = vpack.c.b16 %v3964, %v3957
    %v4301 = vpack.c.b16 %v3965, %v3958
    %v4302 = vpack.c.b16 %v3966, %v3959
    %v4303 = vpack.c.b16 %v3967, %v3960
    %v4304 = vpack.c.b16 %v3975, %v3968
    %v4305 = vpack.c.b16 %v3976, %v3969
    %v4306 = vpack.c.b16 %v3977, %v3970
    %v4307 = vpack.c.b16 %v3978, %v3971
    %v4308 = vpack.c.b16 %v3979, %v3972
    %v4309 = vpack.c.b16 %v3980, %v3973
    %v4310 = vpack.c.b16 %v3981, %v3974
    %v4311 = vpack.c.b16 %v3989, %v3982
    %v4312 = vpack.c.b16 %v3990, %v3983
    %v4313 = vpack.c.b16 %v3991, %v3984
    %v4314 = vpack.c.b16 %v3992, %v3985
    %v4315 = vpack.c.b16 %v3993, %v3986
    %v4316 = vpack.c.b16 %v3994, %v3987
    %v4317 = vpack.c.b16 %v3995, %v3988
    %v4318 = vpack.c.b16 %v4003, %v3996
    %v4319 = vpack.c.b16 %v4004, %v3997
    %v4320 = vpack.c.b16 %v4005, %v3998
    %v4321 = vpack.c.b16 %v4006, %v3999
    %v4322 = vpack.c.b16 %v4007, %v4000
    %v4323 = vpack.c.b16 %v4008, %v4001
    %v4324 = vpack.c.b16 %v4009, %v4002
    %v4325 = vpack.c.b16 %v4017, %v4010
    %v4326 = vpack.c.b16 %v4018, %v4011
    %v4327 = vpack.c.b16 %v4019, %v4012
    %v4328 = vpack.c.b16 %v4020, %v4013
    %v4329 = vpack.c.b16 %v4021, %v4014
    %v4330 = vpack.c.b16 %v4022, %v4015
    %v4331 = vpack.c.b16 %v4023, %v4016
    %v4332 = vpack.c.b16 %v4031, %v4024
    %v4333 = vpack.c.b16 %v4032, %v4025
    %v4334 = vpack.c.b16 %v4033, %v4026
    %v4335 = vpack.c.b16 %v4034, %v4027
    %v4336 = vpack.c.b16 %v4035, %v4028
    %v4337 = vpack.c.b16 %v4036, %v4029
    %v4338 = vpack.c.b16 %v4037, %v4030
    %v4339 = vpack.c.b16 %v4045, %v4038
    %v4340 = vpack.c.b16 %v4046, %v4039
    %v4341 = vpack.c.b16 %v4047, %v4040
    %v4342 = vpack.c.b16 %v4048, %v4041
    %v4343 = vpack.c.b16 %v4049, %v4042
    %v4344 = vpack.c.b16 %v4050, %v4043
    %v4345 = vpack.c.b16 %v4051, %v4044
    %v4346 = vpack.c.b16 %v4059, %v4052
    %v4347 = vpack.c.b16 %v4060, %v4053
    %v4348 = vpack.c.b16 %v4061, %v4054
    %v4349 = vpack.c.b16 %v4062, %v4055
    %v4350 = vpack.c.b16 %v4063, %v4056
    %v4351 = vpack.c.b16 %v4064, %v4057
    %v4352 = vpack.c.b16 %v4065, %v4058
    %v4353 = vpack.c.b16 %v4073, %v4066
    %v4354 = vpack.c.b16 %v4074, %v4067
    %v4355 = vpack.c.b16 %v4075, %v4068
    %v4356 = vpack.c.b16 %v4076, %v4069
    %v4357 = vpack.c.b16 %v4077, %v4070
    %v4358 = vpack.c.b16 %v4078, %v4071
    %v4359 = vpack.c.b16 %v4079, %v4072
    %v4360 = vpack.c.b16 %v4087, %v4080
    %v4361 = vpack.c.b16 %v4088, %v4081
    %v4362 = vpack.c.b16 %v4089, %v4082
    %v4363 = vpack.c.b16 %v4090, %v4083
    %v4364 = vpack.c.b16 %v4091, %v4084
    %v4365 = vpack.c.b16 %v4092, %v4085
    %v4366 = vpack.c.b16 %v4093, %v4086
    %v4367 = vpack.c.b16 %v4101, %v4094
    %v4368 = vpack.c.b16 %v4102, %v4095
    %v4369 = vpack.c.b16 %v4103, %v4096
    %v4370 = vpack.c.b16 %v4104, %v4097
    %v4371 = vpack.c.b16 %v4105, %v4098
    %v4372 = vpack.c.b16 %v4106, %v4099
    %v4373 = vpack.c.b16 %v4107, %v4100
    %v4374 = vpack.c.b16 %v4115, %v4108
    %v4375 = vpack.c.b16 %v4116, %v4109
    %v4376 = vpack.c.b16 %v4117, %v4110
    %v4377 = vpack.c.b16 %v4118, %v4111
    %v4378 = vpack.c.b16 %v4119, %v4112
    %v4379 = vpack.c.b16 %v4120, %v4113
    %v4380 = vpack.c.b16 %v4121, %v4114
    %v4381 = vpack.c.b16 %v4129, %v4122
    %v4382 = vpack.c.b16 %v4130, %v4123
    %v4383 = vpack.c.b16 %v4131, %v4124
    %v4384 = vpack.c.b16 %v4132, %v4125
    %v4385 = vpack.c.b16 %v4133, %v4126
    %v4386 = vpack.c.b16 %v4134, %v4127
    %v4387 = vpack.c.b16 %v4135, %v4128
    %v4388 = vpack.c.b16 %v4143, %v4136
    %v4389 = vpack.c.b16 %v4144, %v4137
    %v4390 = vpack.c.b16 %v4145, %v4138
    %v4391 = vpack.c.b16 %v4146, %v4139
    %v4392 = vpack.c.b16 %v4147, %v4140
    %v4393 = vpack.c.b16 %v4148, %v4141
    %v4394 = vpack.c.b16 %v4149, %v4142
    %v4395 = vpack.c.b16 %v4157, %v4150
    %v4396 = vpack.c.b16 %v4158, %v4151
    %v4397 = vpack.c.b16 %v4159, %v4152
    %v4398 = vpack.c.b16 %v4160, %v4153
    %v4399 = vpack.c.b16 %v4161, %v4154
    %v4400 = vpack.c.b16 %v4162, %v4155
    %v4401 = vpack.c.b16 %v4163, %v4156
    %v4402 = vpack.c.b16 %v4171, %v4164
    %v4403 = vpack.c.b16 %v4172, %v4165
    %v4404 = vpack.c.b16 %v4173, %v4166
    %v4405 = vpack.c.b16 %v4174, %v4167
    %v4406 = vpack.c.b16 %v4175, %v4168
    %v4407 = vpack.c.b16 %v4176, %v4169
    %v4408 = vpack.c.b16 %v4177, %v4170
    %v4409 = vpack.c.b16 %v4185, %v4178
    %v4410 = vpack.c.b16 %v4186, %v4179
    %v4411 = vpack.c.b16 %v4187, %v4180
    %v4412 = vpack.c.b16 %v4188, %v4181
    %v4413 = vpack.c.b16 %v4189, %v4182
    %v4414 = vpack.c.b16 %v4190, %v4183
    %v4415 = vpack.c.b16 %v4191, %v4184
    %4640 = vmatprep.subr.bf16.mxu0 %v4193
    %4641 = vmatpush1.bf16.msra.mxu0 %v4192
    %4642 = vmatprep.subr.bf16.mxu0 %v4200
    %4643 = vmatpush1.bf16.msra.mxu0 %v4199
    %4644 = vmatprep.subr.bf16.mxu0 %v4207
    %4645 = vmatpush1.bf16.msra.mxu0 %v4206
    %4646 = vmatprep.subr.bf16.mxu0 %v4214
    %4647 = vmatpush1.bf16.msra.mxu0 %v4213
    %4648 = vmatprep.subr.bf16.mxu0 %v4221
    %4649 = vmatpush1.bf16.msra.mxu0 %v4220
    %4650 = vmatprep.subr.bf16.mxu0 %v4228
    %4651 = vmatpush1.bf16.msra.mxu0 %v4227
    %4652 = vmatprep.subr.bf16.mxu0 %v4235
    %4653 = vmatpush1.bf16.msra.mxu0 %v4234
    %4654 = vmatprep.subr.bf16.mxu0 %v4242
    %4655 = vmatpush1.bf16.msra.mxu0 %v4241
    %4656 = vmatprep.subr.bf16.mxu0 %v4249
    %4657 = vmatpush1.bf16.msra.mxu0 %v4248
    %4658 = vmatprep.subr.bf16.mxu0 %v4256
    %4659 = vmatpush1.bf16.msra.mxu0 %v4255
    %4660 = vmatprep.subr.bf16.mxu0 %v4263
    %4661 = vmatpush1.bf16.msra.mxu0 %v4262
    %4662 = vmatprep.subr.bf16.mxu0 %v4270
    %4663 = vmatpush1.bf16.msra.mxu0 %v4269
    %4664 = vmatprep.subr.bf16.mxu0 %v4277
    %4665 = vmatpush1.bf16.msra.mxu0 %v4276
    %4666 = vmatprep.subr.bf16.mxu0 %v4284
    %4667 = vmatpush1.bf16.msra.mxu0 %v4283
    %4668 = vmatprep.subr.bf16.mxu0 %v4291
    %4669 = vmatpush1.bf16.msra.mxu0 %v4290
    %4670 = vmatprep.subr.bf16.mxu0 %v4298
    %4671 = vmatpush1.bf16.msra.mxu0 %v4297
    %4672 = vmatprep.mubr.bf16.mxu0 %v3192
    %4673 = vmatmul.mubr.bf16.gmra.mrb[0].mxu0 %v3191
    %v4674 = vpop.f32.mrb[0].mxu0
    %v4675 = vadd.f32 %v3456, %v4674
    %v4676 = vpop.f32.mrb[0].mxu0
    %v4677 = vadd.f32 %v3460, %v4676
    %v4678 = vpop.f32.mrb[0].mxu0
    %v4679 = vpop.f32.mrb[0].mxu0
    %4680 = vdwg.mxu0
    %4681 = vmatprep.subr.bf16.mxu0 %v4305
    %4682 = vmatpush1.bf16.msra.mxu0 %v4304
    %4683 = vmatprep.subr.bf16.mxu0 %v4312
    %4684 = vmatpush1.bf16.msra.mxu0 %v4311
    %4685 = vmatprep.subr.bf16.mxu0 %v4319
    %4686 = vmatpush1.bf16.msra.mxu0 %v4318
    %4687 = vmatprep.subr.bf16.mxu0 %v4326
    %4688 = vmatpush1.bf16.msra.mxu0 %v4325
    %4689 = vmatprep.subr.bf16.mxu0 %v4333
    %4690 = vmatpush1.bf16.msra.mxu0 %v4332
    %4691 = vmatprep.subr.bf16.mxu0 %v4340
    %4692 = vmatpush1.bf16.msra.mxu0 %v4339
    %4693 = vmatprep.subr.bf16.mxu0 %v4347
    %4694 = vmatpush1.bf16.msra.mxu0 %v4346
    %4695 = vmatprep.subr.bf16.mxu0 %v4354
    %4696 = vmatpush1.bf16.msra.mxu0 %v4353
    %4697 = vmatprep.subr.bf16.mxu0 %v4361
    %4698 = vmatpush1.bf16.msra.mxu0 %v4360
    %4699 = vmatprep.subr.bf16.mxu0 %v4368
    %4700 = vmatpush1.bf16.msra.mxu0 %v4367
    %4701 = vmatprep.subr.bf16.mxu0 %v4375
    %4702 = vmatpush1.bf16.msra.mxu0 %v4374
    %4703 = vmatprep.subr.bf16.mxu0 %v4382
    %4704 = vmatpush1.bf16.msra.mxu0 %v4381
    %4705 = vmatprep.subr.bf16.mxu0 %v4389
    %4706 = vmatpush1.bf16.msra.mxu0 %v4388
    %4707 = vmatprep.subr.bf16.mxu0 %v4396
    %4708 = vmatpush1.bf16.msra.mxu0 %v4395
    %4709 = vmatprep.subr.bf16.mxu0 %v4403
    %4710 = vmatpush1.bf16.msra.mxu0 %v4402
    %4711 = vmatprep.subr.bf16.mxu0 %v4410
    %4712 = vmatpush1.bf16.msra.mxu0 %v4409
    %4713 = vmatprep.mubr.bf16.mxu0 %v3194
    %4714 = vmatmul.mubr.bf16.gmra.mrb[0].mxu0 %v3193
    %v4715 = vpop.f32.mrb[0].mxu0
    %v4716 = vadd.f32 %v4675, %v4715
    %v4717 = vpop.f32.mrb[0].mxu0
    %v4718 = vadd.f32 %v4677, %v4717
    %v4719 = vpop.f32.mrb[0].mxu0
    %v4720 = vpop.f32.mrb[0].mxu0
    %4721 = vdwg.mxu0
    %4722 = vmatprep.subr.bf16.mxu0 %v4195
    %4723 = vmatpush1.bf16.msra.mxu0 %v4194
    %4724 = vmatprep.subr.bf16.mxu0 %v4202
    %4725 = vmatpush1.bf16.msra.mxu0 %v4201
    %4726 = vmatprep.subr.bf16.mxu0 %v4209
    %4727 = vmatpush1.bf16.msra.mxu0 %v4208
    %4728 = vmatprep.subr.bf16.mxu0 %v4216
    %4729 = vmatpush1.bf16.msra.mxu0 %v4215
    %4730 = vmatprep.subr.bf16.mxu0 %v4223
    %4731 = vmatpush1.bf16.msra.mxu0 %v4222
    %4732 = vmatprep.subr.bf16.mxu0 %v4230
    %4733 = vmatpush1.bf16.msra.mxu0 %v4229
    %4734 = vmatprep.subr.bf16.mxu0 %v4237
    %4735 = vmatpush1.bf16.msra.mxu0 %v4236
    %4736 = vmatprep.subr.bf16.mxu0 %v4244
    %4737 = vmatpush1.bf16.msra.mxu0 %v4243
    %4738 = vmatprep.subr.bf16.mxu0 %v4251
    %4739 = vmatpush1.bf16.msra.mxu0 %v4250
    %4740 = vmatprep.subr.bf16.mxu0 %v4258
    %4741 = vmatpush1.bf16.msra.mxu0 %v4257
    %4742 = vmatprep.subr.bf16.mxu0 %v4265
    %4743 = vmatpush1.bf16.msra.mxu0 %v4264
    %4744 = vmatprep.subr.bf16.mxu0 %v4272
    %4745 = vmatpush1.bf16.msra.mxu0 %v4271
    %4746 = vmatprep.subr.bf16.mxu0 %v4279
    %4747 = vmatpush1.bf16.msra.mxu0 %v4278
    %4748 = vmatprep.subr.bf16.mxu0 %v4286
    %4749 = vmatpush1.bf16.msra.mxu0 %v4285
    %4750 = vmatprep.subr.bf16.mxu0 %v4293
    %4751 = vmatpush1.bf16.msra.mxu0 %v4292
    %4752 = vmatprep.subr.bf16.mxu0 %v4300
    %4753 = vmatpush1.bf16.msra.mxu0 %v4299
    %4754 = vmatprep.mubr.bf16.mxu0 %v3192
    %4755 = vmatmul.mubr.bf16.gmra.mrb[0].mxu0 %v3191
    %v4756 = vpop.f32.mrb[0].mxu0
    %v4757 = vadd.f32 %v3464, %v4756
    %v4758 = vpop.f32.mrb[0].mxu0
    %v4759 = vadd.f32 %v3468, %v4758
    %v4760 = vpop.f32.mrb[0].mxu0
    %v4761 = vpop.f32.mrb[0].mxu0
    %4762 = vdwg.mxu0
    %4763 = vmatprep.subr.bf16.mxu0 %v4307
    %4764 = vmatpush1.bf16.msra.mxu0 %v4306
    %4765 = vmatprep.subr.bf16.mxu0 %v4314
    %4766 = vmatpush1.bf16.msra.mxu0 %v4313
    %4767 = vmatprep.subr.bf16.mxu0 %v4321
    %4768 = vmatpush1.bf16.msra.mxu0 %v4320
    %4769 = vmatprep.subr.bf16.mxu0 %v4328
    %4770 = vmatpush1.bf16.msra.mxu0 %v4327
    %4771 = vmatprep.subr.bf16.mxu0 %v4335
    %4772 = vmatpush1.bf16.msra.mxu0 %v4334
    %4773 = vmatprep.subr.bf16.mxu0 %v4342
    %4774 = vmatpush1.bf16.msra.mxu0 %v4341
    %4775 = vmatprep.subr.bf16.mxu0 %v4349
    %4776 = vmatpush1.bf16.msra.mxu0 %v4348
    %4777 = vmatprep.subr.bf16.mxu0 %v4356
    %4778 = vmatpush1.bf16.msra.mxu0 %v4355
    %4779 = vmatprep.subr.bf16.mxu0 %v4363
    %4780 = vmatpush1.bf16.msra.mxu0 %v4362
    %4781 = vmatprep.subr.bf16.mxu0 %v4370
    %4782 = vmatpush1.bf16.msra.mxu0 %v4369
    %4783 = vmatprep.subr.bf16.mxu0 %v4377
    %4784 = vmatpush1.bf16.msra.mxu0 %v4376
    %4785 = vmatprep.subr.bf16.mxu0 %v4384
    %4786 = vmatpush1.bf16.msra.mxu0 %v4383
    %4787 = vmatprep.subr.bf16.mxu0 %v4391
    %4788 = vmatpush1.bf16.msra.mxu0 %v4390
    %4789 = vmatprep.subr.bf16.mxu0 %v4398
    %4790 = vmatpush1.bf16.msra.mxu0 %v4397
    %4791 = vmatprep.subr.bf16.mxu0 %v4405
    %4792 = vmatpush1.bf16.msra.mxu0 %v4404
    %4793 = vmatprep.subr.bf16.mxu0 %v4412
    %4794 = vmatpush1.bf16.msra.mxu0 %v4411
    %4795 = vmatprep.mubr.bf16.mxu0 %v3194
    %4796 = vmatmul.mubr.bf16.gmra.mrb[0].mxu0 %v3193
    %v4797 = vpop.f32.mrb[0].mxu0
    %v4798 = vadd.f32 %v4757, %v4797
    %v4799 = vpop.f32.mrb[0].mxu0
    %v4800 = vadd.f32 %v4759, %v4799
    %v4801 = vpop.f32.mrb[0].mxu0
    %v4802 = vpop.f32.mrb[0].mxu0
    %4803 = vdwg.mxu0
    %4804 = vmatprep.subr.bf16.mxu0 %v4197
    %4805 = vmatpush1.bf16.msra.mxu0 %v4196
    %4806 = vmatprep.subr.bf16.mxu0 %v4204
    %4807 = vmatpush1.bf16.msra.mxu0 %v4203
    %4808 = vmatprep.subr.bf16.mxu0 %v4211
    %4809 = vmatpush1.bf16.msra.mxu0 %v4210
    %4810 = vmatprep.subr.bf16.mxu0 %v4218
    %4811 = vmatpush1.bf16.msra.mxu0 %v4217
    %4812 = vmatprep.subr.bf16.mxu0 %v4225
    %4813 = vmatpush1.bf16.msra.mxu0 %v4224
    %4814 = vmatprep.subr.bf16.mxu0 %v4232
    %4815 = vmatpush1.bf16.msra.mxu0 %v4231
    %4816 = vmatprep.subr.bf16.mxu0 %v4239
    %4817 = vmatpush1.bf16.msra.mxu0 %v4238
    %4818 = vmatprep.subr.bf16.mxu0 %v4246
    %4819 = vmatpush1.bf16.msra.mxu0 %v4245
    %4820 = vmatprep.subr.bf16.mxu0 %v4253
    %4821 = vmatpush1.bf16.msra.mxu0 %v4252
    %4822 = vmatprep.subr.bf16.mxu0 %v4260
    %4823 = vmatpush1.bf16.msra.mxu0 %v4259
    %4824 = vmatprep.subr.bf16.mxu0 %v4267
    %4825 = vmatpush1.bf16.msra.mxu0 %v4266
    %4826 = vmatprep.subr.bf16.mxu0 %v4274
    %4827 = vmatpush1.bf16.msra.mxu0 %v4273
    %4828 = vmatprep.subr.bf16.mxu0 %v4281
    %4829 = vmatpush1.bf16.msra.mxu0 %v4280
    %4830 = vmatprep.subr.bf16.mxu0 %v4288
    %4831 = vmatpush1.bf16.msra.mxu0 %v4287
    %4832 = vmatprep.subr.bf16.mxu0 %v4295
    %4833 = vmatpush1.bf16.msra.mxu0 %v4294
    %4834 = vmatprep.subr.bf16.mxu0 %v4302
    %4835 = vmatpush1.bf16.msra.mxu0 %v4301
    %4836 = vmatprep.mubr.bf16.mxu0 %v3192
    %4837 = vmatmul.mubr.bf16.gmra.mrb[0].mxu0 %v3191
    %v4838 = vpop.f32.mrb[0].mxu0
    %v4839 = vadd.f32 %v3472, %v4838
    %v4840 = vpop.f32.mrb[0].mxu0
    %v4841 = vadd.f32 %v3476, %v4840
    %v4842 = vpop.f32.mrb[0].mxu0
    %v4843 = vpop.f32.mrb[0].mxu0
    %4844 = vdwg.mxu0
    %4845 = vmatprep.subr.bf16.mxu0 %v4309
    %4846 = vmatpush1.bf16.msra.mxu0 %v4308
    %4847 = vmatprep.subr.bf16.mxu0 %v4316
    %4848 = vmatpush1.bf16.msra.mxu0 %v4315
    %4849 = vmatprep.subr.bf16.mxu0 %v4323
    %4850 = vmatpush1.bf16.msra.mxu0 %v4322
    %4851 = vmatprep.subr.bf16.mxu0 %v4330
    %4852 = vmatpush1.bf16.msra.mxu0 %v4329
    %4853 = vmatprep.subr.bf16.mxu0 %v4337
    %4854 = vmatpush1.bf16.msra.mxu0 %v4336
    %4855 = vmatprep.subr.bf16.mxu0 %v4344
    %4856 = vmatpush1.bf16.msra.mxu0 %v4343
    %4857 = vmatprep.subr.bf16.mxu0 %v4351
    %4858 = vmatpush1.bf16.msra.mxu0 %v4350
    %4859 = vmatprep.subr.bf16.mxu0 %v4358
    %4860 = vmatpush1.bf16.msra.mxu0 %v4357
    %4861 = vmatprep.subr.bf16.mxu0 %v4365
    %4862 = vmatpush1.bf16.msra.mxu0 %v4364
    %4863 = vmatprep.subr.bf16.mxu0 %v4372
    %4864 = vmatpush1.bf16.msra.mxu0 %v4371
    %4865 = vmatprep.subr.bf16.mxu0 %v4379
    %4866 = vmatpush1.bf16.msra.mxu0 %v4378
    %4867 = vmatprep.subr.bf16.mxu0 %v4386
    %4868 = vmatpush1.bf16.msra.mxu0 %v4385
    %4869 = vmatprep.subr.bf16.mxu0 %v4393
    %4870 = vmatpush1.bf16.msra.mxu0 %v4392
    %4871 = vmatprep.subr.bf16.mxu0 %v4400
    %4872 = vmatpush1.bf16.msra.mxu0 %v4399
    %4873 = vmatprep.subr.bf16.mxu0 %v4407
    %4874 = vmatpush1.bf16.msra.mxu0 %v4406
    %4875 = vmatprep.subr.bf16.mxu0 %v4414
    %4876 = vmatpush1.bf16.msra.mxu0 %v4413
    %4877 = vmatprep.mubr.bf16.mxu0 %v3194
    %4878 = vmatmul.mubr.bf16.gmra.mrb[0].mxu0 %v3193
    %v4879 = vpop.f32.mrb[0].mxu0
    %v4880 = vadd.f32 %v4839, %v4879
    %v4881 = vpop.f32.mrb[0].mxu0
    %v4882 = vadd.f32 %v4841, %v4881
    %v4883 = vpop.f32.mrb[0].mxu0
    %v4884 = vpop.f32.mrb[0].mxu0
    %4885 = vdwg.mxu0
    %4886 = vmatprep.subr.bf16.mxu0 0
    %4887 = vmatpush1.bf16.msra.mxu0 %v4198
    %4888 = vmatprep.subr.bf16.mxu0 0
    %4889 = vmatpush1.bf16.msra.mxu0 %v4205
    %4890 = vmatprep.subr.bf16.mxu0 0
    %4891 = vmatpush1.bf16.msra.mxu0 %v4212
    %4892 = vmatprep.subr.bf16.mxu0 0
    %4893 = vmatpush1.bf16.msra.mxu0 %v4219
    %4894 = vmatprep.subr.bf16.mxu0 0
    %4895 = vmatpush1.bf16.msra.mxu0 %v4226
    %4896 = vmatprep.subr.bf16.mxu0 0
    %4897 = vmatpush1.bf16.msra.mxu0 %v4233
    %4898 = vmatprep.subr.bf16.mxu0 0
    %4899 = vmatpush1.bf16.msra.mxu0 %v4240
    %4900 = vmatprep.subr.bf16.mxu0 0
    %4901 = vmatpush1.bf16.msra.mxu0 %v4247
    %4902 = vmatprep.subr.bf16.mxu0 0
    %4903 = vmatpush1.bf16.msra.mxu0 %v4254
    %4904 = vmatprep.subr.bf16.mxu0 0
    %4905 = vmatpush1.bf16.msra.mxu0 %v4261
    %4906 = vmatprep.subr.bf16.mxu0 0
    %4907 = vmatpush1.bf16.msra.mxu0 %v4268
    %4908 = vmatprep.subr.bf16.mxu0 0
    %4909 = vmatpush1.bf16.msra.mxu0 %v4275
    %4910 = vmatprep.subr.bf16.mxu0 0
    %4911 = vmatpush1.bf16.msra.mxu0 %v4282
    %4912 = vmatprep.subr.bf16.mxu0 0
    %4913 = vmatpush1.bf16.msra.mxu0 %v4289
    %4914 = vmatprep.subr.bf16.mxu0 0
    %4915 = vmatpush1.bf16.msra.mxu0 %v4296
    %4916 = vmatprep.subr.bf16.mxu0 0
    %4917 = vmatpush1.bf16.msra.mxu0 %v4303
    %4918 = vmatprep.mubr.bf16.mxu0 %v3192
    %4919 = vmatmul.mubr.bf16.gmra.mrb[0].mxu0 %v3191
    %v4920 = vpop.f32.mrb[0].mxu0
    %v4921 = vadd.f32 %v3480, %v4920
    %v4922 = vpop.f32.mrb[0].mxu0
    %v4923 = vpop.f32.mrb[0].mxu0
    %v4924 = vpop.f32.mrb[0].mxu0
    %4925 = vdwg.mxu0
    %4926 = vmatprep.subr.bf16.mxu0 0
    %4927 = vmatpush1.bf16.msra.mxu0 %v4310
    %4928 = vmatprep.subr.bf16.mxu0 0
    %4929 = vmatpush1.bf16.msra.mxu0 %v4317
    %4930 = vmatprep.subr.bf16.mxu0 0
    %4931 = vmatpush1.bf16.msra.mxu0 %v4324
    %4932 = vmatprep.subr.bf16.mxu0 0
    %4933 = vmatpush1.bf16.msra.mxu0 %v4331
    %4934 = vmatprep.subr.bf16.mxu0 0
    %4935 = vmatpush1.bf16.msra.mxu0 %v4338
    %4936 = vmatprep.subr.bf16.mxu0 0
    %4937 = vmatpush1.bf16.msra.mxu0 %v4345
    %4938 = vmatprep.subr.bf16.mxu0 0
    %4939 = vmatpush1.bf16.msra.mxu0 %v4352
    %4940 = vmatprep.subr.bf16.mxu0 0
    %4941 = vmatpush1.bf16.msra.mxu0 %v4359
    %4942 = vmatprep.subr.bf16.mxu0 0
    %4943 = vmatpush1.bf16.msra.mxu0 %v4366
    %4944 = vmatprep.subr.bf16.mxu0 0
    %4945 = vmatpush1.bf16.msra.mxu0 %v4373
    %4946 = vmatprep.subr.bf16.mxu0 0
    %4947 = vmatpush1.bf16.msra.mxu0 %v4380
    %4948 = vmatprep.subr.bf16.mxu0 0
    %4949 = vmatpush1.bf16.msra.mxu0 %v4387
    %4950 = vmatprep.subr.bf16.mxu0 0
    %4951 = vmatpush1.bf16.msra.mxu0 %v4394
    %4952 = vmatprep.subr.bf16.mxu0 0
    %4953 = vmatpush1.bf16.msra.mxu0 %v4401
    %4954 = vmatprep.subr.bf16.mxu0 0
    %4955 = vmatpush1.bf16.msra.mxu0 %v4408
    %4956 = vmatprep.subr.bf16.mxu0 0
    %4957 = vmatpush1.bf16.msra.mxu0 %v4415
    %4958 = vmatprep.mubr.bf16.mxu0 %v3194
    %4959 = vmatmul.mubr.bf16.gmra.mrb[0].mxu0 %v3193
    %v4960 = vpop.f32.mrb[0].mxu0
    %v4961 = vadd.f32 %v4921, %v4960
    %v4962 = vpop.f32.mrb[0].mxu0
    %v4963 = vpop.f32.mrb[0].mxu0
    %v4964 = vpop.f32.mrb[0].mxu0
    %4965 = vdwg.mxu0
    %v4966 = vmax.f32 %v4716, 0.0
    %v4967 = vmax.f32 %v4718, 0.0
    %v4968 = vmax.f32 %v4798, 0.0
    %v4969 = vmax.f32 %v4800, 0.0
    %v4970 = vmax.f32 %v4880, 0.0
    %v4971 = vmax.f32 %v4882, 0.0
    %v4972 = vmax.f32 %v4961, 0.0
    %4973 = vst [vmem:[%s17] sm:$0xff] %v4966
    %4974 = vst [vmem:[%s17 + $0x8] sm:$0xff] %v4967
    %4975 = vst [vmem:[%s17 + $0x10] sm:$0xff] %v4968
    %4976 = vst [vmem:[%s17 + $0x18] sm:$0xff] %v4969
    %4977 = vst [vmem:[%s17 + $0x20] sm:$0xff] %v4970
    %4978 = vst [vmem:[%s17 + $0x28] sm:$0xff] %v4971
    %4979 = vst [vmem:[%s17 + $0x30] sm:$0xff] %v4972
    // Predicated region
    $region70: #{encoder_decoder_mnist_forward.1} parent=1 // pred_check
      _
    $region71: #{encoder_decoder_mnist_forward.1} parent=1 // pred_check_branch
      %4981 = sbr.rel (0) target = $region73
    $region72: #{encoder_decoder_mnist_forward.1} parent=1 // pred_region
      %s4983 = ssub.s32 128, 128
      %4984 = vsyncadd [#allocation4], %s4983
      %s4986 = sshll.u32 [#allocation8], 4
      %s4987 = int_to_ptr.vmem [resolvable:$true] %s4986
      %4989 = dma.vmem_to_hbm [thread:$0]  %s4987, 128, %s14, [#allocation4]
    $region73: #{encoder_decoder_mnist_forward.1} parent=1 // pred_fallthru
      _
    // Predicated region
    $region74: #{encoder_decoder_mnist_forward.1} parent=1 // pred_check
      _
    $region75: #{encoder_decoder_mnist_forward.1} parent=1 // pred_check_branch
      %4991 = sbr.rel (0) target = $region77
    $region76: #{encoder_decoder_mnist_forward.1} parent=1 // pred_region
      %s4993 = ssub.s32 128, 128
      %4994 = vsyncadd [#allocation10], %s4993
      %s4996 = sshll.u32 [#allocation9], 4
      %s4997 = int_to_ptr.vmem [resolvable:$true] %s4996
      %4999 = dma.vmem_to_hbm [thread:$0]  %s4997, 128, %s15, [#allocation10]
    $region77: #{encoder_decoder_mnist_forward.1} parent=1 // pred_fallthru
      _
    // Predicated region
    $region78: #{encoder_decoder_mnist_forward.1} parent=1 // pred_check
      _
    $region79: #{encoder_decoder_mnist_forward.1} parent=1 // pred_check_branch
      %5001 = sbr.rel (0) target = $region81
    $region80: #{encoder_decoder_mnist_forward.1} parent=1 // pred_region
      %s5003 = ssub.s32 128, 128
      %5004 = vsyncadd [#allocation10], %s5003
      %s5006 = sshll.u32 [#allocation11], 4
      %s5007 = int_to_ptr.vmem [resolvable:$true] %s5006
      %5009 = dma.vmem_to_hbm [thread:$0]  %s5007, 128, %s16, [#allocation10]
    $region81: #{encoder_decoder_mnist_forward.1} parent=1 // pred_fallthru
      _
    // Predicated region
    $region82: #{encoder_decoder_mnist_forward.1} parent=1 // pred_check
      _
    $region83: #{encoder_decoder_mnist_forward.1} parent=1 // pred_check_branch
      %5011 = sbr.rel (0) target = $region85
    $region84: #{encoder_decoder_mnist_forward.1} parent=1 // pred_region
      _
    $region85: #{encoder_decoder_mnist_forward.1} parent=1 // pred_fallthru
      _
    // Predicated region
    $region86: #{encoder_decoder_mnist_forward.1} parent=1 // pred_check
      _
    $region87: #{encoder_decoder_mnist_forward.1} parent=1 // pred_check_branch
      %5013 = sbr.rel (0) target = $region89
    $region88: #{encoder_decoder_mnist_forward.1} parent=1 // pred_region
      %5014 = dma.done [#allocation4], 128
    $region89: #{encoder_decoder_mnist_forward.1} parent=1 // pred_fallthru
      _
    // Predicated region
    $region90: #{encoder_decoder_mnist_forward.1} parent=1 // pred_check
      _
    $region91: #{encoder_decoder_mnist_forward.1} parent=1 // pred_check_branch
      %5016 = sbr.rel (0) target = $region93
    $region92: #{encoder_decoder_mnist_forward.1} parent=1 // pred_region
      %5017 = dma.done [#allocation10], 128
    $region93: #{encoder_decoder_mnist_forward.1} parent=1 // pred_fallthru
      _
    // Predicated region
    $region94: #{encoder_decoder_mnist_forward.1} parent=1 // pred_check
      _
    $region95: #{encoder_decoder_mnist_forward.1} parent=1 // pred_check_branch
      %5019 = sbr.rel (0) target = $region97
    $region96: #{encoder_decoder_mnist_forward.1} parent=1 // pred_region
      %5020 = dma.done [#allocation10], 128
    $region97: #{encoder_decoder_mnist_forward.1} parent=1 // pred_fallthru
      _
    // Predicated region
    $region98: #{encoder_decoder_mnist_forward.1} parent=1 // pred_check
      _
    $region99: #{encoder_decoder_mnist_forward.1} parent=1 // pred_check_branch
      %5022 = sbr.rel (0) target = $region101
    $region100: #{encoder_decoder_mnist_forward.1} parent=1 // pred_region
      _
    $region101: #{encoder_decoder_mnist_forward.1} parent=1 // pred_fallthru
      _
    %5023 = vsyncpa [#allocation3], 1
    %5024 = vsyncpa [#allocation6], 1
    %5025 = vsyncpa [#allocation4], 1
    %5026 = vsyncpa [#allocation10], 1

</llo_original>
